<compile_context>
chip_gen: v6e
topology: v6e:2x2x1
jax: 0.10.0
libtpu: 0.0.40
codegen_flags: <defaults>
</compile_context>

<pallas_src>
import functools

import numpy as np
import jax
import jax.numpy as jnp
from jax.experimental import pallas as pl
from jax.experimental.pallas import tpu as pltpu

# ---- fixed model hyper-parameters (from the PyTorch module) ------------------
KH1, KW1, C1 = 2, 16, 16          # conv1: Conv2d(1, 16, (2, 16))
KW2, C2 = 8, 8                    # conv2: Conv2d(16, 8, (1, 8))
KW3, C3 = 4, 4                    # conv3: Conv2d(8, 4, (1, 4))
FC1_OUT, FC2_OUT, FC3_OUT = 512, 128, 64
LANE = 128
MAX_BATCH_TILE = 128              # rows per grid step (multiple of 8)


def _round_up(x, m):
    return (x + m - 1) // m * m


# ------------------------------------------------------------------------------
# Fused Pallas kernel: conv1->tanh->conv2->tanh->conv3->tanh->flatten->fc1..fc4
# Activation layout: (h_out * BT, W*C) rows h-major / batch-minor, lane-dense.
# ------------------------------------------------------------------------------
def _team3_kernel(x_ref, w1_ref, b1_ref, w2_ref, b2_ref, w3_ref, b3_ref,
                  wf1_hbm, bf1_ref, wf2_hbm, bf2_ref, wf3_ref, bf3_ref,
                  wf4_ref, bf4_ref, o_ref, wf1_v, wf2_v, sem):
    f32 = jnp.float32
    bt = o_ref.shape[0]                       # batch-tile rows (multiple of 8)
    n_taps = w1_ref.shape[0]                  # conv1 kernel height (2)
    h_out = x_ref.shape[0] - (n_taps - 1)     # spatial height after conv1 (7)
    w_in = x_ref.shape[2]
    rows = h_out * bt

    # Prefetch the two big FC weights (HBM -> VMEM); hidden behind the convs.
    cp1 = pltpu.make_async_copy(wf1_hbm, wf1_v, sem.at[0])
    cp2 = pltpu.make_async_copy(wf2_hbm, wf2_v, sem.at[1])
    cp1.start()
    cp2.start()

    # ---- conv1 + tanh: one banded matmul per kernel-height tap --------------
    xv = x_ref[...]                                       # (H_in, BT, W_in)
    y = jnp.dot(xv[0:h_out].reshape(rows, w_in), w1_ref[0],
                preferred_element_type=f32)
    for i in range(1, n_taps):
        y = y + jnp.dot(xv[i:i + h_out].reshape(rows, w_in), w1_ref[i],
                        preferred_element_type=f32)
    a1 = jnp.tanh(y + b1_ref[...])                        # (rows, W1*C1=272)

    # ---- conv2 + tanh, conv3 + tanh: one banded matmul each -----------------
    a2 = jnp.tanh(jnp.dot(a1, w2_ref[...], preferred_element_type=f32)
                  + b2_ref[...])                          # (rows, W2*C2=80)
    a3 = jnp.tanh(jnp.dot(a2, w3_ref[...], preferred_element_type=f32)
                  + b3_ref[...])                          # (rows, W3*C3=28)

    # ---- flatten + fc1 + relu: one dot per h row-block, tree-reduced --------
    cp1.wait()
    parts = [jnp.dot(a3[h * bt:(h + 1) * bt, :].astype(jnp.bfloat16),
                     wf1_v[h], preferred_element_type=f32)
             for h in range(h_out)]
    while len(parts) > 1:                                 # pairwise reduction
        nxt = [parts[i] + parts[i + 1] for i in range(0, len(parts) - 1, 2)]
        if len(parts) % 2:
            nxt.append(parts[-1])
        parts = nxt
    h1 = jnp.maximum(parts[0] + bf1_ref[...], 0.0)        # (BT, 512)

    # ---- fc2 / fc3 / fc4 (fc4 lane-padded to 128 for a dense final store) ---
    cp2.wait()
    h2 = jnp.maximum(jnp.dot(h1.astype(jnp.bfloat16), wf2_v[...],
                             preferred_element_type=f32) + bf2_ref[...], 0.0)
    h3 = jnp.maximum(jnp.dot(h2, wf3_ref[...], preferred_element_type=f32)
                     + bf3_ref[...], 0.0)                 # (BT, 64)
    o_ref[...] = (jnp.dot(h3, wf4_ref[...], preferred_element_type=f32)
                  + bf4_ref[...]).astype(o_ref.dtype)     # (BT, 128) lane-dense


def _const_spec(shape):
    nd = len(shape)
    return pl.BlockSpec(shape, lambda b: (0,) * nd)


# ------------------------------------------------------------------------------
# Host wrapper (single jit: tiny input pad/transpose + the fused pallas_call)
# ------------------------------------------------------------------------------
@functools.partial(jax.jit, static_argnames=("num_classes",))
def team3_forward(kp, x, num_classes):
    """x: (N, 1, H, W) float32 -> (N, num_classes) float32."""
    assert x.ndim == 4 and x.shape[1] == 1
    n, _, h_in, w_in = x.shape
    bt = min(_round_up(max(n, 1), 8), MAX_BATCH_TILE)     # batch tile
    nb = _round_up(max(n, 1), bt)                         # padded batch
    grid_n = nb // bt
    nc_pad = kp["wf4"].shape[1]

    # Pad batch, drop the unit channel, put H in front (h-major rows).
    xp = jnp.zeros((nb, h_in, w_in), jnp.float32).at[:n].set(
        x[:, 0].astype(jnp.float32))
    x_t = jnp.transpose(xp, (1, 0, 2))                    # (H_in, NB, W_in)

    args = (x_t, kp["w1"], kp["b1"], kp["w2"], kp["b2"], kp["w3"], kp["b3"],
            kp["wf1"], kp["bf1"], kp["wf2"], kp["bf2"], kp["wf3"], kp["bf3"],
            kp["wf4"], kp["bf4"])
    in_specs = [
        pl.BlockSpec((h_in, bt, w_in), lambda b: (0, b, 0)),   # input tile
        _const_spec(kp["w1"].shape), _const_spec(kp["b1"].shape),
        _const_spec(kp["w2"].shape), _const_spec(kp["b2"].shape),
        _const_spec(kp["w3"].shape), _const_spec(kp["b3"].shape),
        pl.BlockSpec(memory_space=pl.ANY),                     # wf1 (bf16, HBM)
        _const_spec(kp["bf1"].shape),
        pl.BlockSpec(memory_space=pl.ANY),                     # wf2 (bf16, HBM)
        _const_spec(kp["bf2"].shape),
        _const_spec(kp["wf3"].shape), _const_spec(kp["bf3"].shape),
        _const_spec(kp["wf4"].shape), _const_spec(kp["bf4"].shape),
    ]
    out = pl.pallas_call(
        _team3_kernel,
        out_shape=jax.ShapeDtypeStruct((nb, nc_pad), jnp.float32),
        grid=(grid_n,),
        in_specs=in_specs,
        out_specs=pl.BlockSpec((bt, nc_pad), lambda b: (b, 0)),
        scratch_shapes=[
            pltpu.VMEM(kp["wf1"].shape, kp["wf1"].dtype),      # fc1 weights
            pltpu.VMEM(kp["wf2"].shape, kp["wf2"].dtype),      # fc2 weights
            pltpu.SemaphoreType.DMA((2,)),
        ],
        compiler_params=pltpu.CompilerParams(
            dimension_semantics=("parallel",)),
    )(*args)
    return out[:n, :num_classes]


# ------------------------------------------------------------------------------
# Parameter init (PyTorch layouts) and one-time conversion to kernel layouts
# ------------------------------------------------------------------------------
def init_torch_params(key, num_classes, fc1_in):
    """Params in PyTorch's native layouts: Conv2d (Cout,Cin,kh,kw), Linear (out,in)."""
    def u(k, shape, fan_in):
        b = 1.0 / jnp.sqrt(jnp.float32(fan_in))
        return jax.random.uniform(k, shape, jnp.float32, -b, b)

    ks = jax.random.split(key, 14)
    return {
        "conv1_w": u(ks[0], (C1, 1, KH1, KW1), 1 * KH1 * KW1),
        "conv1_b": u(ks[1], (C1,), 1 * KH1 * KW1),
        "conv2_w": u(ks[2], (C2, C1, 1, KW2), C1 * KW2),
        "conv2_b": u(ks[3], (C2,), C1 * KW2),
        "conv3_w": u(ks[4], (C3, C2, 1, KW3), C2 * KW3),
        "conv3_b": u(ks[5], (C3,), C2 * KW3),
        "fc1_w": u(ks[6], (FC1_OUT, fc1_in), fc1_in),
        "fc1_b": u(ks[7], (FC1_OUT,), fc1_in),
        "fc2_w": u(ks[8], (FC2_OUT, FC1_OUT), FC1_OUT),
        "fc2_b": u(ks[9], (FC2_OUT,), FC1_OUT),
        "fc3_w": u(ks[10], (FC3_OUT, FC2_OUT), FC2_OUT),
        "fc3_b": u(ks[11], (FC3_OUT,), FC2_OUT),
        "fc4_w": u(ks[12], (num_classes, FC3_OUT), FC3_OUT),
        "fc4_b": u(ks[13], (num_classes,), FC3_OUT),
    }


def prepare_params(tp, num_classes, h_in, w_in):
    """One-time conversion of PyTorch-layout params into kernel layouts:
    banded (Toeplitz) conv weights with W folded into the lane dim, per-h-block
    fc1 weights in the kernel's (w, c) lane order, fc1/fc2 stored in bfloat16,
    fc4 zero-padded to a full 128-lane output."""
    h1, w1 = h_in - KH1 + 1, w_in - KW1 + 1
    w2 = w1 - KW2 + 1
    w3 = w2 - KW3 + 1
    h3 = h1
    nc_pad = _round_up(num_classes, LANE)

    k1 = np.asarray(tp["conv1_w"], np.float32)            # (16, 1, 2, 16)
    k2 = np.asarray(tp["conv2_w"], np.float32)            # (8, 16, 1, 8)
    k3 = np.asarray(tp["conv3_w"], np.float32)            # (4, 8, 1, 4)

    # conv1: per-tap banded matrices (W_in, W1*C1); lane index = w*C1 + c.
    w1b = np.zeros((KH1, w_in, w1 * C1), np.float32)
    for i in range(KH1):
        for j in range(KW1):
            for w in range(w1):
                w1b[i, w + j, w * C1:(w + 1) * C1] = k1[:, 0, i, j]
    b1b = np.tile(np.asarray(tp["conv1_b"], np.float32), w1)[None, :]

    # conv2: one banded matrix (W1*C1, W2*C2).
    w2b = np.zeros((w1 * C1, w2 * C2), np.float32)
    for j in range(KW2):
        for w in range(w2):
            w2b[(w + j) * C1:(w + j + 1) * C1,
                w * C2:(w + 1) * C2] = k2[:, :, 0, j].T
    b2b = np.tile(np.asarray(tp["conv2_b"], np.float32), w2)[None, :]

    # conv3: one banded matrix (W2*C2, W3*C3).
    w3b = np.zeros((w2 * C2, w3 * C3), np.float32)
    for j in range(KW3):
        for w in range(w3):
            w3b[(w + j) * C2:(w + j + 1) * C2,
                w * C3:(w + 1) * C3] = k3[:, :, 0, j].T
    b3b = np.tile(np.asarray(tp["conv3_b"], np.float32), w3)[None, :]

    # fc1: PyTorch flatten order is (c, h, w); regroup into per-h (W3*C3, 512)
    # blocks whose row order matches the kernel's (w, c) lane layout.
    f1 = np.asarray(tp["fc1_w"], np.float32).reshape(FC1_OUT, C3, h3, w3)
    wf1 = np.transpose(f1, (2, 3, 1, 0)).reshape(h3, w3 * C3, FC1_OUT)

    wf4 = np.pad(np.asarray(tp["fc4_w"], np.float32).T,
                 ((0, 0), (0, nc_pad - num_classes)))
    bf4 = np.pad(np.asarray(tp["fc4_b"], np.float32),
                 (0, nc_pad - num_classes))[None, :]

    return {
        "w1": jnp.asarray(w1b), "b1": jnp.asarray(b1b),
        "w2": jnp.asarray(w2b), "b2": jnp.asarray(b2b),
        "w3": jnp.asarray(w3b), "b3": jnp.asarray(b3b),
        "wf1": jnp.asarray(wf1).astype(jnp.bfloat16),
        "bf1": jnp.asarray(np.asarray(tp["fc1_b"], np.float32)[None, :]),
        "wf2": jnp.asarray(np.asarray(tp["fc2_w"], np.float32).T
                           ).astype(jnp.bfloat16),
        "bf2": jnp.asarray(np.asarray(tp["fc2_b"], np.float32)[None, :]),
        "wf3": jnp.asarray(np.asarray(tp["fc3_w"], np.float32).T),
        "bf3": jnp.asarray(np.asarray(tp["fc3_b"], np.float32)[None, :]),
        "wf4": jnp.asarray(wf4), "bf4": jnp.asarray(bf4),
    }


# ------------------------------------------------------------------------------
# Pure-JAX reference (exact PyTorch semantics) for a correctness check
# ------------------------------------------------------------------------------
def team3_reference(tp, x):
    hi = jax.lax.Precision.HIGHEST

    def conv_tanh(inp, w, b):
        y = jax.lax.conv_general_dilated(
            inp, w, window_strides=(1, 1), padding="VALID",
            dimension_numbers=("NCHW", "OIHW", "NCHW"), precision=hi)
        return jnp.tanh(y + b[None, :, None, None])

    y = conv_tanh(x, tp["conv1_w"], tp["conv1_b"])
    y = conv_tanh(y, tp["conv2_w"], tp["conv2_b"])
    y = conv_tanh(y, tp["conv3_w"], tp["conv3_b"])
    y = y.reshape(y.shape[0], -1)
    y = jnp.maximum(jnp.dot(y, tp["fc1_w"].T, precision=hi) + tp["fc1_b"], 0.0)
    y = jnp.maximum(jnp.dot(y, tp["fc2_w"].T, precision=hi) + tp["fc2_b"], 0.0)
    y = jnp.maximum(jnp.dot(y, tp["fc3_w"].T, precision=hi) + tp["fc3_b"], 0.0)
    return jnp.dot(y, tp["fc4_w"].T, precision=hi) + tp["fc4_b"]


if __name__ == "__main__":
    num_classes = 10
    n, c, h, w = 2, 1, 8, 32                     # NCHW input for conv1(1, ...)
    h1, w1 = h - KH1 + 1, w - KW1 + 1            # 7, 17
    w2 = w1 - KW2 + 1                            # 10
    w3 = w2 - KW3 + 1                            # 7
    h3 = h1                                      # 7
    fc1_in = C3 * h3 * w3                        # 196 (LazyLinear in_features)

    key = jax.random.PRNGKey(0)
    k_x, k_p = jax.random.split(key)
    x = jax.random.normal(k_x, (n, c, h, w), jnp.float32)

    torch_params = init_torch_params(k_p, num_classes, fc1_in)
    kparams = prepare_params(torch_params, num_classes, h, w)

    out = team3_forward(kparams, x, num_classes=num_classes)
    out = jax.block_until_ready(out)

    assert out.shape == (n, num_classes), out.shape
    assert out.dtype == jnp.float32
    ref = jax.block_until_ready(team3_reference(torch_params, x))
    assert bool(jnp.all(jnp.isfinite(out)))
    assert bool(jnp.allclose(out, ref, rtol=1e-2, atol=1e-2)), (out, ref)
    print("KERNEL_OK")
</pallas_src>

<mosaic_0001>
module attributes {stable_mosaic.version = 11 : i64} {
  func.func @_team3_kernel(%arg0: i32, %arg1: memref<8x8x32xf32, #tpu.memory_space<vmem>>, %arg2: memref<2x32x272xf32, #tpu.memory_space<vmem>>, %arg3: memref<1x272xf32, #tpu.memory_space<vmem>>, %arg4: memref<272x80xf32, #tpu.memory_space<vmem>>, %arg5: memref<1x80xf32, #tpu.memory_space<vmem>>, %arg6: memref<80x28xf32, #tpu.memory_space<vmem>>, %arg7: memref<1x28xf32, #tpu.memory_space<vmem>>, %arg8: memref<7x28x512xbf16, #tpu.memory_space<any>>, %arg9: memref<1x512xf32, #tpu.memory_space<vmem>>, %arg10: memref<512x128xbf16, #tpu.memory_space<any>>, %arg11: memref<1x128xf32, #tpu.memory_space<vmem>>, %arg12: memref<128x64xf32, #tpu.memory_space<vmem>>, %arg13: memref<1x64xf32, #tpu.memory_space<vmem>>, %arg14: memref<64x128xf32, #tpu.memory_space<vmem>>, %arg15: memref<1x128xf32, #tpu.memory_space<vmem>>, %arg16: memref<8x128xf32, #tpu.memory_space<vmem>>, %arg17: memref<7x28x512xbf16, #tpu.memory_space<vmem>>, %arg18: memref<512x128xbf16, #tpu.memory_space<vmem>>, %arg19: memref<2x!tpu.dma_semaphore, #tpu.memory_space<semaphore_mem>>) attributes {dimension_semantics = [#tpu.dimension_semantics<parallel>], iteration_bounds = array<i64: 1>, scalar_prefetch = 0 : i64, scratch_operands = 3 : i64, tpu.core_type = #tpu.core_type<tc>, window_params = [{transform_indices = @transform_0, window_bounds = array<i64: 8, 8, 32>}, {pipeline_mode = #tpu.pipeline_mode<synchronous>, transform_indices = @transform_1, window_bounds = array<i64: 2, 32, 272>}, {pipeline_mode = #tpu.pipeline_mode<synchronous>, transform_indices = @transform_2, window_bounds = array<i64: 1, 272>}, {pipeline_mode = #tpu.pipeline_mode<synchronous>, transform_indices = @transform_3, window_bounds = array<i64: 272, 80>}, {pipeline_mode = #tpu.pipeline_mode<synchronous>, transform_indices = @transform_4, window_bounds = array<i64: 1, 80>}, {pipeline_mode = #tpu.pipeline_mode<synchronous>, transform_indices = @transform_5, window_bounds = array<i64: 80, 28>}, {pipeline_mode = #tpu.pipeline_mode<synchronous>, transform_indices = @transform_6, window_bounds = array<i64: 1, 28>}, {}, {pipeline_mode = #tpu.pipeline_mode<synchronous>, transform_indices = @transform_8, window_bounds = array<i64: 1, 512>}, {}, {pipeline_mode = #tpu.pipeline_mode<synchronous>, transform_indices = @transform_10, window_bounds = array<i64: 1, 128>}, {pipeline_mode = #tpu.pipeline_mode<synchronous>, transform_indices = @transform_11, window_bounds = array<i64: 128, 64>}, {pipeline_mode = #tpu.pipeline_mode<synchronous>, transform_indices = @transform_12, window_bounds = array<i64: 1, 64>}, {pipeline_mode = #tpu.pipeline_mode<synchronous>, transform_indices = @transform_13, window_bounds = array<i64: 64, 128>}, {pipeline_mode = #tpu.pipeline_mode<synchronous>, transform_indices = @transform_14, window_bounds = array<i64: 1, 128>}, {transform_indices = @transform_15, window_bounds = array<i64: 8, 128>}]} {
    %c0_i32 = arith.constant 0 : i32
    %0 = tpu.memref_slice %arg19[%c0_i32] : memref<2x!tpu.dma_semaphore, #tpu.memory_space<semaphore_mem>> -> memref<1x!tpu.dma_semaphore, #tpu.memory_space<semaphore_mem>>
    %1 = tpu.memref_squeeze %0 : memref<1x!tpu.dma_semaphore, #tpu.memory_space<semaphore_mem>> -> memref<!tpu.dma_semaphore, #tpu.memory_space<semaphore_mem>>
    tpu.enqueue_dma source(%arg8 : memref<7x28x512xbf16, #tpu.memory_space<any>>) target(%arg17 : memref<7x28x512xbf16, #tpu.memory_space<vmem>>) target_semaphore(%1 : memref<!tpu.dma_semaphore, #tpu.memory_space<semaphore_mem>>)
    %c1_i32 = arith.constant 1 : i32
    %2 = tpu.memref_slice %arg19[%c1_i32] : memref<2x!tpu.dma_semaphore, #tpu.memory_space<semaphore_mem>> -> memref<1x!tpu.dma_semaphore, #tpu.memory_space<semaphore_mem>>
    %3 = tpu.memref_squeeze %2 : memref<1x!tpu.dma_semaphore, #tpu.memory_space<semaphore_mem>> -> memref<!tpu.dma_semaphore, #tpu.memory_space<semaphore_mem>>
    tpu.enqueue_dma source(%arg10 : memref<512x128xbf16, #tpu.memory_space<any>>) target(%arg18 : memref<512x128xbf16, #tpu.memory_space<vmem>>) target_semaphore(%3 : memref<!tpu.dma_semaphore, #tpu.memory_space<semaphore_mem>>)
    %c0 = arith.constant 0 : index
    %c0_0 = arith.constant 0 : index
    %c0_1 = arith.constant 0 : index
    %4 = vector.load %arg1[%c0, %c0_0, %c0_1] : memref<8x8x32xf32, #tpu.memory_space<vmem>>, vector<8x8x32xf32>
    %5 = vector.extract_strided_slice %4 {offsets = [0, 0, 0], sizes = [7, 8, 32], strides = [1, 1, 1]} : vector<8x8x32xf32> to vector<7x8x32xf32>
    %6 = vector.shape_cast %5 : vector<7x8x32xf32> to vector<56x32xf32>
    %c0_2 = arith.constant 0 : index
    %c0_3 = arith.constant 0 : index
    %c0_4 = arith.constant 0 : index
    %7 = vector.load %arg2[%c0_2, %c0_3, %c0_4] : memref<2x32x272xf32, #tpu.memory_space<vmem>>, vector<1x32x272xf32>
    %8 = vector.shape_cast %7 : vector<1x32x272xf32> to vector<32x272xf32>
    %cst = arith.constant dense<0.000000e+00> : vector<56x272xf32>
    %9 = tpu.matmul %6, %8, %cst {dimension_numbers = #tpu.dot_dimension_numbers<[1], [0], [0], [1], [0, 0, 1, 1], [], []>} : vector<56x32xf32>, vector<32x272xf32>, vector<56x272xf32> -> vector<56x272xf32>
    %10 = vector.extract_strided_slice %4 {offsets = [1, 0, 0], sizes = [7, 8, 32], strides = [1, 1, 1]} : vector<8x8x32xf32> to vector<7x8x32xf32>
    %11 = vector.shape_cast %10 : vector<7x8x32xf32> to vector<56x32xf32>
    %c1 = arith.constant 1 : index
    %c0_5 = arith.constant 0 : index
    %c0_6 = arith.constant 0 : index
    %12 = vector.load %arg2[%c1, %c0_5, %c0_6] : memref<2x32x272xf32, #tpu.memory_space<vmem>>, vector<1x32x272xf32>
    %13 = vector.shape_cast %12 : vector<1x32x272xf32> to vector<32x272xf32>
    %cst_7 = arith.constant dense<0.000000e+00> : vector<56x272xf32>
    %14 = tpu.matmul %11, %13, %cst_7 {dimension_numbers = #tpu.dot_dimension_numbers<[1], [0], [0], [1], [0, 0, 1, 1], [], []>} : vector<56x32xf32>, vector<32x272xf32>, vector<56x272xf32> -> vector<56x272xf32>
    %15 = arith.addf %9, %14 : vector<56x272xf32>
    %c0_8 = arith.constant 0 : index
    %c0_9 = arith.constant 0 : index
    %16 = vector.load %arg3[%c0_8, %c0_9] : memref<1x272xf32, #tpu.memory_space<vmem>>, vector<1x272xf32>
    %17 = vector.broadcast %16 : vector<1x272xf32> to vector<56x272xf32>
    %18 = arith.addf %15, %17 : vector<56x272xf32>
    %19 = math.tanh %18 : vector<56x272xf32>
    %c0_10 = arith.constant 0 : index
    %c0_11 = arith.constant 0 : index
    %20 = vector.load %arg4[%c0_10, %c0_11] : memref<272x80xf32, #tpu.memory_space<vmem>>, vector<272x80xf32>
    %cst_12 = arith.constant dense<0.000000e+00> : vector<56x80xf32>
    %21 = tpu.matmul %19, %20, %cst_12 {dimension_numbers = #tpu.dot_dimension_numbers<[1], [0], [0], [1], [0, 0, 1, 1], [], []>} : vector<56x272xf32>, vector<272x80xf32>, vector<56x80xf32> -> vector<56x80xf32>
    %c0_13 = arith.constant 0 : index
    %c0_14 = arith.constant 0 : index
    %22 = vector.load %arg5[%c0_13, %c0_14] : memref<1x80xf32, #tpu.memory_space<vmem>>, vector<1x80xf32>
    %23 = vector.broadcast %22 : vector<1x80xf32> to vector<56x80xf32>
    %24 = arith.addf %21, %23 : vector<56x80xf32>
    %25 = math.tanh %24 : vector<56x80xf32>
    %c0_15 = arith.constant 0 : index
    %c0_16 = arith.constant 0 : index
    %26 = vector.load %arg6[%c0_15, %c0_16] : memref<80x28xf32, #tpu.memory_space<vmem>>, vector<80x28xf32>
    %cst_17 = arith.constant dense<0.000000e+00> : vector<56x28xf32>
    %27 = tpu.matmul %25, %26, %cst_17 {dimension_numbers = #tpu.dot_dimension_numbers<[1], [0], [0], [1], [0, 0, 1, 1], [], []>} : vector<56x80xf32>, vector<80x28xf32>, vector<56x28xf32> -> vector<56x28xf32>
    %c0_18 = arith.constant 0 : index
    %c0_19 = arith.constant 0 : index
    %28 = vector.load %arg7[%c0_18, %c0_19] : memref<1x28xf32, #tpu.memory_space<vmem>>, vector<1x28xf32>
    %29 = vector.broadcast %28 : vector<1x28xf32> to vector<56x28xf32>
    %30 = arith.addf %27, %29 : vector<56x28xf32>
    %31 = math.tanh %30 : vector<56x28xf32>
    %c0_i32_20 = arith.constant 0 : i32
    %32 = tpu.memref_slice %arg19[%c0_i32_20] : memref<2x!tpu.dma_semaphore, #tpu.memory_space<semaphore_mem>> -> memref<1x!tpu.dma_semaphore, #tpu.memory_space<semaphore_mem>>
    %33 = tpu.memref_squeeze %32 : memref<1x!tpu.dma_semaphore, #tpu.memory_space<semaphore_mem>> -> memref<!tpu.dma_semaphore, #tpu.memory_space<semaphore_mem>>
    tpu.wait_dma2 semaphore(%33 : memref<!tpu.dma_semaphore, #tpu.memory_space<semaphore_mem>>) src(%arg8 : memref<7x28x512xbf16, #tpu.memory_space<any>>) dst(%arg17 : memref<7x28x512xbf16, #tpu.memory_space<vmem>>)
    %34 = vector.extract_strided_slice %31 {offsets = [0, 0], sizes = [8, 28], strides = [1, 1]} : vector<56x28xf32> to vector<8x28xf32>
    %35 = arith.truncf %34 : vector<8x28xf32> to vector<8x28xbf16>
    %c0_21 = arith.constant 0 : index
    %c0_22 = arith.constant 0 : index
    %c0_23 = arith.constant 0 : index
    %36 = vector.load %arg17[%c0_21, %c0_22, %c0_23] : memref<7x28x512xbf16, #tpu.memory_space<vmem>>, vector<1x28x512xbf16>
    %37 = vector.shape_cast %36 : vector<1x28x512xbf16> to vector<28x512xbf16>
    %cst_24 = arith.constant dense<0.000000e+00> : vector<8x512xf32>
    %38 = tpu.matmul %35, %37, %cst_24 {dimension_numbers = #tpu.dot_dimension_numbers<[1], [0], [0], [1], [0, 0, 1, 1], [], []>} : vector<8x28xbf16>, vector<28x512xbf16>, vector<8x512xf32> -> vector<8x512xf32>
    %39 = vector.extract_strided_slice %31 {offsets = [8, 0], sizes = [8, 28], strides = [1, 1]} : vector<56x28xf32> to vector<8x28xf32>
    %40 = arith.truncf %39 : vector<8x28xf32> to vector<8x28xbf16>
    %c1_25 = arith.constant 1 : index
    %c0_26 = arith.constant 0 : index
    %c0_27 = arith.constant 0 : index
    %41 = vector.load %arg17[%c1_25, %c0_26, %c0_27] : memref<7x28x512xbf16, #tpu.memory_space<vmem>>, vector<1x28x512xbf16>
    %42 = vector.shape_cast %41 : vector<1x28x512xbf16> to vector<28x512xbf16>
    %cst_28 = arith.constant dense<0.000000e+00> : vector<8x512xf32>
    %43 = tpu.matmul %40, %42, %cst_28 {dimension_numbers = #tpu.dot_dimension_numbers<[1], [0], [0], [1], [0, 0, 1, 1], [], []>} : vector<8x28xbf16>, vector<28x512xbf16>, vector<8x512xf32> -> vector<8x512xf32>
    %44 = vector.extract_strided_slice %31 {offsets = [16, 0], sizes = [8, 28], strides = [1, 1]} : vector<56x28xf32> to vector<8x28xf32>
    %45 = arith.truncf %44 : vector<8x28xf32> to vector<8x28xbf16>
    %c2 = arith.constant 2 : index
    %c0_29 = arith.constant 0 : index
    %c0_30 = arith.constant 0 : index
    %46 = vector.load %arg17[%c2, %c0_29, %c0_30] : memref<7x28x512xbf16, #tpu.memory_space<vmem>>, vector<1x28x512xbf16>
    %47 = vector.shape_cast %46 : vector<1x28x512xbf16> to vector<28x512xbf16>
    %cst_31 = arith.constant dense<0.000000e+00> : vector<8x512xf32>
    %48 = tpu.matmul %45, %47, %cst_31 {dimension_numbers = #tpu.dot_dimension_numbers<[1], [0], [0], [1], [0, 0, 1, 1], [], []>} : vector<8x28xbf16>, vector<28x512xbf16>, vector<8x512xf32> -> vector<8x512xf32>
    %49 = vector.extract_strided_slice %31 {offsets = [24, 0], sizes = [8, 28], strides = [1, 1]} : vector<56x28xf32> to vector<8x28xf32>
    %50 = arith.truncf %49 : vector<8x28xf32> to vector<8x28xbf16>
    %c3 = arith.constant 3 : index
    %c0_32 = arith.constant 0 : index
    %c0_33 = arith.constant 0 : index
    %51 = vector.load %arg17[%c3, %c0_32, %c0_33] : memref<7x28x512xbf16, #tpu.memory_space<vmem>>, vector<1x28x512xbf16>
    %52 = vector.shape_cast %51 : vector<1x28x512xbf16> to vector<28x512xbf16>
    %cst_34 = arith.constant dense<0.000000e+00> : vector<8x512xf32>
    %53 = tpu.matmul %50, %52, %cst_34 {dimension_numbers = #tpu.dot_dimension_numbers<[1], [0], [0], [1], [0, 0, 1, 1], [], []>} : vector<8x28xbf16>, vector<28x512xbf16>, vector<8x512xf32> -> vector<8x512xf32>
    %54 = vector.extract_strided_slice %31 {offsets = [32, 0], sizes = [8, 28], strides = [1, 1]} : vector<56x28xf32> to vector<8x28xf32>
    %55 = arith.truncf %54 : vector<8x28xf32> to vector<8x28xbf16>
    %c4 = arith.constant 4 : index
    %c0_35 = arith.constant 0 : index
    %c0_36 = arith.constant 0 : index
    %56 = vector.load %arg17[%c4, %c0_35, %c0_36] : memref<7x28x512xbf16, #tpu.memory_space<vmem>>, vector<1x28x512xbf16>
    %57 = vector.shape_cast %56 : vector<1x28x512xbf16> to vector<28x512xbf16>
    %cst_37 = arith.constant dense<0.000000e+00> : vector<8x512xf32>
    %58 = tpu.matmul %55, %57, %cst_37 {dimension_numbers = #tpu.dot_dimension_numbers<[1], [0], [0], [1], [0, 0, 1, 1], [], []>} : vector<8x28xbf16>, vector<28x512xbf16>, vector<8x512xf32> -> vector<8x512xf32>
    %59 = vector.extract_strided_slice %31 {offsets = [40, 0], sizes = [8, 28], strides = [1, 1]} : vector<56x28xf32> to vector<8x28xf32>
    %60 = arith.truncf %59 : vector<8x28xf32> to vector<8x28xbf16>
    %c5 = arith.constant 5 : index
    %c0_38 = arith.constant 0 : index
    %c0_39 = arith.constant 0 : index
    %61 = vector.load %arg17[%c5, %c0_38, %c0_39] : memref<7x28x512xbf16, #tpu.memory_space<vmem>>, vector<1x28x512xbf16>
    %62 = vector.shape_cast %61 : vector<1x28x512xbf16> to vector<28x512xbf16>
    %cst_40 = arith.constant dense<0.000000e+00> : vector<8x512xf32>
    %63 = tpu.matmul %60, %62, %cst_40 {dimension_numbers = #tpu.dot_dimension_numbers<[1], [0], [0], [1], [0, 0, 1, 1], [], []>} : vector<8x28xbf16>, vector<28x512xbf16>, vector<8x512xf32> -> vector<8x512xf32>
    %64 = vector.extract_strided_slice %31 {offsets = [48, 0], sizes = [8, 28], strides = [1, 1]} : vector<56x28xf32> to vector<8x28xf32>
    %65 = arith.truncf %64 : vector<8x28xf32> to vector<8x28xbf16>
    %c6 = arith.constant 6 : index
    %c0_41 = arith.constant 0 : index
    %c0_42 = arith.constant 0 : index
    %66 = vector.load %arg17[%c6, %c0_41, %c0_42] : memref<7x28x512xbf16, #tpu.memory_space<vmem>>, vector<1x28x512xbf16>
    %67 = vector.shape_cast %66 : vector<1x28x512xbf16> to vector<28x512xbf16>
    %cst_43 = arith.constant dense<0.000000e+00> : vector<8x512xf32>
    %68 = tpu.matmul %65, %67, %cst_43 {dimension_numbers = #tpu.dot_dimension_numbers<[1], [0], [0], [1], [0, 0, 1, 1], [], []>} : vector<8x28xbf16>, vector<28x512xbf16>, vector<8x512xf32> -> vector<8x512xf32>
    %69 = arith.addf %38, %43 : vector<8x512xf32>
    %70 = arith.addf %48, %53 : vector<8x512xf32>
    %71 = arith.addf %58, %63 : vector<8x512xf32>
    %72 = arith.addf %69, %70 : vector<8x512xf32>
    %73 = arith.addf %71, %68 : vector<8x512xf32>
    %74 = arith.addf %72, %73 : vector<8x512xf32>
    %c0_44 = arith.constant 0 : index
    %c0_45 = arith.constant 0 : index
    %75 = vector.load %arg9[%c0_44, %c0_45] : memref<1x512xf32, #tpu.memory_space<vmem>>, vector<1x512xf32>
    %76 = vector.broadcast %75 : vector<1x512xf32> to vector<8x512xf32>
    %77 = arith.addf %74, %76 : vector<8x512xf32>
    %cst_46 = arith.constant 0.000000e+00 : f32
    %78 = vector.broadcast %cst_46 : f32 to vector<8x512xf32>
    %79 = arith.maximumf %77, %78 : vector<8x512xf32>
    %c1_i32_47 = arith.constant 1 : i32
    %80 = tpu.memref_slice %arg19[%c1_i32_47] : memref<2x!tpu.dma_semaphore, #tpu.memory_space<semaphore_mem>> -> memref<1x!tpu.dma_semaphore, #tpu.memory_space<semaphore_mem>>
    %81 = tpu.memref_squeeze %80 : memref<1x!tpu.dma_semaphore, #tpu.memory_space<semaphore_mem>> -> memref<!tpu.dma_semaphore, #tpu.memory_space<semaphore_mem>>
    tpu.wait_dma2 semaphore(%81 : memref<!tpu.dma_semaphore, #tpu.memory_space<semaphore_mem>>) src(%arg10 : memref<512x128xbf16, #tpu.memory_space<any>>) dst(%arg18 : memref<512x128xbf16, #tpu.memory_space<vmem>>)
    %82 = arith.truncf %79 : vector<8x512xf32> to vector<8x512xbf16>
    %c0_48 = arith.constant 0 : index
    %c0_49 = arith.constant 0 : index
    %83 = vector.load %arg18[%c0_48, %c0_49] : memref<512x128xbf16, #tpu.memory_space<vmem>>, vector<512x128xbf16>
    %cst_50 = arith.constant dense<0.000000e+00> : vector<8x128xf32>
    %84 = tpu.matmul %82, %83, %cst_50 {dimension_numbers = #tpu.dot_dimension_numbers<[1], [0], [0], [1], [0, 0, 1, 1], [], []>} : vector<8x512xbf16>, vector<512x128xbf16>, vector<8x128xf32> -> vector<8x128xf32>
    %c0_51 = arith.constant 0 : index
    %c0_52 = arith.constant 0 : index
    %85 = vector.load %arg11[%c0_51, %c0_52] : memref<1x128xf32, #tpu.memory_space<vmem>>, vector<1x128xf32>
    %86 = vector.broadcast %85 : vector<1x128xf32> to vector<8x128xf32>
    %87 = arith.addf %84, %86 : vector<8x128xf32>
    %cst_53 = arith.constant 0.000000e+00 : f32
    %88 = vector.broadcast %cst_53 : f32 to vector<8x128xf32>
    %89 = arith.maximumf %87, %88 : vector<8x128xf32>
    %c0_54 = arith.constant 0 : index
    %c0_55 = arith.constant 0 : index
    %90 = vector.load %arg12[%c0_54, %c0_55] : memref<128x64xf32, #tpu.memory_space<vmem>>, vector<128x64xf32>
    %cst_56 = arith.constant dense<0.000000e+00> : vector<8x64xf32>
    %91 = tpu.matmul %89, %90, %cst_56 {dimension_numbers = #tpu.dot_dimension_numbers<[1], [0], [0], [1], [0, 0, 1, 1], [], []>} : vector<8x128xf32>, vector<128x64xf32>, vector<8x64xf32> -> vector<8x64xf32>
    %c0_57 = arith.constant 0 : index
    %c0_58 = arith.constant 0 : index
    %92 = vector.load %arg13[%c0_57, %c0_58] : memref<1x64xf32, #tpu.memory_space<vmem>>, vector<1x64xf32>
    %93 = vector.broadcast %92 : vector<1x64xf32> to vector<8x64xf32>
    %94 = arith.addf %91, %93 : vector<8x64xf32>
    %cst_59 = arith.constant 0.000000e+00 : f32
    %95 = vector.broadcast %cst_59 : f32 to vector<8x64xf32>
    %96 = arith.maximumf %94, %95 : vector<8x64xf32>
    %c0_60 = arith.constant 0 : index
    %c0_61 = arith.constant 0 : index
    %97 = vector.load %arg14[%c0_60, %c0_61] : memref<64x128xf32, #tpu.memory_space<vmem>>, vector<64x128xf32>
    %cst_62 = arith.constant dense<0.000000e+00> : vector<8x128xf32>
    %98 = tpu.matmul %96, %97, %cst_62 {dimension_numbers = #tpu.dot_dimension_numbers<[1], [0], [0], [1], [0, 0, 1, 1], [], []>} : vector<8x64xf32>, vector<64x128xf32>, vector<8x128xf32> -> vector<8x128xf32>
    %c0_63 = arith.constant 0 : index
    %c0_64 = arith.constant 0 : index
    %99 = vector.load %arg15[%c0_63, %c0_64] : memref<1x128xf32, #tpu.memory_space<vmem>>, vector<1x128xf32>
    %100 = vector.broadcast %99 : vector<1x128xf32> to vector<8x128xf32>
    %101 = arith.addf %98, %100 : vector<8x128xf32>
    %c0_65 = arith.constant 0 : index
    %c0_66 = arith.constant 0 : index
    %102 = vector.load %arg16[%c0_65, %c0_66] : memref<8x128xf32, #tpu.memory_space<vmem>>, vector<8x128xf32>
    tpu.vector_store %arg16[%c0_65, %c0_66], %101 {strides = array<i32>} : memref<8x128xf32, #tpu.memory_space<vmem>>, vector<8x128xf32>,
    return
  }
  func.func @transform_0(%arg0: i32) -> (i32, i32, i32) {
    %c0_i32 = arith.constant 0 : i32
    %c0_i32_0 = arith.constant 0 : i32
    %c0_i32_1 = arith.constant 0 : i32
    return %c0_i32, %arg0, %c0_i32_0 : i32, i32, i32
  }
  func.func @transform_1(%arg0: i32) -> (i32, i32, i32) {
    %c0_i32 = arith.constant 0 : i32
    %c0_i32_0 = arith.constant 0 : i32
    %c0_i32_1 = arith.constant 0 : i32
    %c0_i32_2 = arith.constant 0 : i32
    return %c0_i32, %c0_i32_0, %c0_i32_1 : i32, i32, i32
  }
  func.func @transform_2(%arg0: i32) -> (i32, i32) {
    %c0_i32 = arith.constant 0 : i32
    %c0_i32_0 = arith.constant 0 : i32
    %c0_i32_1 = arith.constant 0 : i32
    return %c0_i32, %c0_i32_0 : i32, i32
  }
  func.func @transform_3(%arg0: i32) -> (i32, i32) {
    %c0_i32 = arith.constant 0 : i32
    %c0_i32_0 = arith.constant 0 : i32
    %c0_i32_1 = arith.constant 0 : i32
    return %c0_i32, %c0_i32_0 : i32, i32
  }
  func.func @transform_4(%arg0: i32) -> (i32, i32) {
    %c0_i32 = arith.constant 0 : i32
    %c0_i32_0 = arith.constant 0 : i32
    %c0_i32_1 = arith.constant 0 : i32
    return %c0_i32, %c0_i32_0 : i32, i32
  }
  func.func @transform_5(%arg0: i32) -> (i32, i32) {
    %c0_i32 = arith.constant 0 : i32
    %c0_i32_0 = arith.constant 0 : i32
    %c0_i32_1 = arith.constant 0 : i32
    return %c0_i32, %c0_i32_0 : i32, i32
  }
  func.func @transform_6(%arg0: i32) -> (i32, i32) {
    %c0_i32 = arith.constant 0 : i32
    %c0_i32_0 = arith.constant 0 : i32
    %c0_i32_1 = arith.constant 0 : i32
    return %c0_i32, %c0_i32_0 : i32, i32
  }
  func.func @transform_8(%arg0: i32) -> (i32, i32) {
    %c0_i32 = arith.constant 0 : i32
    %c0_i32_0 = arith.constant 0 : i32
    %c0_i32_1 = arith.constant 0 : i32
    return %c0_i32, %c0_i32_0 : i32, i32
  }
  func.func @transform_10(%arg0: i32) -> (i32, i32) {
    %c0_i32 = arith.constant 0 : i32
    %c0_i32_0 = arith.constant 0 : i32
    %c0_i32_1 = arith.constant 0 : i32
    return %c0_i32, %c0_i32_0 : i32, i32
  }
  func.func @transform_11(%arg0: i32) -> (i32, i32) {
    %c0_i32 = arith.constant 0 : i32
    %c0_i32_0 = arith.constant 0 : i32
    %c0_i32_1 = arith.constant 0 : i32
    return %c0_i32, %c0_i32_0 : i32, i32
  }
  func.func @transform_12(%arg0: i32) -> (i32, i32) {
    %c0_i32 = arith.constant 0 : i32
    %c0_i32_0 = arith.constant 0 : i32
    %c0_i32_1 = arith.constant 0 : i32
    return %c0_i32, %c0_i32_0 : i32, i32
  }
  func.func @transform_13(%arg0: i32) -> (i32, i32) {
    %c0_i32 = arith.constant 0 : i32
    %c0_i32_0 = arith.constant 0 : i32
    %c0_i32_1 = arith.constant 0 : i32
    return %c0_i32, %c0_i32_0 : i32, i32
  }
  func.func @transform_14(%arg0: i32) -> (i32, i32) {
    %c0_i32 = arith.constant 0 : i32
    %c0_i32_0 = arith.constant 0 : i32
    %c0_i32_1 = arith.constant 0 : i32
    return %c0_i32, %c0_i32_0 : i32, i32
  }
  func.func @transform_15(%arg0: i32) -> (i32, i32) {
    %c0_i32 = arith.constant 0 : i32
    %c0_i32_0 = arith.constant 0 : i32
    return %arg0, %c0_i32 : i32, i32
  }
}

</mosaic_0001>

<llo_original>
// kernel: team3_forward.1
$region0: #{team3_forward.1}
  #allocation0 [shape = 'u32[]', space=smem, size = 0x4, offset = 0x4, fixed_abs, tag = 'smem constant byte address 0x4 - core index']
  #allocation1 [shape = 'u32[144,128]{1,0:T(1,128)}', space=vmem, size = 0x12000, scoped, tag = 'internal scratch']
  #allocation2 [shape = 'bf16[7,28,512]{2,1,0:T(8,128)(2,1)}', space=vmem, size = 0x38000, scoped, tag = 'scratch operand']
  #allocation3 [shape = 'bf16[512,128]{1,0:T(8,128)(2,1)}', space=vmem, size = 0x20000, scoped, tag = 'scratch operand']
  #allocation4 [shape = 's32[2]{0}', space=sflag, size = 0x8, scoped, tag = 'scratch operand']
  #allocation15 [shape = 's32[]', space=sflag, size = 0x4, offset = 0, fixed_abs, tag = 'sflag constant byte address 0x0 - dummy sync flag']
  #allocation16 [shape = 's32[]', space=sflag, size = 0x4, offset = 0, fixed_abs, tag = 'sflag constant byte address 0x0 - dummy sync flag']
  %s0 = inlined_call_operand.vmem [shape: f32[8,8,32], index: 0, kind: input, shape index: {}]
  %s1 = inlined_call_operand.vmem [shape: f32[2,32,272], index: 1, kind: input, shape index: {}]
  %s2 = inlined_call_operand.hbm [shape: f32[1,272], index: 2, kind: input, shape index: {}]
  %s3 = inlined_call_operand.vmem [shape: f32[272,80], index: 3, kind: input, shape index: {}]
  %s4 = inlined_call_operand.vmem [shape: f32[1,80], index: 4, kind: input, shape index: {}]
  %s5 = inlined_call_operand.vmem [shape: f32[80,28], index: 5, kind: input, shape index: {}]
  %s6 = inlined_call_operand.hbm [shape: f32[1,28], index: 6, kind: input, shape index: {}]
  %s7 = inlined_call_operand.vmem [shape: bf16[7,28,512], index: 7, kind: input, shape index: {}]
  %s8 = inlined_call_operand.hbm [shape: f32[1,512], index: 8, kind: input, shape index: {}]
  %s9 = inlined_call_operand.vmem [shape: bf16[512,128], index: 9, kind: input, shape index: {}]
  %s10 = inlined_call_operand.hbm [shape: f32[1,128], index: 10, kind: input, shape index: {}]
  %s11 = inlined_call_operand.vmem [shape: f32[128,64], index: 11, kind: input, shape index: {}]
  %s12 = inlined_call_operand.hbm [shape: f32[1,64], index: 12, kind: input, shape index: {}]
  %s13 = inlined_call_operand.hbm [shape: f32[64,128], index: 13, kind: input, shape index: {}]
  %s14 = inlined_call_operand.vmem [shape: f32[1,128], index: 14, kind: input, shape index: {}]
  %s15 = inlined_call_operand.vmem [shape: f32[8,128], index: 15, kind: output, shape index: {}]
  %s16 = sld [smem:[#allocation0]]
  $region154: #{team3_forward.1} parent=0
    _
  %s18 = ssub.s32 1, %s16
  %s19 = scalar_select 0, %s18, %s16
  $region1: #{team3_forward.1} parent=0
    #allocation5 [shape = 'u8[1536]{0}', space=vmem, size = 0x800, scoped, tag = 'input window, operand 2, single buffered']
    #allocation6 [shape = 's32[1]{0}', space=sflag, size = 0x4, scoped, tag = 'scoped memory for team3_forward.1']
    #allocation7 [shape = 'u8[512]{0}', space=vmem, size = 0x400, scoped, tag = 'input window, operand 6, single buffered']
    #allocation8 [shape = 's32[1]{0}', space=sflag, size = 0x4, scoped, tag = 'scoped memory for team3_forward.1']
    #allocation9 [shape = 'u8[2048]{0}', space=vmem, size = 0x800, scoped, tag = 'input window, operand 8, single buffered']
    #allocation10 [shape = 'u8[512]{0}', space=vmem, size = 0x400, scoped, tag = 'input window, operand 10, single buffered']
    #allocation11 [shape = 's32[1]{0}', space=sflag, size = 0x4, scoped, tag = 'scoped memory for team3_forward.1']
    #allocation12 [shape = 'u8[512]{0}', space=vmem, size = 0x400, scoped, tag = 'input window, operand 12, single buffered']
    #allocation13 [shape = 'u8[32768]{0}', space=vmem, size = 0x8000, scoped, tag = 'input window, operand 13, single buffered']
    #allocation14 [shape = 's32[1]{0}', space=sflag, size = 0x4, scoped, tag = 'scoped memory for team3_forward.1']
    %20 = vsyncpa [#allocation6], 0
    %21 = vsyncpa [#allocation8], 0
    %22 = vsyncpa [#allocation11], 0
    %23 = vsyncpa [#allocation14], 0
    // Predicated region
    $region2: #{team3_forward.1} parent=1 // pred_check
      _
    $region3: #{team3_forward.1} parent=1 // pred_check_branch
      %25 = sbr.rel (0) target = $region5
    $region4: #{team3_forward.1} parent=1 // pred_region
      _
    $region5: #{team3_forward.1} parent=1 // pred_fallthru
      _
    // Predicated region
    $region6: #{team3_forward.1} parent=1 // pred_check
      _
    $region7: #{team3_forward.1} parent=1 // pred_check_branch
      %27 = sbr.rel (0) target = $region9
    $region8: #{team3_forward.1} parent=1 // pred_region
      _
    $region9: #{team3_forward.1} parent=1 // pred_fallthru
      _
    // Predicated region
    $region10: #{team3_forward.1} parent=1 // pred_check
      _
    $region11: #{team3_forward.1} parent=1 // pred_check_branch
      %29 = sbr.rel (0) target = $region13
    $region12: #{team3_forward.1} parent=1 // pred_region
      %s31 = ssub.s32 48, 48
      %32 = vsyncadd [#allocation6], %s31
      %s34 = sshll.u32 [#allocation5], 4
      %s35 = int_to_ptr.vmem [resolvable:$true] %s34
      %37 = dma.hbm_to_vmem [thread:$0]  %s2, 48, %s35, [#allocation6]
    $region13: #{team3_forward.1} parent=1 // pred_fallthru
      _
    // Predicated region
    $region14: #{team3_forward.1} parent=1 // pred_check
      _
    $region15: #{team3_forward.1} parent=1 // pred_check_branch
      %39 = sbr.rel (0) target = $region17
    $region16: #{team3_forward.1} parent=1 // pred_region
      _
    $region17: #{team3_forward.1} parent=1 // pred_fallthru
      _
    // Predicated region
    $region18: #{team3_forward.1} parent=1 // pred_check
      _
    $region19: #{team3_forward.1} parent=1 // pred_check_branch
      %41 = sbr.rel (0) target = $region21
    $region20: #{team3_forward.1} parent=1 // pred_region
      _
    $region21: #{team3_forward.1} parent=1 // pred_fallthru
      _
    // Predicated region
    $region22: #{team3_forward.1} parent=1 // pred_check
      _
    $region23: #{team3_forward.1} parent=1 // pred_check_branch
      %43 = sbr.rel (0) target = $region25
    $region24: #{team3_forward.1} parent=1 // pred_region
      _
    $region25: #{team3_forward.1} parent=1 // pred_fallthru
      _
    // Predicated region
    $region26: #{team3_forward.1} parent=1 // pred_check
      _
    $region27: #{team3_forward.1} parent=1 // pred_check_branch
      %45 = sbr.rel (0) target = $region29
    $region28: #{team3_forward.1} parent=1 // pred_region
      %s47 = ssub.s32 16, 16
      %48 = vsyncadd [#allocation8], %s47
      %s50 = sshll.u32 [#allocation7], 4
      %s51 = int_to_ptr.vmem [resolvable:$true] %s50
      %53 = dma.hbm_to_vmem [thread:$0]  %s6, 16, %s51, [#allocation8]
    $region29: #{team3_forward.1} parent=1 // pred_fallthru
      _
    // Predicated region
    $region30: #{team3_forward.1} parent=1 // pred_check
      _
    $region31: #{team3_forward.1} parent=1 // pred_check_branch
      %55 = sbr.rel (0) target = $region33
    $region32: #{team3_forward.1} parent=1 // pred_region
      %s57 = ssub.s32 64, 64
      %58 = vsyncadd [#allocation8], %s57
      %s60 = sshll.u32 [#allocation9], 4
      %s61 = int_to_ptr.vmem [resolvable:$true] %s60
      %63 = dma.hbm_to_vmem [thread:$0]  %s8, 64, %s61, [#allocation8]
    $region33: #{team3_forward.1} parent=1 // pred_fallthru
      _
    // Predicated region
    $region34: #{team3_forward.1} parent=1 // pred_check
      _
    $region35: #{team3_forward.1} parent=1 // pred_check_branch
      %65 = sbr.rel (0) target = $region37
    $region36: #{team3_forward.1} parent=1 // pred_region
      %s67 = ssub.s32 16, 16
      %68 = vsyncadd [#allocation11], %s67
      %s70 = sshll.u32 [#allocation10], 4
      %s71 = int_to_ptr.vmem [resolvable:$true] %s70
      %73 = dma.hbm_to_vmem [thread:$0]  %s10, 16, %s71, [#allocation11]
    $region37: #{team3_forward.1} parent=1 // pred_fallthru
      _
    // Predicated region
    $region38: #{team3_forward.1} parent=1 // pred_check
      _
    $region39: #{team3_forward.1} parent=1 // pred_check_branch
      %75 = sbr.rel (0) target = $region41
    $region40: #{team3_forward.1} parent=1 // pred_region
      _
    $region41: #{team3_forward.1} parent=1 // pred_fallthru
      _
    // Predicated region
    $region42: #{team3_forward.1} parent=1 // pred_check
      _
    $region43: #{team3_forward.1} parent=1 // pred_check_branch
      %77 = sbr.rel (0) target = $region45
    $region44: #{team3_forward.1} parent=1 // pred_region
      %s79 = ssub.s32 16, 16
      %80 = vsyncadd [#allocation11], %s79
      %s82 = sshll.u32 [#allocation12], 4
      %s83 = int_to_ptr.vmem [resolvable:$true] %s82
      %85 = dma.hbm_to_vmem [thread:$0]  %s12, 16, %s83, [#allocation11]
    $region45: #{team3_forward.1} parent=1 // pred_fallthru
      _
    // Predicated region
    $region46: #{team3_forward.1} parent=1 // pred_check
      _
    $region47: #{team3_forward.1} parent=1 // pred_check_branch
      %87 = sbr.rel (0) target = $region49
    $region48: #{team3_forward.1} parent=1 // pred_region
      %s89 = ssub.s32 1024, 1024
      %90 = vsyncadd [#allocation14], %s89
      %s91 = sshll.u32 [#allocation13], 4
      %s92 = int_to_ptr.vmem [resolvable:$true] %s91
      %97 = dma.hbm_to_vmem [thread:$0]  %s13, 1024, %s92, [#allocation14], 128, 128, 8
    $region49: #{team3_forward.1} parent=1 // pred_fallthru
      _
    // Predicated region
    $region50: #{team3_forward.1} parent=1 // pred_check
      _
    $region51: #{team3_forward.1} parent=1 // pred_check_branch
      %99 = sbr.rel (0) target = $region53
    $region52: #{team3_forward.1} parent=1 // pred_region
      _
    $region53: #{team3_forward.1} parent=1 // pred_fallthru
      _
    // Predicated region
    $region54: #{team3_forward.1} parent=1 // pred_check
      _
    $region55: #{team3_forward.1} parent=1 // pred_check_branch
      %101 = sbr.rel (0) target = $region57
    $region56: #{team3_forward.1} parent=1 // pred_region
      %102 = dma.done [#allocation6], 48
    $region57: #{team3_forward.1} parent=1 // pred_fallthru
      _
    // Predicated region
    $region58: #{team3_forward.1} parent=1 // pred_check
      _
    $region59: #{team3_forward.1} parent=1 // pred_check_branch
      %104 = sbr.rel (0) target = $region61
    $region60: #{team3_forward.1} parent=1 // pred_region
      %105 = dma.done [#allocation8], 16
    $region61: #{team3_forward.1} parent=1 // pred_fallthru
      _
    // Predicated region
    $region62: #{team3_forward.1} parent=1 // pred_check
      _
    $region63: #{team3_forward.1} parent=1 // pred_check_branch
      %107 = sbr.rel (0) target = $region65
    $region64: #{team3_forward.1} parent=1 // pred_region
      %108 = dma.done [#allocation8], 64
    $region65: #{team3_forward.1} parent=1 // pred_fallthru
      _
    // Predicated region
    $region66: #{team3_forward.1} parent=1 // pred_check
      _
    $region67: #{team3_forward.1} parent=1 // pred_check_branch
      %110 = sbr.rel (0) target = $region69
    $region68: #{team3_forward.1} parent=1 // pred_region
      %111 = dma.done [#allocation11], 16
    $region69: #{team3_forward.1} parent=1 // pred_fallthru
      _
    // Predicated region
    $region70: #{team3_forward.1} parent=1 // pred_check
      _
    $region71: #{team3_forward.1} parent=1 // pred_check_branch
      %113 = sbr.rel (0) target = $region73
    $region72: #{team3_forward.1} parent=1 // pred_region
      %114 = dma.done [#allocation11], 16
    $region73: #{team3_forward.1} parent=1 // pred_fallthru
      _
    // Predicated region
    $region74: #{team3_forward.1} parent=1 // pred_check
      _
    $region75: #{team3_forward.1} parent=1 // pred_check_branch
      %116 = sbr.rel (0) target = $region77
    $region76: #{team3_forward.1} parent=1 // pred_region
      %117 = dma.done [#allocation14], 1024
    $region77: #{team3_forward.1} parent=1 // pred_fallthru
      _
    %p120 = scmp.lt.u32.totalorder 448, 8
    %p121 = pneg %p120
    // Predicated region
    $region78: #{team3_forward.1} parent=1 // pred_check
      _
    $region79: #{team3_forward.1} parent=1 // pred_check_branch
      %123 = sbr.rel (%p120) target = $region81
    $region80: #{team3_forward.1} parent=1 // pred_region
      %s139 = sand.u32 448, 7
      %p140 = scmp.eq.s32.totalorder %s139, 0
      // Predicated region
      $region93: #{team3_forward.1} parent=80 // pred_check
        %p141 = pneg %p140
      $region94: #{team3_forward.1} parent=80 // pred_check_branch
        %143 = sbr.rel (%p141) target = $region96
      $region95: #{team3_forward.1} parent=80 // pred_region
        loop: start=0, step=1, limit=1
        $region97: #{team3_forward.1} parent=95 // loop_pre_header
          _
        $region98: #{team3_forward.1} parent=95 // loop_header
          %s145 = sphi 0, %s149
          %p146 = scmp.ge.s32.totalorder %s145, 1
          %s150 = sphi %s7, %s7
          %s151 = sphi [#allocation2], [#allocation2]
        $region99: #{team3_forward.1} parent=95 // loop_header_branch
          %148 = sbr.rel (%p146) target = $region103
        $region100: #{team3_forward.1} parent=95 // loop_body
          %v152 = vld [vmem:[%s150] sm:$0xff]
          %153 = vst [vmem:[%s151] sm:$0xff] %v152
          %v154 = vld [vmem:[%s150 + $0x8] sm:$0xff]
          %155 = vst [vmem:[%s151 + $0x8] sm:$0xff] %v154
          %v156 = vld [vmem:[%s150 + $0x10] sm:$0xff]
          %157 = vst [vmem:[%s151 + $0x10] sm:$0xff] %v156
          %v158 = vld [vmem:[%s150 + $0x18] sm:$0xff]
          %159 = vst [vmem:[%s151 + $0x18] sm:$0xff] %v158
          %v160 = vld [vmem:[%s150 + $0x20] sm:$0xff]
          %161 = vst [vmem:[%s151 + $0x20] sm:$0xff] %v160
          %v162 = vld [vmem:[%s150 + $0x28] sm:$0xff]
          %163 = vst [vmem:[%s151 + $0x28] sm:$0xff] %v162
          %v164 = vld [vmem:[%s150 + $0x30] sm:$0xff]
          %165 = vst [vmem:[%s151 + $0x30] sm:$0xff] %v164
          %v166 = vld [vmem:[%s150 + $0x38] sm:$0xff]
          %167 = vst [vmem:[%s151 + $0x38] sm:$0xff] %v166
          %v168 = vld [vmem:[%s150 + $0x40] sm:$0xff]
          %169 = vst [vmem:[%s151 + $0x40] sm:$0xff] %v168
          %v170 = vld [vmem:[%s150 + $0x48] sm:$0xff]
          %171 = vst [vmem:[%s151 + $0x48] sm:$0xff] %v170
          %v172 = vld [vmem:[%s150 + $0x50] sm:$0xff]
          %173 = vst [vmem:[%s151 + $0x50] sm:$0xff] %v172
          %v174 = vld [vmem:[%s150 + $0x58] sm:$0xff]
          %175 = vst [vmem:[%s151 + $0x58] sm:$0xff] %v174
          %v176 = vld [vmem:[%s150 + $0x60] sm:$0xff]
          %177 = vst [vmem:[%s151 + $0x60] sm:$0xff] %v176
          %v178 = vld [vmem:[%s150 + $0x68] sm:$0xff]
          %179 = vst [vmem:[%s151 + $0x68] sm:$0xff] %v178
          %v180 = vld [vmem:[%s150 + $0x70] sm:$0xff]
          %181 = vst [vmem:[%s151 + $0x70] sm:$0xff] %v180
          %v182 = vld [vmem:[%s150 + $0x78] sm:$0xff]
          %183 = vst [vmem:[%s151 + $0x78] sm:$0xff] %v182
          %v184 = vld [vmem:[%s150 + $0x80] sm:$0xff]
          %185 = vst [vmem:[%s151 + $0x80] sm:$0xff] %v184
          %v186 = vld [vmem:[%s150 + $0x88] sm:$0xff]
          %187 = vst [vmem:[%s151 + $0x88] sm:$0xff] %v186
          %v188 = vld [vmem:[%s150 + $0x90] sm:$0xff]
          %189 = vst [vmem:[%s151 + $0x90] sm:$0xff] %v188
          %v190 = vld [vmem:[%s150 + $0x98] sm:$0xff]
          %191 = vst [vmem:[%s151 + $0x98] sm:$0xff] %v190
          %v192 = vld [vmem:[%s150 + $0xa0] sm:$0xff]
          %193 = vst [vmem:[%s151 + $0xa0] sm:$0xff] %v192
          %v194 = vld [vmem:[%s150 + $0xa8] sm:$0xff]
          %195 = vst [vmem:[%s151 + $0xa8] sm:$0xff] %v194
          %v196 = vld [vmem:[%s150 + $0xb0] sm:$0xff]
          %197 = vst [vmem:[%s151 + $0xb0] sm:$0xff] %v196
          %v198 = vld [vmem:[%s150 + $0xb8] sm:$0xff]
          %199 = vst [vmem:[%s151 + $0xb8] sm:$0xff] %v198
          %v200 = vld [vmem:[%s150 + $0xc0] sm:$0xff]
          %201 = vst [vmem:[%s151 + $0xc0] sm:$0xff] %v200
          %v202 = vld [vmem:[%s150 + $0xc8] sm:$0xff]
          %203 = vst [vmem:[%s151 + $0xc8] sm:$0xff] %v202
          %v204 = vld [vmem:[%s150 + $0xd0] sm:$0xff]
          %205 = vst [vmem:[%s151 + $0xd0] sm:$0xff] %v204
          %v206 = vld [vmem:[%s150 + $0xd8] sm:$0xff]
          %207 = vst [vmem:[%s151 + $0xd8] sm:$0xff] %v206
          %v208 = vld [vmem:[%s150 + $0xe0] sm:$0xff]
          %209 = vst [vmem:[%s151 + $0xe0] sm:$0xff] %v208
          %v210 = vld [vmem:[%s150 + $0xe8] sm:$0xff]
          %211 = vst [vmem:[%s151 + $0xe8] sm:$0xff] %v210
          %v212 = vld [vmem:[%s150 + $0xf0] sm:$0xff]
          %213 = vst [vmem:[%s151 + $0xf0] sm:$0xff] %v212
          %v214 = vld [vmem:[%s150 + $0xf8] sm:$0xff]
          %215 = vst [vmem:[%s151 + $0xf8] sm:$0xff] %v214
          %v216 = vld [vmem:[%s150 + $0x100] sm:$0xff]
          %217 = vst [vmem:[%s151 + $0x100] sm:$0xff] %v216
          %v218 = vld [vmem:[%s150 + $0x108] sm:$0xff]
          %219 = vst [vmem:[%s151 + $0x108] sm:$0xff] %v218
          %v220 = vld [vmem:[%s150 + $0x110] sm:$0xff]
          %221 = vst [vmem:[%s151 + $0x110] sm:$0xff] %v220
          %v222 = vld [vmem:[%s150 + $0x118] sm:$0xff]
          %223 = vst [vmem:[%s151 + $0x118] sm:$0xff] %v222
          %v224 = vld [vmem:[%s150 + $0x120] sm:$0xff]
          %225 = vst [vmem:[%s151 + $0x120] sm:$0xff] %v224
          %v226 = vld [vmem:[%s150 + $0x128] sm:$0xff]
          %227 = vst [vmem:[%s151 + $0x128] sm:$0xff] %v226
          %v228 = vld [vmem:[%s150 + $0x130] sm:$0xff]
          %229 = vst [vmem:[%s151 + $0x130] sm:$0xff] %v228
          %v230 = vld [vmem:[%s150 + $0x138] sm:$0xff]
          %231 = vst [vmem:[%s151 + $0x138] sm:$0xff] %v230
          %v232 = vld [vmem:[%s150 + $0x140] sm:$0xff]
          %233 = vst [vmem:[%s151 + $0x140] sm:$0xff] %v232
          %v234 = vld [vmem:[%s150 + $0x148] sm:$0xff]
          %235 = vst [vmem:[%s151 + $0x148] sm:$0xff] %v234
          %v236 = vld [vmem:[%s150 + $0x150] sm:$0xff]
          %237 = vst [vmem:[%s151 + $0x150] sm:$0xff] %v236
          %v238 = vld [vmem:[%s150 + $0x158] sm:$0xff]
          %239 = vst [vmem:[%s151 + $0x158] sm:$0xff] %v238
          %v240 = vld [vmem:[%s150 + $0x160] sm:$0xff]
          %241 = vst [vmem:[%s151 + $0x160] sm:$0xff] %v240
          %v242 = vld [vmem:[%s150 + $0x168] sm:$0xff]
          %243 = vst [vmem:[%s151 + $0x168] sm:$0xff] %v242
          %v244 = vld [vmem:[%s150 + $0x170] sm:$0xff]
          %245 = vst [vmem:[%s151 + $0x170] sm:$0xff] %v244
          %v246 = vld [vmem:[%s150 + $0x178] sm:$0xff]
          %247 = vst [vmem:[%s151 + $0x178] sm:$0xff] %v246
          %v248 = vld [vmem:[%s150 + $0x180] sm:$0xff]
          %249 = vst [vmem:[%s151 + $0x180] sm:$0xff] %v248
          %v250 = vld [vmem:[%s150 + $0x188] sm:$0xff]
          %251 = vst [vmem:[%s151 + $0x188] sm:$0xff] %v250
          %v252 = vld [vmem:[%s150 + $0x190] sm:$0xff]
          %253 = vst [vmem:[%s151 + $0x190] sm:$0xff] %v252
          %v254 = vld [vmem:[%s150 + $0x198] sm:$0xff]
          %255 = vst [vmem:[%s151 + $0x198] sm:$0xff] %v254
          %v256 = vld [vmem:[%s150 + $0x1a0] sm:$0xff]
          %257 = vst [vmem:[%s151 + $0x1a0] sm:$0xff] %v256
          %v258 = vld [vmem:[%s150 + $0x1a8] sm:$0xff]
          %259 = vst [vmem:[%s151 + $0x1a8] sm:$0xff] %v258
          %v260 = vld [vmem:[%s150 + $0x1b0] sm:$0xff]
          %261 = vst [vmem:[%s151 + $0x1b0] sm:$0xff] %v260
          %v262 = vld [vmem:[%s150 + $0x1b8] sm:$0xff]
          %263 = vst [vmem:[%s151 + $0x1b8] sm:$0xff] %v262
        $region101: #{team3_forward.1} parent=95 // loop_footer
          %s149 = sadd.s32 1, %s145
        $region102: #{team3_forward.1} parent=95 // loop_footer_branch
          %144 = sbr.rel target = $region98
        $region103: #{team3_forward.1} parent=95 // loop_exit
          _
      $region96: #{team3_forward.1} parent=80 // pred_fallthru
        _
      %p264 = pneg %p140
      // Predicated region
      $region104: #{team3_forward.1} parent=80 // pred_check
        _
      $region105: #{team3_forward.1} parent=80 // pred_check_branch
        %266 = sbr.rel (%p140) target = $region107
      $region106: #{team3_forward.1} parent=80 // pred_region
        %s267 = sand.u32 448, 7
      $region107: #{team3_forward.1} parent=80 // pred_fallthru
        _
    $region81: #{team3_forward.1} parent=1 // pred_fallthru
      _
    // Predicated region
    $region82: #{team3_forward.1} parent=1 // pred_check
      %p124 = pneg %p120
    $region83: #{team3_forward.1} parent=1 // pred_check_branch
      %126 = sbr.rel (%p124) target = $region85
    $region84: #{team3_forward.1} parent=1 // pred_region
      %s127 = sshll.u32 1, 448
      %s128 = ssub.s32 %s127, 1
      loop: start=0, step=1, limit=1
      $region86: #{team3_forward.1} parent=84 // loop_pre_header
        _
      $region87: #{team3_forward.1} parent=84 // loop_header
        %s130 = sphi 0, %s134
        %p131 = scmp.ge.s32.totalorder %s130, 1
        %s135 = sphi %s7, %s7
        %s136 = sphi [#allocation2], [#allocation2]
      $region88: #{team3_forward.1} parent=84 // loop_header_branch
        %133 = sbr.rel (%p131) target = $region92
      $region89: #{team3_forward.1} parent=84 // loop_body
        %v137 = vld [vmem:[%s135] sm:%s128]
        %138 = vst [vmem:[%s136] sm:%s128] %v137
      $region90: #{team3_forward.1} parent=84 // loop_footer
        %s134 = sadd.s32 1, %s130
      $region91: #{team3_forward.1} parent=84 // loop_footer_branch
        %129 = sbr.rel target = $region87
      $region92: #{team3_forward.1} parent=84 // loop_exit
        _
    $region85: #{team3_forward.1} parent=1 // pred_fallthru
      _
    // Predicated region
    $region108: #{team3_forward.1} parent=1 // pred_check
      _
    $region109: #{team3_forward.1} parent=1 // pred_check_branch
      %270 = sbr.rel (0) target = $region111
    $region110: #{team3_forward.1} parent=1 // pred_region
      %271 = vsyncadd [#allocation4], 7168
    $region111: #{team3_forward.1} parent=1 // pred_fallthru
      _
    %s272 = scalar_lea.sflag [#allocation4], 1
    %p274 = scmp.lt.u32.totalorder 256, 8
    %p275 = pneg %p274
    // Predicated region
    $region112: #{team3_forward.1} parent=1 // pred_check
      _
    $region113: #{team3_forward.1} parent=1 // pred_check_branch
      %277 = sbr.rel (%p274) target = $region115
    $region114: #{team3_forward.1} parent=1 // pred_region
      %s293 = sand.u32 256, 7
      %p294 = scmp.eq.s32.totalorder %s293, 0
      // Predicated region
      $region127: #{team3_forward.1} parent=114 // pred_check
        %p295 = pneg %p294
      $region128: #{team3_forward.1} parent=114 // pred_check_branch
        %297 = sbr.rel (%p295) target = $region130
      $region129: #{team3_forward.1} parent=114 // pred_region
        loop: start=0, step=1, limit=1
        $region131: #{team3_forward.1} parent=129 // loop_pre_header
          _
        $region132: #{team3_forward.1} parent=129 // loop_header
          %s299 = sphi 0, %s303
          %p300 = scmp.ge.s32.totalorder %s299, 1
          %s304 = sphi %s9, %s9
          %s305 = sphi [#allocation3], [#allocation3]
        $region133: #{team3_forward.1} parent=129 // loop_header_branch
          %302 = sbr.rel (%p300) target = $region137
        $region134: #{team3_forward.1} parent=129 // loop_body
          %v306 = vld [vmem:[%s304] sm:$0xff]
          %307 = vst [vmem:[%s305] sm:$0xff] %v306
          %v308 = vld [vmem:[%s304 + $0x8] sm:$0xff]
          %309 = vst [vmem:[%s305 + $0x8] sm:$0xff] %v308
          %v310 = vld [vmem:[%s304 + $0x10] sm:$0xff]
          %311 = vst [vmem:[%s305 + $0x10] sm:$0xff] %v310
          %v312 = vld [vmem:[%s304 + $0x18] sm:$0xff]
          %313 = vst [vmem:[%s305 + $0x18] sm:$0xff] %v312
          %v314 = vld [vmem:[%s304 + $0x20] sm:$0xff]
          %315 = vst [vmem:[%s305 + $0x20] sm:$0xff] %v314
          %v316 = vld [vmem:[%s304 + $0x28] sm:$0xff]
          %317 = vst [vmem:[%s305 + $0x28] sm:$0xff] %v316
          %v318 = vld [vmem:[%s304 + $0x30] sm:$0xff]
          %319 = vst [vmem:[%s305 + $0x30] sm:$0xff] %v318
          %v320 = vld [vmem:[%s304 + $0x38] sm:$0xff]
          %321 = vst [vmem:[%s305 + $0x38] sm:$0xff] %v320
          %v322 = vld [vmem:[%s304 + $0x40] sm:$0xff]
          %323 = vst [vmem:[%s305 + $0x40] sm:$0xff] %v322
          %v324 = vld [vmem:[%s304 + $0x48] sm:$0xff]
          %325 = vst [vmem:[%s305 + $0x48] sm:$0xff] %v324
          %v326 = vld [vmem:[%s304 + $0x50] sm:$0xff]
          %327 = vst [vmem:[%s305 + $0x50] sm:$0xff] %v326
          %v328 = vld [vmem:[%s304 + $0x58] sm:$0xff]
          %329 = vst [vmem:[%s305 + $0x58] sm:$0xff] %v328
          %v330 = vld [vmem:[%s304 + $0x60] sm:$0xff]
          %331 = vst [vmem:[%s305 + $0x60] sm:$0xff] %v330
          %v332 = vld [vmem:[%s304 + $0x68] sm:$0xff]
          %333 = vst [vmem:[%s305 + $0x68] sm:$0xff] %v332
          %v334 = vld [vmem:[%s304 + $0x70] sm:$0xff]
          %335 = vst [vmem:[%s305 + $0x70] sm:$0xff] %v334
          %v336 = vld [vmem:[%s304 + $0x78] sm:$0xff]
          %337 = vst [vmem:[%s305 + $0x78] sm:$0xff] %v336
          %v338 = vld [vmem:[%s304 + $0x80] sm:$0xff]
          %339 = vst [vmem:[%s305 + $0x80] sm:$0xff] %v338
          %v340 = vld [vmem:[%s304 + $0x88] sm:$0xff]
          %341 = vst [vmem:[%s305 + $0x88] sm:$0xff] %v340
          %v342 = vld [vmem:[%s304 + $0x90] sm:$0xff]
          %343 = vst [vmem:[%s305 + $0x90] sm:$0xff] %v342
          %v344 = vld [vmem:[%s304 + $0x98] sm:$0xff]
          %345 = vst [vmem:[%s305 + $0x98] sm:$0xff] %v344
          %v346 = vld [vmem:[%s304 + $0xa0] sm:$0xff]
          %347 = vst [vmem:[%s305 + $0xa0] sm:$0xff] %v346
          %v348 = vld [vmem:[%s304 + $0xa8] sm:$0xff]
          %349 = vst [vmem:[%s305 + $0xa8] sm:$0xff] %v348
          %v350 = vld [vmem:[%s304 + $0xb0] sm:$0xff]
          %351 = vst [vmem:[%s305 + $0xb0] sm:$0xff] %v350
          %v352 = vld [vmem:[%s304 + $0xb8] sm:$0xff]
          %353 = vst [vmem:[%s305 + $0xb8] sm:$0xff] %v352
          %v354 = vld [vmem:[%s304 + $0xc0] sm:$0xff]
          %355 = vst [vmem:[%s305 + $0xc0] sm:$0xff] %v354
          %v356 = vld [vmem:[%s304 + $0xc8] sm:$0xff]
          %357 = vst [vmem:[%s305 + $0xc8] sm:$0xff] %v356
          %v358 = vld [vmem:[%s304 + $0xd0] sm:$0xff]
          %359 = vst [vmem:[%s305 + $0xd0] sm:$0xff] %v358
          %v360 = vld [vmem:[%s304 + $0xd8] sm:$0xff]
          %361 = vst [vmem:[%s305 + $0xd8] sm:$0xff] %v360
          %v362 = vld [vmem:[%s304 + $0xe0] sm:$0xff]
          %363 = vst [vmem:[%s305 + $0xe0] sm:$0xff] %v362
          %v364 = vld [vmem:[%s304 + $0xe8] sm:$0xff]
          %365 = vst [vmem:[%s305 + $0xe8] sm:$0xff] %v364
          %v366 = vld [vmem:[%s304 + $0xf0] sm:$0xff]
          %367 = vst [vmem:[%s305 + $0xf0] sm:$0xff] %v366
          %v368 = vld [vmem:[%s304 + $0xf8] sm:$0xff]
          %369 = vst [vmem:[%s305 + $0xf8] sm:$0xff] %v368
        $region135: #{team3_forward.1} parent=129 // loop_footer
          %s303 = sadd.s32 1, %s299
        $region136: #{team3_forward.1} parent=129 // loop_footer_branch
          %298 = sbr.rel target = $region132
        $region137: #{team3_forward.1} parent=129 // loop_exit
          _
      $region130: #{team3_forward.1} parent=114 // pred_fallthru
        _
      %p370 = pneg %p294
      // Predicated region
      $region138: #{team3_forward.1} parent=114 // pred_check
        _
      $region139: #{team3_forward.1} parent=114 // pred_check_branch
        %372 = sbr.rel (%p294) target = $region141
      $region140: #{team3_forward.1} parent=114 // pred_region
        %s373 = sand.u32 256, 7
      $region141: #{team3_forward.1} parent=114 // pred_fallthru
        _
    $region115: #{team3_forward.1} parent=1 // pred_fallthru
      _
    // Predicated region
    $region116: #{team3_forward.1} parent=1 // pred_check
      %p278 = pneg %p274
    $region117: #{team3_forward.1} parent=1 // pred_check_branch
      %280 = sbr.rel (%p278) target = $region119
    $region118: #{team3_forward.1} parent=1 // pred_region
      %s281 = sshll.u32 1, 256
      %s282 = ssub.s32 %s281, 1
      loop: start=0, step=1, limit=1
      $region120: #{team3_forward.1} parent=118 // loop_pre_header
        _
      $region121: #{team3_forward.1} parent=118 // loop_header
        %s284 = sphi 0, %s288
        %p285 = scmp.ge.s32.totalorder %s284, 1
        %s289 = sphi %s9, %s9
        %s290 = sphi [#allocation3], [#allocation3]
      $region122: #{team3_forward.1} parent=118 // loop_header_branch
        %287 = sbr.rel (%p285) target = $region126
      $region123: #{team3_forward.1} parent=118 // loop_body
        %v291 = vld [vmem:[%s289] sm:%s282]
        %292 = vst [vmem:[%s290] sm:%s282] %v291
      $region124: #{team3_forward.1} parent=118 // loop_footer
        %s288 = sadd.s32 1, %s284
      $region125: #{team3_forward.1} parent=118 // loop_footer_branch
        %283 = sbr.rel target = $region121
      $region126: #{team3_forward.1} parent=118 // loop_exit
        _
    $region119: #{team3_forward.1} parent=1 // pred_fallthru
      _
    // Predicated region
    $region142: #{team3_forward.1} parent=1 // pred_check
      _
    $region143: #{team3_forward.1} parent=1 // pred_check_branch
      %376 = sbr.rel (0) target = $region145
    $region144: #{team3_forward.1} parent=1 // pred_region
      %377 = vsyncadd %s272, 4096
    $region145: #{team3_forward.1} parent=1 // pred_fallthru
      _
    %v378 = vld [vmem:[%s0] sm:$0xff]
    %v379 = vld [vmem:[%s0 + $0x8] sm:$0xff]
    %v380 = vld [vmem:[%s0 + $0x10] sm:$0xff]
    %v381 = vld [vmem:[%s0 + $0x18] sm:$0xff]
    %v382 = vld [vmem:[%s0 + $0x20] sm:$0xff]
    %v383 = vld [vmem:[%s0 + $0x28] sm:$0xff]
    %v384 = vld [vmem:[%s0 + $0x30] sm:$0xff]
    %v385 = vld [vmem:[%s0 + $0x38] sm:$0xff]
    %v386 = vld [vmem:[%s1] sm:$0xff]
    %v387 = vld [vmem:[%s1 + $0x8] sm:$0xff]
    %v388 = vld [vmem:[%s1 + $0x10] sm:$0xff]
    %v389 = vld [vmem:[%s1 + $0x18] sm:$0xff]
    %v390 = vld [vmem:[%s1 + $0x20] sm:$0xff]
    %v391 = vld [vmem:[%s1 + $0x28] sm:$0xff]
    %v392 = vld [vmem:[%s1 + $0x30] sm:$0xff]
    %v393 = vld [vmem:[%s1 + $0x38] sm:$0xff]
    %v394 = vld [vmem:[%s1 + $0x40] sm:$0xff]
    %v395 = vld [vmem:[%s1 + $0x48] sm:$0xff]
    %v396 = vld [vmem:[%s1 + $0x50] sm:$0xff]
    %v397 = vld [vmem:[%s1 + $0x58] sm:$0xff]
    %s398 = scalar_lea.vmem %s1, 96
    %v399 = vld [vmem:[%s398] sm:$0xff]
    %v400 = vld [vmem:[%s398 + $0x8] sm:$0xff]
    %v401 = vld [vmem:[%s398 + $0x10] sm:$0xff]
    %v402 = vld [vmem:[%s398 + $0x18] sm:$0xff]
    %v403 = vld [vmem:[%s398 + $0x20] sm:$0xff]
    %v404 = vld [vmem:[%s398 + $0x28] sm:$0xff]
    %v405 = vld [vmem:[%s398 + $0x30] sm:$0xff]
    %v406 = vld [vmem:[%s398 + $0x38] sm:$0xff]
    %v407 = vld [vmem:[%s398 + $0x40] sm:$0xff]
    %v408 = vld [vmem:[%s398 + $0x48] sm:$0xff]
    %v409 = vld [vmem:[%s398 + $0x50] sm:$0xff]
    %v410 = vld [vmem:[%s398 + $0x58] sm:$0xff]
    %vm411 = vcmask 261120
    %v413 = vsel %vm411, %v379, 0
    %v416 = vsel %vm411, %v380, 0
    %v419 = vsel %vm411, %v381, 0
    %v422 = vsel %vm411, %v382, 0
    %v425 = vsel %vm411, %v383, 0
    %v428 = vsel %vm411, %v384, 0
    %v431 = vsel %vm411, %v385, 0
    %433 = vmatprep.subr.mxu0 0.0
    %434 = vmatpush1.msra.mxu0 0.0
    %435 = vmatprep.subr.mxu0 0.0
    %436 = vmatpush1.msra.mxu0 0.0
    %437 = vmatprep.subr.mxu0 0.0
    %438 = vmatpush1.msra.mxu0 0.0
    %439 = vmatprep.subr.mxu0 0.0
    %440 = vmatpush1.msra.mxu0 0.0
    %441 = vmatprep.subr.mxu0 0.0
    %442 = vmatpush1.msra.mxu0 0.0
    %443 = vmatprep.subr.mxu0 0.0
    %444 = vmatpush1.msra.mxu0 0.0
    %445 = vmatprep.subr.mxu0 0.0
    %446 = vmatpush1.msra.mxu0 0.0
    %447 = vmatprep.subr.mxu0 0.0
    %448 = vmatpush1.msra.mxu0 0.0
    %449 = vmatprep.subr.mxu0 0.0
    %450 = vmatpush1.msra.mxu0 0.0
    %451 = vmatprep.subr.mxu0 0.0
    %452 = vmatpush1.msra.mxu0 0.0
    %453 = vmatprep.subr.mxu0 0.0
    %454 = vmatpush1.msra.mxu0 0.0
    %455 = vmatprep.subr.mxu0 0.0
    %456 = vmatpush1.msra.mxu0 0.0
    %457 = vmatprep.subr.mxu0 %v409
    %458 = vmatpush1.msra.mxu0 %v408
    %459 = vmatprep.subr.mxu0 %v406
    %460 = vmatpush1.msra.mxu0 %v405
    %461 = vmatprep.subr.mxu0 %v403
    %462 = vmatpush1.msra.mxu0 %v402
    %463 = vmatprep.subr.mxu0 %v400
    %464 = vmatpush1.msra.mxu0 %v399
    %465 = vmatprep.subr.mxu0 0.0
    %466 = vmatpush2.msra.mxu0 0.0
    %467 = vmatprep.subr.mxu0 0.0
    %468 = vmatpush2.msra.mxu0 0.0
    %469 = vmatprep.subr.mxu0 0.0
    %470 = vmatpush2.msra.mxu0 0.0
    %471 = vmatprep.subr.mxu0 0.0
    %472 = vmatpush2.msra.mxu0 0.0
    %473 = vmatprep.subr.mxu0 0.0
    %474 = vmatpush2.msra.mxu0 0.0
    %475 = vmatprep.subr.mxu0 0.0
    %476 = vmatpush2.msra.mxu0 0.0
    %477 = vmatprep.subr.mxu0 0.0
    %478 = vmatpush2.msra.mxu0 0.0
    %479 = vmatprep.subr.mxu0 0.0
    %480 = vmatpush2.msra.mxu0 0.0
    %481 = vmatprep.subr.mxu0 0.0
    %482 = vmatpush2.msra.mxu0 0.0
    %483 = vmatprep.subr.mxu0 0.0
    %484 = vmatpush2.msra.mxu0 0.0
    %485 = vmatprep.subr.mxu0 0.0
    %486 = vmatpush2.msra.mxu0 0.0
    %487 = vmatprep.subr.mxu0 0.0
    %488 = vmatpush2.msra.mxu0 0.0
    %489 = vmatprep.subr.mxu0 0.0
    %490 = vmatpush2.msra.mxu0 0.0
    %491 = vmatprep.subr.mxu0 0.0
    %492 = vmatpush2.msra.mxu0 0.0
    %493 = vmatprep.subr.mxu0 0.0
    %494 = vmatpush2.msra.mxu0 0.0
    %495 = vmatprep.subr.mxu0 0.0
    %496 = vmatpush2.msra.mxu0 0.0
    %497 = vmatprep.mubr.f32.mxu0 0.0
    %498 = vmatmul.mubr.f32.gmra.mxu0 %v413
    %v499 = vpop.f32.mrf.mxu0
    %v500 = vadd.f32 0.0, %v499
    %v501 = vpop.f32.mrf.mxu0
    %v502 = vadd.f32 0.0, %v501
    %503 = vmatprep.mubr.f32.mxu0 0.0
    %504 = vmatmul.mubr.f32.gmra.mxu0 %v416
    %v505 = vpop.f32.mrf.mxu0
    %v506 = vadd.f32 0.0, %v505
    %v507 = vpop.f32.mrf.mxu0
    %v508 = vadd.f32 0.0, %v507
    %509 = vmatprep.mubr.f32.mxu0 0.0
    %510 = vmatmul.mubr.f32.gmra.mxu0 %v419
    %v511 = vpop.f32.mrf.mxu0
    %v512 = vadd.f32 0.0, %v511
    %v513 = vpop.f32.mrf.mxu0
    %v514 = vadd.f32 0.0, %v513
    %515 = vmatprep.mubr.f32.mxu0 0.0
    %516 = vmatmul.mubr.f32.gmra.mxu0 %v422
    %v517 = vpop.f32.mrf.mxu0
    %v518 = vadd.f32 0.0, %v517
    %v519 = vpop.f32.mrf.mxu0
    %v520 = vadd.f32 0.0, %v519
    %521 = vmatprep.mubr.f32.mxu0 0.0
    %522 = vmatmul.mubr.f32.gmra.mxu0 %v425
    %v523 = vpop.f32.mrf.mxu0
    %v524 = vadd.f32 0.0, %v523
    %v525 = vpop.f32.mrf.mxu0
    %v526 = vadd.f32 0.0, %v525
    %527 = vmatprep.mubr.f32.mxu0 0.0
    %528 = vmatmul.mubr.f32.gmra.mxu0 %v428
    %v529 = vpop.f32.mrf.mxu0
    %v530 = vadd.f32 0.0, %v529
    %v531 = vpop.f32.mrf.mxu0
    %v532 = vadd.f32 0.0, %v531
    %533 = vmatprep.mubr.f32.mxu0 0.0
    %534 = vmatmul.mubr.f32.gmra.mxu0 %v431
    %v535 = vpop.f32.mrf.mxu0
    %v536 = vadd.f32 0.0, %v535
    %v537 = vpop.f32.mrf.mxu0
    %v538 = vadd.f32 0.0, %v537
    %539 = vdwg.mxu0
    %540 = vmatprep.subr.mxu0 0.0
    %541 = vmatpush1.msra.mxu0 0.0
    %542 = vmatprep.subr.mxu0 0.0
    %543 = vmatpush1.msra.mxu0 0.0
    %544 = vmatprep.subr.mxu0 0.0
    %545 = vmatpush1.msra.mxu0 0.0
    %546 = vmatprep.subr.mxu0 0.0
    %547 = vmatpush1.msra.mxu0 0.0
    %548 = vmatprep.subr.mxu0 0.0
    %549 = vmatpush1.msra.mxu0 0.0
    %550 = vmatprep.subr.mxu0 0.0
    %551 = vmatpush1.msra.mxu0 0.0
    %552 = vmatprep.subr.mxu0 0.0
    %553 = vmatpush1.msra.mxu0 0.0
    %554 = vmatprep.subr.mxu0 0.0
    %555 = vmatpush1.msra.mxu0 0.0
    %556 = vmatprep.subr.mxu0 0.0
    %557 = vmatpush1.msra.mxu0 0.0
    %558 = vmatprep.subr.mxu0 0.0
    %559 = vmatpush1.msra.mxu0 0.0
    %560 = vmatprep.subr.mxu0 0.0
    %561 = vmatpush1.msra.mxu0 0.0
    %562 = vmatprep.subr.mxu0 0.0
    %563 = vmatpush1.msra.mxu0 0.0
    %564 = vmatprep.subr.mxu0 0.0
    %565 = vmatpush1.msra.mxu0 %v410
    %566 = vmatprep.subr.mxu0 0.0
    %567 = vmatpush1.msra.mxu0 %v407
    %568 = vmatprep.subr.mxu0 0.0
    %569 = vmatpush1.msra.mxu0 %v404
    %570 = vmatprep.subr.mxu0 0.0
    %571 = vmatpush1.msra.mxu0 %v401
    %572 = vmatprep.subr.mxu0 0.0
    %573 = vmatpush2.msra.mxu0 0.0
    %574 = vmatprep.subr.mxu0 0.0
    %575 = vmatpush2.msra.mxu0 0.0
    %576 = vmatprep.subr.mxu0 0.0
    %577 = vmatpush2.msra.mxu0 0.0
    %578 = vmatprep.subr.mxu0 0.0
    %579 = vmatpush2.msra.mxu0 0.0
    %580 = vmatprep.subr.mxu0 0.0
    %581 = vmatpush2.msra.mxu0 0.0
    %582 = vmatprep.subr.mxu0 0.0
    %583 = vmatpush2.msra.mxu0 0.0
    %584 = vmatprep.subr.mxu0 0.0
    %585 = vmatpush2.msra.mxu0 0.0
    %586 = vmatprep.subr.mxu0 0.0
    %587 = vmatpush2.msra.mxu0 0.0
    %588 = vmatprep.subr.mxu0 0.0
    %589 = vmatpush2.msra.mxu0 0.0
    %590 = vmatprep.subr.mxu0 0.0
    %591 = vmatpush2.msra.mxu0 0.0
    %592 = vmatprep.subr.mxu0 0.0
    %593 = vmatpush2.msra.mxu0 0.0
    %594 = vmatprep.subr.mxu0 0.0
    %595 = vmatpush2.msra.mxu0 0.0
    %596 = vmatprep.subr.mxu0 0.0
    %597 = vmatpush2.msra.mxu0 0.0
    %598 = vmatprep.subr.mxu0 0.0
    %599 = vmatpush2.msra.mxu0 0.0
    %600 = vmatprep.subr.mxu0 0.0
    %601 = vmatpush2.msra.mxu0 0.0
    %602 = vmatprep.subr.mxu0 0.0
    %603 = vmatpush2.msra.mxu0 0.0
    %604 = vmatprep.mubr.f32.mxu0 0.0
    %605 = vmatmul.mubr.f32.gmra.mxu0 %v413
    %v606 = vpop.f32.mrf.mxu0
    %v607 = vadd.f32 0.0, %v606
    %v608 = vpop.f32.mrf.mxu0
    %609 = vmatprep.mubr.f32.mxu0 0.0
    %610 = vmatmul.mubr.f32.gmra.mxu0 %v416
    %v611 = vpop.f32.mrf.mxu0
    %v612 = vadd.f32 0.0, %v611
    %v613 = vpop.f32.mrf.mxu0
    %614 = vmatprep.mubr.f32.mxu0 0.0
    %615 = vmatmul.mubr.f32.gmra.mxu0 %v419
    %v616 = vpop.f32.mrf.mxu0
    %v617 = vadd.f32 0.0, %v616
    %v618 = vpop.f32.mrf.mxu0
    %619 = vmatprep.mubr.f32.mxu0 0.0
    %620 = vmatmul.mubr.f32.gmra.mxu0 %v422
    %v621 = vpop.f32.mrf.mxu0
    %v622 = vadd.f32 0.0, %v621
    %v623 = vpop.f32.mrf.mxu0
    %624 = vmatprep.mubr.f32.mxu0 0.0
    %625 = vmatmul.mubr.f32.gmra.mxu0 %v425
    %v626 = vpop.f32.mrf.mxu0
    %v627 = vadd.f32 0.0, %v626
    %v628 = vpop.f32.mrf.mxu0
    %629 = vmatprep.mubr.f32.mxu0 0.0
    %630 = vmatmul.mubr.f32.gmra.mxu0 %v428
    %v631 = vpop.f32.mrf.mxu0
    %v632 = vadd.f32 0.0, %v631
    %v633 = vpop.f32.mrf.mxu0
    %634 = vmatprep.mubr.f32.mxu0 0.0
    %635 = vmatmul.mubr.f32.gmra.mxu0 %v431
    %v636 = vpop.f32.mrf.mxu0
    %v637 = vadd.f32 0.0, %v636
    %v638 = vpop.f32.mrf.mxu0
    %639 = vdwg.mxu0
    %v641 = vsel %vm411, %v378, 0
    %643 = vmatprep.subr.mxu0 0.0
    %644 = vmatpush1.msra.mxu0 0.0
    %645 = vmatprep.subr.mxu0 0.0
    %646 = vmatpush1.msra.mxu0 0.0
    %647 = vmatprep.subr.mxu0 0.0
    %648 = vmatpush1.msra.mxu0 0.0
    %649 = vmatprep.subr.mxu0 0.0
    %650 = vmatpush1.msra.mxu0 0.0
    %651 = vmatprep.subr.mxu0 0.0
    %652 = vmatpush1.msra.mxu0 0.0
    %653 = vmatprep.subr.mxu0 0.0
    %654 = vmatpush1.msra.mxu0 0.0
    %655 = vmatprep.subr.mxu0 0.0
    %656 = vmatpush1.msra.mxu0 0.0
    %657 = vmatprep.subr.mxu0 0.0
    %658 = vmatpush1.msra.mxu0 0.0
    %659 = vmatprep.subr.mxu0 0.0
    %660 = vmatpush1.msra.mxu0 0.0
    %661 = vmatprep.subr.mxu0 0.0
    %662 = vmatpush1.msra.mxu0 0.0
    %663 = vmatprep.subr.mxu0 0.0
    %664 = vmatpush1.msra.mxu0 0.0
    %665 = vmatprep.subr.mxu0 0.0
    %666 = vmatpush1.msra.mxu0 0.0
    %667 = vmatprep.subr.mxu0 %v396
    %668 = vmatpush1.msra.mxu0 %v395
    %669 = vmatprep.subr.mxu0 %v393
    %670 = vmatpush1.msra.mxu0 %v392
    %671 = vmatprep.subr.mxu0 %v390
    %672 = vmatpush1.msra.mxu0 %v389
    %673 = vmatprep.subr.mxu0 %v387
    %674 = vmatpush1.msra.mxu0 %v386
    %675 = vmatprep.subr.mxu0 0.0
    %676 = vmatpush2.msra.mxu0 0.0
    %677 = vmatprep.subr.mxu0 0.0
    %678 = vmatpush2.msra.mxu0 0.0
    %679 = vmatprep.subr.mxu0 0.0
    %680 = vmatpush2.msra.mxu0 0.0
    %681 = vmatprep.subr.mxu0 0.0
    %682 = vmatpush2.msra.mxu0 0.0
    %683 = vmatprep.subr.mxu0 0.0
    %684 = vmatpush2.msra.mxu0 0.0
    %685 = vmatprep.subr.mxu0 0.0
    %686 = vmatpush2.msra.mxu0 0.0
    %687 = vmatprep.subr.mxu0 0.0
    %688 = vmatpush2.msra.mxu0 0.0
    %689 = vmatprep.subr.mxu0 0.0
    %690 = vmatpush2.msra.mxu0 0.0
    %691 = vmatprep.subr.mxu0 0.0
    %692 = vmatpush2.msra.mxu0 0.0
    %693 = vmatprep.subr.mxu0 0.0
    %694 = vmatpush2.msra.mxu0 0.0
    %695 = vmatprep.subr.mxu0 0.0
    %696 = vmatpush2.msra.mxu0 0.0
    %697 = vmatprep.subr.mxu0 0.0
    %698 = vmatpush2.msra.mxu0 0.0
    %699 = vmatprep.subr.mxu0 0.0
    %700 = vmatpush2.msra.mxu0 0.0
    %701 = vmatprep.subr.mxu0 0.0
    %702 = vmatpush2.msra.mxu0 0.0
    %703 = vmatprep.subr.mxu0 0.0
    %704 = vmatpush2.msra.mxu0 0.0
    %705 = vmatprep.subr.mxu0 0.0
    %706 = vmatpush2.msra.mxu0 0.0
    %707 = vmatprep.mubr.f32.mxu0 0.0
    %708 = vmatmul.mubr.f32.gmra.mxu0 %v641
    %v709 = vpop.f32.mrf.mxu0
    %v710 = vadd.f32 %v500, %v709
    %v711 = vpop.f32.mrf.mxu0
    %v712 = vadd.f32 %v502, %v711
    %713 = vmatprep.mubr.f32.mxu0 0.0
    %714 = vmatmul.mubr.f32.gmra.mxu0 %v413
    %v715 = vpop.f32.mrf.mxu0
    %v716 = vadd.f32 %v506, %v715
    %v717 = vpop.f32.mrf.mxu0
    %v718 = vadd.f32 %v508, %v717
    %719 = vmatprep.mubr.f32.mxu0 0.0
    %720 = vmatmul.mubr.f32.gmra.mxu0 %v416
    %v721 = vpop.f32.mrf.mxu0
    %v722 = vadd.f32 %v512, %v721
    %v723 = vpop.f32.mrf.mxu0
    %v724 = vadd.f32 %v514, %v723
    %725 = vmatprep.mubr.f32.mxu0 0.0
    %726 = vmatmul.mubr.f32.gmra.mxu0 %v419
    %v727 = vpop.f32.mrf.mxu0
    %v728 = vadd.f32 %v518, %v727
    %v729 = vpop.f32.mrf.mxu0
    %v730 = vadd.f32 %v520, %v729
    %731 = vmatprep.mubr.f32.mxu0 0.0
    %732 = vmatmul.mubr.f32.gmra.mxu0 %v422
    %v733 = vpop.f32.mrf.mxu0
    %v734 = vadd.f32 %v524, %v733
    %v735 = vpop.f32.mrf.mxu0
    %v736 = vadd.f32 %v526, %v735
    %737 = vmatprep.mubr.f32.mxu0 0.0
    %738 = vmatmul.mubr.f32.gmra.mxu0 %v425
    %v739 = vpop.f32.mrf.mxu0
    %v740 = vadd.f32 %v530, %v739
    %v741 = vpop.f32.mrf.mxu0
    %v742 = vadd.f32 %v532, %v741
    %743 = vmatprep.mubr.f32.mxu0 0.0
    %744 = vmatmul.mubr.f32.gmra.mxu0 %v428
    %v745 = vpop.f32.mrf.mxu0
    %v746 = vadd.f32 %v536, %v745
    %v747 = vpop.f32.mrf.mxu0
    %v748 = vadd.f32 %v538, %v747
    %749 = vdwg.mxu0
    %750 = vmatprep.subr.mxu0 0.0
    %751 = vmatpush1.msra.mxu0 0.0
    %752 = vmatprep.subr.mxu0 0.0
    %753 = vmatpush1.msra.mxu0 0.0
    %754 = vmatprep.subr.mxu0 0.0
    %755 = vmatpush1.msra.mxu0 0.0
    %756 = vmatprep.subr.mxu0 0.0
    %757 = vmatpush1.msra.mxu0 0.0
    %758 = vmatprep.subr.mxu0 0.0
    %759 = vmatpush1.msra.mxu0 0.0
    %760 = vmatprep.subr.mxu0 0.0
    %761 = vmatpush1.msra.mxu0 0.0
    %762 = vmatprep.subr.mxu0 0.0
    %763 = vmatpush1.msra.mxu0 0.0
    %764 = vmatprep.subr.mxu0 0.0
    %765 = vmatpush1.msra.mxu0 0.0
    %766 = vmatprep.subr.mxu0 0.0
    %767 = vmatpush1.msra.mxu0 0.0
    %768 = vmatprep.subr.mxu0 0.0
    %769 = vmatpush1.msra.mxu0 0.0
    %770 = vmatprep.subr.mxu0 0.0
    %771 = vmatpush1.msra.mxu0 0.0
    %772 = vmatprep.subr.mxu0 0.0
    %773 = vmatpush1.msra.mxu0 0.0
    %774 = vmatprep.subr.mxu0 0.0
    %775 = vmatpush1.msra.mxu0 %v397
    %776 = vmatprep.subr.mxu0 0.0
    %777 = vmatpush1.msra.mxu0 %v394
    %778 = vmatprep.subr.mxu0 0.0
    %779 = vmatpush1.msra.mxu0 %v391
    %780 = vmatprep.subr.mxu0 0.0
    %781 = vmatpush1.msra.mxu0 %v388
    %782 = vmatprep.subr.mxu0 0.0
    %783 = vmatpush2.msra.mxu0 0.0
    %784 = vmatprep.subr.mxu0 0.0
    %785 = vmatpush2.msra.mxu0 0.0
    %786 = vmatprep.subr.mxu0 0.0
    %787 = vmatpush2.msra.mxu0 0.0
    %788 = vmatprep.subr.mxu0 0.0
    %789 = vmatpush2.msra.mxu0 0.0
    %790 = vmatprep.subr.mxu0 0.0
    %791 = vmatpush2.msra.mxu0 0.0
    %792 = vmatprep.subr.mxu0 0.0
    %793 = vmatpush2.msra.mxu0 0.0
    %794 = vmatprep.subr.mxu0 0.0
    %795 = vmatpush2.msra.mxu0 0.0
    %796 = vmatprep.subr.mxu0 0.0
    %797 = vmatpush2.msra.mxu0 0.0
    %798 = vmatprep.subr.mxu0 0.0
    %799 = vmatpush2.msra.mxu0 0.0
    %800 = vmatprep.subr.mxu0 0.0
    %801 = vmatpush2.msra.mxu0 0.0
    %802 = vmatprep.subr.mxu0 0.0
    %803 = vmatpush2.msra.mxu0 0.0
    %804 = vmatprep.subr.mxu0 0.0
    %805 = vmatpush2.msra.mxu0 0.0
    %806 = vmatprep.subr.mxu0 0.0
    %807 = vmatpush2.msra.mxu0 0.0
    %808 = vmatprep.subr.mxu0 0.0
    %809 = vmatpush2.msra.mxu0 0.0
    %810 = vmatprep.subr.mxu0 0.0
    %811 = vmatpush2.msra.mxu0 0.0
    %812 = vmatprep.subr.mxu0 0.0
    %813 = vmatpush2.msra.mxu0 0.0
    %814 = vmatprep.mubr.f32.mxu0 0.0
    %815 = vmatmul.mubr.f32.gmra.mxu0 %v641
    %v816 = vpop.f32.mrf.mxu0
    %v817 = vadd.f32 %v607, %v816
    %v818 = vpop.f32.mrf.mxu0
    %819 = vmatprep.mubr.f32.mxu0 0.0
    %820 = vmatmul.mubr.f32.gmra.mxu0 %v413
    %v821 = vpop.f32.mrf.mxu0
    %v822 = vadd.f32 %v612, %v821
    %v823 = vpop.f32.mrf.mxu0
    %824 = vmatprep.mubr.f32.mxu0 0.0
    %825 = vmatmul.mubr.f32.gmra.mxu0 %v416
    %v826 = vpop.f32.mrf.mxu0
    %v827 = vadd.f32 %v617, %v826
    %v828 = vpop.f32.mrf.mxu0
    %829 = vmatprep.mubr.f32.mxu0 0.0
    %830 = vmatmul.mubr.f32.gmra.mxu0 %v419
    %v831 = vpop.f32.mrf.mxu0
    %v832 = vadd.f32 %v622, %v831
    %v833 = vpop.f32.mrf.mxu0
    %834 = vmatprep.mubr.f32.mxu0 0.0
    %835 = vmatmul.mubr.f32.gmra.mxu0 %v422
    %v836 = vpop.f32.mrf.mxu0
    %v837 = vadd.f32 %v627, %v836
    %v838 = vpop.f32.mrf.mxu0
    %839 = vmatprep.mubr.f32.mxu0 0.0
    %840 = vmatmul.mubr.f32.gmra.mxu0 %v425
    %v841 = vpop.f32.mrf.mxu0
    %v842 = vadd.f32 %v632, %v841
    %v843 = vpop.f32.mrf.mxu0
    %844 = vmatprep.mubr.f32.mxu0 0.0
    %845 = vmatmul.mubr.f32.gmra.mxu0 %v428
    %v846 = vpop.f32.mrf.mxu0
    %v847 = vadd.f32 %v637, %v846
    %v848 = vpop.f32.mrf.mxu0
    %849 = vdwg.mxu0
    %v850 = vld [vmem:[#allocation5] sm:$0x7]
    %v852 = vlaneseq
    %v853 = vshrl.u32 %v852, 7
    %v854 = vsub.s32 0, %v853
    %v855 = vrot.slane %v850, %v854
    %v856 = vlaneseq
    %v857 = vshrl.u32 %v856, 7
    %v858 = vsub.s32 1, %v857
    %v859 = vrot.slane %v850, %v858
    %v860 = vlaneseq
    %v861 = vshrl.u32 %v860, 7
    %v862 = vsub.s32 2, %v861
    %v863 = vrot.slane %v850, %v862
    %v867 = vadd.f32 %v710, %v855
    %v868 = vadd.f32 %v712, %v859
    %v869 = vadd.f32 %v817, %v863
    %v870 = vadd.f32 %v716, %v855
    %v871 = vadd.f32 %v718, %v859
    %v872 = vadd.f32 %v822, %v863
    %v873 = vadd.f32 %v722, %v855
    %v874 = vadd.f32 %v724, %v859
    %v875 = vadd.f32 %v827, %v863
    %v876 = vadd.f32 %v728, %v855
    %v877 = vadd.f32 %v730, %v859
    %v878 = vadd.f32 %v832, %v863
    %v879 = vadd.f32 %v734, %v855
    %v880 = vadd.f32 %v736, %v859
    %v881 = vadd.f32 %v837, %v863
    %v882 = vadd.f32 %v740, %v855
    %v883 = vadd.f32 %v742, %v859
    %v884 = vadd.f32 %v842, %v863
    %v885 = vadd.f32 %v746, %v855
    %v886 = vadd.f32 %v748, %v859
    %v887 = vadd.f32 %v847, %v863
    %v888 = vtanh.pop %v867
    %v889 = vtanh.pop %v868
    %v890 = vtanh.pop %v869
    %v891 = vtanh.pop %v870
    %v892 = vtanh.pop %v871
    %v893 = vtanh.pop %v872
    %v894 = vtanh.pop %v873
    %v895 = vtanh.pop %v874
    %v896 = vtanh.pop %v875
    %v897 = vtanh.pop %v876
    %v898 = vtanh.pop %v877
    %v899 = vtanh.pop %v878
    %v900 = vtanh.pop %v879
    %v901 = vtanh.pop %v880
    %v902 = vtanh.pop %v881
    %v903 = vtanh.pop %v882
    %v904 = vtanh.pop %v883
    %v905 = vtanh.pop %v884
    %v906 = vtanh.pop %v885
    %v907 = vtanh.pop %v886
    %v908 = vtanh.pop %v887
    %v909 = vld [vmem:[%s3] sm:$0xff]
    %v910 = vld [vmem:[%s3 + $0x8] sm:$0xff]
    %v911 = vld [vmem:[%s3 + $0x10] sm:$0xff]
    %v912 = vld [vmem:[%s3 + $0x18] sm:$0xff]
    %v913 = vld [vmem:[%s3 + $0x20] sm:$0xff]
    %v914 = vld [vmem:[%s3 + $0x28] sm:$0xff]
    %v915 = vld [vmem:[%s3 + $0x30] sm:$0xff]
    %v916 = vld [vmem:[%s3 + $0x38] sm:$0xff]
    %v917 = vld [vmem:[%s3 + $0x40] sm:$0xff]
    %v918 = vld [vmem:[%s3 + $0x48] sm:$0xff]
    %v919 = vld [vmem:[%s3 + $0x50] sm:$0xff]
    %v920 = vld [vmem:[%s3 + $0x58] sm:$0xff]
    %v921 = vld [vmem:[%s3 + $0x60] sm:$0xff]
    %v922 = vld [vmem:[%s3 + $0x68] sm:$0xff]
    %v923 = vld [vmem:[%s3 + $0x70] sm:$0xff]
    %v924 = vld [vmem:[%s3 + $0x78] sm:$0xff]
    %v925 = vld [vmem:[%s3 + $0x80] sm:$0xff]
    %v926 = vld [vmem:[%s3 + $0x88] sm:$0xff]
    %v927 = vld [vmem:[%s3 + $0x90] sm:$0xff]
    %v928 = vld [vmem:[%s3 + $0x98] sm:$0xff]
    %v929 = vld [vmem:[%s3 + $0xa0] sm:$0xff]
    %v930 = vld [vmem:[%s3 + $0xa8] sm:$0xff]
    %v931 = vld [vmem:[%s3 + $0xb0] sm:$0xff]
    %v932 = vld [vmem:[%s3 + $0xb8] sm:$0xff]
    %v933 = vld [vmem:[%s3 + $0xc0] sm:$0xff]
    %v934 = vld [vmem:[%s3 + $0xc8] sm:$0xff]
    %v935 = vld [vmem:[%s3 + $0xd0] sm:$0xff]
    %v936 = vld [vmem:[%s3 + $0xd8] sm:$0xff]
    %v937 = vld [vmem:[%s3 + $0xe0] sm:$0xff]
    %v938 = vld [vmem:[%s3 + $0xe8] sm:$0xff]
    %v939 = vld [vmem:[%s3 + $0xf0] sm:$0xff]
    %v940 = vld [vmem:[%s3 + $0xf8] sm:$0xff]
    %v941 = vld [vmem:[%s3 + $0x100] sm:$0xff]
    %v942 = vld [vmem:[%s3 + $0x108] sm:$0xff]
    %v943 = vld [vmem:[%s4] sm:$0x1]
    %v945 = vlaneseq
    %v946 = vshrl.u32 %v945, 7
    %v947 = vsub.s32 0, %v946
    %v948 = vrot.slane %v943, %v947
    %vm950 = vcmask 130048
    %v952 = vsel %vm950, %v890, 0
    %v955 = vsel %vm950, %v893, 0
    %v958 = vsel %vm950, %v896, 0
    %v961 = vsel %vm950, %v899, 0
    %v964 = vsel %vm950, %v902, 0
    %v967 = vsel %vm950, %v905, 0
    %v970 = vsel %vm950, %v908, 0
    %972 = vmatprep.subr.mxu0 0.0
    %973 = vmatpush1.msra.mxu0 %v924
    %974 = vmatprep.subr.mxu0 0.0
    %975 = vmatpush1.msra.mxu0 %v923
    %976 = vmatprep.subr.mxu0 0.0
    %977 = vmatpush1.msra.mxu0 %v922
    %978 = vmatprep.subr.mxu0 0.0
    %979 = vmatpush1.msra.mxu0 %v921
    %980 = vmatprep.subr.mxu0 0.0
    %981 = vmatpush1.msra.mxu0 %v920
    %982 = vmatprep.subr.mxu0 0.0
    %983 = vmatpush1.msra.mxu0 %v919
    %984 = vmatprep.subr.mxu0 0.0
    %985 = vmatpush1.msra.mxu0 %v918
    %986 = vmatprep.subr.mxu0 0.0
    %987 = vmatpush1.msra.mxu0 %v917
    %988 = vmatprep.subr.mxu0 0.0
    %989 = vmatpush1.msra.mxu0 %v916
    %990 = vmatprep.subr.mxu0 0.0
    %991 = vmatpush1.msra.mxu0 %v915
    %992 = vmatprep.subr.mxu0 0.0
    %993 = vmatpush1.msra.mxu0 %v914
    %994 = vmatprep.subr.mxu0 0.0
    %995 = vmatpush1.msra.mxu0 %v913
    %996 = vmatprep.subr.mxu0 0.0
    %997 = vmatpush1.msra.mxu0 %v912
    %998 = vmatprep.subr.mxu0 0.0
    %999 = vmatpush1.msra.mxu0 %v911
    %1000 = vmatprep.subr.mxu0 0.0
    %1001 = vmatpush1.msra.mxu0 %v910
    %1002 = vmatprep.subr.mxu0 0.0
    %1003 = vmatpush1.msra.mxu0 %v909
    %1004 = vmatprep.subr.mxu0 0.0
    %1005 = vmatpush2.msra.mxu0 %v940
    %1006 = vmatprep.subr.mxu0 0.0
    %1007 = vmatpush2.msra.mxu0 %v939
    %1008 = vmatprep.subr.mxu0 0.0
    %1009 = vmatpush2.msra.mxu0 %v938
    %1010 = vmatprep.subr.mxu0 0.0
    %1011 = vmatpush2.msra.mxu0 %v937
    %1012 = vmatprep.subr.mxu0 0.0
    %1013 = vmatpush2.msra.mxu0 %v936
    %1014 = vmatprep.subr.mxu0 0.0
    %1015 = vmatpush2.msra.mxu0 %v935
    %1016 = vmatprep.subr.mxu0 0.0
    %1017 = vmatpush2.msra.mxu0 %v934
    %1018 = vmatprep.subr.mxu0 0.0
    %1019 = vmatpush2.msra.mxu0 %v933
    %1020 = vmatprep.subr.mxu0 0.0
    %1021 = vmatpush2.msra.mxu0 %v932
    %1022 = vmatprep.subr.mxu0 0.0
    %1023 = vmatpush2.msra.mxu0 %v931
    %1024 = vmatprep.subr.mxu0 0.0
    %1025 = vmatpush2.msra.mxu0 %v930
    %1026 = vmatprep.subr.mxu0 0.0
    %1027 = vmatpush2.msra.mxu0 %v929
    %1028 = vmatprep.subr.mxu0 0.0
    %1029 = vmatpush2.msra.mxu0 %v928
    %1030 = vmatprep.subr.mxu0 0.0
    %1031 = vmatpush2.msra.mxu0 %v927
    %1032 = vmatprep.subr.mxu0 0.0
    %1033 = vmatpush2.msra.mxu0 %v926
    %1034 = vmatprep.subr.mxu0 0.0
    %1035 = vmatpush2.msra.mxu0 %v925
    %1036 = vmatprep.mubr.f32.mxu0 %v889
    %1037 = vmatmul.mubr.f32.gmra.mxu0 %v888
    %v1038 = vpop.f32.mrf.mxu0
    %v1039 = vadd.f32 %v948, %v1038
    %v1040 = vpop.f32.mrf.mxu0
    %1041 = vmatprep.mubr.f32.mxu0 %v892
    %1042 = vmatmul.mubr.f32.gmra.mxu0 %v891
    %v1043 = vpop.f32.mrf.mxu0
    %v1044 = vadd.f32 %v948, %v1043
    %v1045 = vpop.f32.mrf.mxu0
    %1046 = vmatprep.mubr.f32.mxu0 %v895
    %1047 = vmatmul.mubr.f32.gmra.mxu0 %v894
    %v1048 = vpop.f32.mrf.mxu0
    %v1049 = vadd.f32 %v948, %v1048
    %v1050 = vpop.f32.mrf.mxu0
    %1051 = vmatprep.mubr.f32.mxu0 %v898
    %1052 = vmatmul.mubr.f32.gmra.mxu0 %v897
    %v1053 = vpop.f32.mrf.mxu0
    %v1054 = vadd.f32 %v948, %v1053
    %v1055 = vpop.f32.mrf.mxu0
    %1056 = vmatprep.mubr.f32.mxu0 %v901
    %1057 = vmatmul.mubr.f32.gmra.mxu0 %v900
    %v1058 = vpop.f32.mrf.mxu0
    %v1059 = vadd.f32 %v948, %v1058
    %v1060 = vpop.f32.mrf.mxu0
    %1061 = vmatprep.mubr.f32.mxu0 %v904
    %1062 = vmatmul.mubr.f32.gmra.mxu0 %v903
    %v1063 = vpop.f32.mrf.mxu0
    %v1064 = vadd.f32 %v948, %v1063
    %v1065 = vpop.f32.mrf.mxu0
    %1066 = vmatprep.mubr.f32.mxu0 %v907
    %1067 = vmatmul.mubr.f32.gmra.mxu0 %v906
    %v1068 = vpop.f32.mrf.mxu0
    %v1069 = vadd.f32 %v948, %v1068
    %v1070 = vpop.f32.mrf.mxu0
    %1071 = vdwg.mxu0
    %1072 = vmatprep.subr.mxu0 0.0
    %1073 = vmatpush1.msra.mxu0 0.0
    %1074 = vmatprep.subr.mxu0 0.0
    %1075 = vmatpush1.msra.mxu0 0.0
    %1076 = vmatprep.subr.mxu0 0.0
    %1077 = vmatpush1.msra.mxu0 0.0
    %1078 = vmatprep.subr.mxu0 0.0
    %1079 = vmatpush1.msra.mxu0 0.0
    %1080 = vmatprep.subr.mxu0 0.0
    %1081 = vmatpush1.msra.mxu0 0.0
    %1082 = vmatprep.subr.mxu0 0.0
    %1083 = vmatpush1.msra.mxu0 0.0
    %1084 = vmatprep.subr.mxu0 0.0
    %1085 = vmatpush1.msra.mxu0 0.0
    %1086 = vmatprep.subr.mxu0 0.0
    %1087 = vmatpush1.msra.mxu0 0.0
    %1088 = vmatprep.subr.mxu0 0.0
    %1089 = vmatpush1.msra.mxu0 0.0
    %1090 = vmatprep.subr.mxu0 0.0
    %1091 = vmatpush1.msra.mxu0 0.0
    %1092 = vmatprep.subr.mxu0 0.0
    %1093 = vmatpush1.msra.mxu0 0.0
    %1094 = vmatprep.subr.mxu0 0.0
    %1095 = vmatpush1.msra.mxu0 0.0
    %1096 = vmatprep.subr.mxu0 0.0
    %1097 = vmatpush1.msra.mxu0 0.0
    %1098 = vmatprep.subr.mxu0 0.0
    %1099 = vmatpush1.msra.mxu0 0.0
    %1100 = vmatprep.subr.mxu0 0.0
    %1101 = vmatpush1.msra.mxu0 %v942
    %1102 = vmatprep.subr.mxu0 0.0
    %1103 = vmatpush1.msra.mxu0 %v941
    %1104 = vmatprep.subr.mxu0 0.0
    %1105 = vmatpush2.msra.mxu0 0.0
    %1106 = vmatprep.subr.mxu0 0.0
    %1107 = vmatpush2.msra.mxu0 0.0
    %1108 = vmatprep.subr.mxu0 0.0
    %1109 = vmatpush2.msra.mxu0 0.0
    %1110 = vmatprep.subr.mxu0 0.0
    %1111 = vmatpush2.msra.mxu0 0.0
    %1112 = vmatprep.subr.mxu0 0.0
    %1113 = vmatpush2.msra.mxu0 0.0
    %1114 = vmatprep.subr.mxu0 0.0
    %1115 = vmatpush2.msra.mxu0 0.0
    %1116 = vmatprep.subr.mxu0 0.0
    %1117 = vmatpush2.msra.mxu0 0.0
    %1118 = vmatprep.subr.mxu0 0.0
    %1119 = vmatpush2.msra.mxu0 0.0
    %1120 = vmatprep.subr.mxu0 0.0
    %1121 = vmatpush2.msra.mxu0 0.0
    %1122 = vmatprep.subr.mxu0 0.0
    %1123 = vmatpush2.msra.mxu0 0.0
    %1124 = vmatprep.subr.mxu0 0.0
    %1125 = vmatpush2.msra.mxu0 0.0
    %1126 = vmatprep.subr.mxu0 0.0
    %1127 = vmatpush2.msra.mxu0 0.0
    %1128 = vmatprep.subr.mxu0 0.0
    %1129 = vmatpush2.msra.mxu0 0.0
    %1130 = vmatprep.subr.mxu0 0.0
    %1131 = vmatpush2.msra.mxu0 0.0
    %1132 = vmatprep.subr.mxu0 0.0
    %1133 = vmatpush2.msra.mxu0 0.0
    %1134 = vmatprep.subr.mxu0 0.0
    %1135 = vmatpush2.msra.mxu0 0.0
    %1136 = vmatprep.mubr.f32.mxu0 0.0
    %1137 = vmatmul.mubr.f32.gmra.mxu0 %v952
    %v1138 = vpop.f32.mrf.mxu0
    %v1139 = vadd.f32 %v1039, %v1138
    %v1140 = vpop.f32.mrf.mxu0
    %1141 = vmatprep.mubr.f32.mxu0 0.0
    %1142 = vmatmul.mubr.f32.gmra.mxu0 %v955
    %v1143 = vpop.f32.mrf.mxu0
    %v1144 = vadd.f32 %v1044, %v1143
    %v1145 = vpop.f32.mrf.mxu0
    %1146 = vmatprep.mubr.f32.mxu0 0.0
    %1147 = vmatmul.mubr.f32.gmra.mxu0 %v958
    %v1148 = vpop.f32.mrf.mxu0
    %v1149 = vadd.f32 %v1049, %v1148
    %v1150 = vpop.f32.mrf.mxu0
    %1151 = vmatprep.mubr.f32.mxu0 0.0
    %1152 = vmatmul.mubr.f32.gmra.mxu0 %v961
    %v1153 = vpop.f32.mrf.mxu0
    %v1154 = vadd.f32 %v1054, %v1153
    %v1155 = vpop.f32.mrf.mxu0
    %1156 = vmatprep.mubr.f32.mxu0 0.0
    %1157 = vmatmul.mubr.f32.gmra.mxu0 %v964
    %v1158 = vpop.f32.mrf.mxu0
    %v1159 = vadd.f32 %v1059, %v1158
    %v1160 = vpop.f32.mrf.mxu0
    %1161 = vmatprep.mubr.f32.mxu0 0.0
    %1162 = vmatmul.mubr.f32.gmra.mxu0 %v967
    %v1163 = vpop.f32.mrf.mxu0
    %v1164 = vadd.f32 %v1064, %v1163
    %v1165 = vpop.f32.mrf.mxu0
    %1166 = vmatprep.mubr.f32.mxu0 0.0
    %1167 = vmatmul.mubr.f32.gmra.mxu0 %v970
    %v1168 = vpop.f32.mrf.mxu0
    %v1169 = vadd.f32 %v1069, %v1168
    %v1170 = vpop.f32.mrf.mxu0
    %1171 = vdwg.mxu0
    %v1172 = vtanh.pop %v1139
    %v1173 = vtanh.pop %v1144
    %v1174 = vtanh.pop %v1149
    %v1175 = vtanh.pop %v1154
    %v1176 = vtanh.pop %v1159
    %v1177 = vtanh.pop %v1164
    %v1178 = vtanh.pop %v1169
    %v1179 = vld [vmem:[%s5] sm:$0xff]
    %v1180 = vld [vmem:[%s5 + $0x8] sm:$0xff]
    %v1181 = vld [vmem:[%s5 + $0x10] sm:$0xff]
    %v1182 = vld [vmem:[%s5 + $0x18] sm:$0xff]
    %v1183 = vld [vmem:[%s5 + $0x20] sm:$0xff]
    %v1184 = vld [vmem:[%s5 + $0x28] sm:$0xff]
    %v1185 = vld [vmem:[%s5 + $0x30] sm:$0xff]
    %v1186 = vld [vmem:[%s5 + $0x38] sm:$0xff]
    %v1187 = vld [vmem:[%s5 + $0x40] sm:$0xff]
    %v1188 = vld [vmem:[%s5 + $0x48] sm:$0xff]
    %v1189 = vld [vmem:[#allocation7] sm:$0x1]
    %v1191 = vlaneseq
    %v1192 = vshrl.u32 %v1191, 7
    %v1193 = vsub.s32 0, %v1192
    %v1194 = vrot.slane %v1189, %v1193
    %vm1196 = vcmask 654336
    %v1198 = vsel %vm1196, %v1172, 0
    %v1201 = vsel %vm1196, %v1173, 0
    %v1204 = vsel %vm1196, %v1174, 0
    %v1207 = vsel %vm1196, %v1175, 0
    %v1210 = vsel %vm1196, %v1176, 0
    %v1213 = vsel %vm1196, %v1177, 0
    %v1216 = vsel %vm1196, %v1178, 0
    %1218 = vmatprep.subr.mxu0 0.0
    %1219 = vmatpush1.msra.mxu0 0.0
    %1220 = vmatprep.subr.mxu0 0.0
    %1221 = vmatpush1.msra.mxu0 0.0
    %1222 = vmatprep.subr.mxu0 0.0
    %1223 = vmatpush1.msra.mxu0 0.0
    %1224 = vmatprep.subr.mxu0 0.0
    %1225 = vmatpush1.msra.mxu0 0.0
    %1226 = vmatprep.subr.mxu0 0.0
    %1227 = vmatpush1.msra.mxu0 0.0
    %1228 = vmatprep.subr.mxu0 0.0
    %1229 = vmatpush1.msra.mxu0 0.0
    %1230 = vmatprep.subr.mxu0 0.0
    %1231 = vmatpush1.msra.mxu0 %v1188
    %1232 = vmatprep.subr.mxu0 0.0
    %1233 = vmatpush1.msra.mxu0 %v1187
    %1234 = vmatprep.subr.mxu0 0.0
    %1235 = vmatpush1.msra.mxu0 %v1186
    %1236 = vmatprep.subr.mxu0 0.0
    %1237 = vmatpush1.msra.mxu0 %v1185
    %1238 = vmatprep.subr.mxu0 0.0
    %1239 = vmatpush1.msra.mxu0 %v1184
    %1240 = vmatprep.subr.mxu0 0.0
    %1241 = vmatpush1.msra.mxu0 %v1183
    %1242 = vmatprep.subr.mxu0 0.0
    %1243 = vmatpush1.msra.mxu0 %v1182
    %1244 = vmatprep.subr.mxu0 0.0
    %1245 = vmatpush1.msra.mxu0 %v1181
    %1246 = vmatprep.subr.mxu0 0.0
    %1247 = vmatpush1.msra.mxu0 %v1180
    %1248 = vmatprep.subr.mxu0 0.0
    %1249 = vmatpush1.msra.mxu0 %v1179
    %1250 = vmatprep.subr.mxu0 0.0
    %1251 = vmatpush2.msra.mxu0 0.0
    %1252 = vmatprep.subr.mxu0 0.0
    %1253 = vmatpush2.msra.mxu0 0.0
    %1254 = vmatprep.subr.mxu0 0.0
    %1255 = vmatpush2.msra.mxu0 0.0
    %1256 = vmatprep.subr.mxu0 0.0
    %1257 = vmatpush2.msra.mxu0 0.0
    %1258 = vmatprep.subr.mxu0 0.0
    %1259 = vmatpush2.msra.mxu0 0.0
    %1260 = vmatprep.subr.mxu0 0.0
    %1261 = vmatpush2.msra.mxu0 0.0
    %1262 = vmatprep.subr.mxu0 0.0
    %1263 = vmatpush2.msra.mxu0 0.0
    %1264 = vmatprep.subr.mxu0 0.0
    %1265 = vmatpush2.msra.mxu0 0.0
    %1266 = vmatprep.subr.mxu0 0.0
    %1267 = vmatpush2.msra.mxu0 0.0
    %1268 = vmatprep.subr.mxu0 0.0
    %1269 = vmatpush2.msra.mxu0 0.0
    %1270 = vmatprep.subr.mxu0 0.0
    %1271 = vmatpush2.msra.mxu0 0.0
    %1272 = vmatprep.subr.mxu0 0.0
    %1273 = vmatpush2.msra.mxu0 0.0
    %1274 = vmatprep.subr.mxu0 0.0
    %1275 = vmatpush2.msra.mxu0 0.0
    %1276 = vmatprep.subr.mxu0 0.0
    %1277 = vmatpush2.msra.mxu0 0.0
    %1278 = vmatprep.subr.mxu0 0.0
    %1279 = vmatpush2.msra.mxu0 0.0
    %1280 = vmatprep.subr.mxu0 0.0
    %1281 = vmatpush2.msra.mxu0 0.0
    %1282 = vmatprep.mubr.f32.mxu0 0.0
    %1283 = vmatmul.mubr.f32.gmra.mxu0 %v1198
    %v1284 = vpop.f32.mrf.mxu0
    %v1285 = vadd.f32 %v1194, %v1284
    %v1286 = vpop.f32.mrf.mxu0
    %1287 = vmatprep.mubr.f32.mxu0 0.0
    %1288 = vmatmul.mubr.f32.gmra.mxu0 %v1201
    %v1289 = vpop.f32.mrf.mxu0
    %v1290 = vadd.f32 %v1194, %v1289
    %v1291 = vpop.f32.mrf.mxu0
    %1292 = vmatprep.mubr.f32.mxu0 0.0
    %1293 = vmatmul.mubr.f32.gmra.mxu0 %v1204
    %v1294 = vpop.f32.mrf.mxu0
    %v1295 = vadd.f32 %v1194, %v1294
    %v1296 = vpop.f32.mrf.mxu0
    %1297 = vmatprep.mubr.f32.mxu0 0.0
    %1298 = vmatmul.mubr.f32.gmra.mxu0 %v1207
    %v1299 = vpop.f32.mrf.mxu0
    %v1300 = vadd.f32 %v1194, %v1299
    %v1301 = vpop.f32.mrf.mxu0
    %1302 = vmatprep.mubr.f32.mxu0 0.0
    %1303 = vmatmul.mubr.f32.gmra.mxu0 %v1210
    %v1304 = vpop.f32.mrf.mxu0
    %v1305 = vadd.f32 %v1194, %v1304
    %v1306 = vpop.f32.mrf.mxu0
    %1307 = vmatprep.mubr.f32.mxu0 0.0
    %1308 = vmatmul.mubr.f32.gmra.mxu0 %v1213
    %v1309 = vpop.f32.mrf.mxu0
    %v1310 = vadd.f32 %v1194, %v1309
    %v1311 = vpop.f32.mrf.mxu0
    %1312 = vmatprep.mubr.f32.mxu0 0.0
    %1313 = vmatmul.mubr.f32.gmra.mxu0 %v1216
    %v1314 = vpop.f32.mrf.mxu0
    %v1315 = vadd.f32 %v1194, %v1314
    %v1316 = vpop.f32.mrf.mxu0
    %1317 = vdwg.mxu0
    %v1318 = vtanh.pop %v1285
    %v1319 = vtanh.pop %v1290
    %v1320 = vtanh.pop %v1295
    %v1321 = vtanh.pop %v1300
    %v1322 = vtanh.pop %v1305
    %v1323 = vtanh.pop %v1310
    %v1324 = vtanh.pop %v1315
    %s1325 = smul.u32 4, 7
    %s1326 = smul.u32 %s1325, 4
    %s1327 = smul.u32 %s1326, 4
    %s1328 = sshll.u32 %s1327, 4
    %1329 = dma.done [#allocation4], %s1328
    %v1330 = vpack.c.bf16 %v1318, %v1318
    %v1331 = vld [vmem:[#allocation2] sm:$0xff]
    %v1332 = vld [vmem:[#allocation2 + $0x8] sm:$0xff]
    %v1333 = vld [vmem:[#allocation2 + $0x10] sm:$0xff]
    %v1334 = vld [vmem:[#allocation2 + $0x18] sm:$0xff]
    %v1335 = vld [vmem:[#allocation2 + $0x20] sm:$0xff]
    %v1336 = vld [vmem:[#allocation2 + $0x28] sm:$0xff]
    %v1337 = vld [vmem:[#allocation2 + $0x30] sm:$0x33]
    %v1338 = vld [vmem:[#allocation2 + $0x38] sm:$0x33]
    %v1339 = vpack.c.bf16 %v1319, %v1319
    %s1340 = scalar_lea.vmem [#allocation2], 64
    %v1341 = vld [vmem:[%s1340] sm:$0xff]
    %v1342 = vld [vmem:[%s1340 + $0x8] sm:$0xff]
    %v1343 = vld [vmem:[%s1340 + $0x10] sm:$0xff]
    %v1344 = vld [vmem:[%s1340 + $0x18] sm:$0xff]
    %v1345 = vld [vmem:[%s1340 + $0x20] sm:$0xff]
    %v1346 = vld [vmem:[%s1340 + $0x28] sm:$0xff]
    %v1347 = vld [vmem:[%s1340 + $0x30] sm:$0x33]
    %v1348 = vld [vmem:[%s1340 + $0x38] sm:$0x33]
    %v1357 = vunpack.c.l.b16 %v1341
    %v1358 = vunpack.c.h.b16 %v1341
    %v1359 = vunpack.c.l.b16 %v1342
    %v1360 = vunpack.c.h.b16 %v1342
    %v1361 = vunpack.c.l.b16 %v1343
    %v1362 = vunpack.c.h.b16 %v1343
    %v1363 = vunpack.c.l.b16 %v1344
    %v1364 = vunpack.c.h.b16 %v1344
    %v1365 = vunpack.c.l.b16 %v1345
    %v1366 = vunpack.c.h.b16 %v1345
    %v1367 = vunpack.c.l.b16 %v1346
    %v1368 = vunpack.c.h.b16 %v1346
    %v1369 = vunpack.c.l.b16 %v1347
    %v1370 = vunpack.c.h.b16 %v1347
    %v1371 = vunpack.c.l.b16 %v1348
    %v1372 = vunpack.c.h.b16 %v1348
    %v1373 = vpack.c.b16 %v1361, %v1357
    %v1374 = vpack.c.b16 %v1362, %v1358
    %v1375 = vpack.c.b16 %v1363, %v1359
    %v1376 = vpack.c.b16 %v1364, %v1360
    %v1377 = vpack.c.b16 %v1369, %v1365
    %v1378 = vpack.c.b16 %v1370, %v1366
    %v1379 = vpack.c.b16 %v1371, %v1367
    %v1380 = vpack.c.b16 %v1372, %v1368
    %vm1385 = vcmask 228352
    %v1387 = vsel %vm1385, %v1339, 0
    %vm1389 = vcmask 1045504
    %v1391 = vsel %vm1389, %v1377, 0
    %v1394 = vsel %vm1389, %v1378, 0
    %v1397 = vsel %vm1389, %v1379, 0
    %v1400 = vsel %vm1389, %v1380, 0
    %1402 = vmatprep.subr.bf16.mxu0 0
    %1403 = vmatpush1.bf16.msra.mxu0 0
    %1404 = vmatprep.subr.bf16.mxu0 0
    %1405 = vmatpush1.bf16.msra.mxu0 0
    %1406 = vmatprep.subr.bf16.mxu0 0
    %1407 = vmatpush1.bf16.msra.mxu0 0
    %1408 = vmatprep.subr.bf16.mxu0 0
    %1409 = vmatpush1.bf16.msra.mxu0 0
    %1410 = vmatprep.subr.bf16.mxu0 0
    %1411 = vmatpush1.bf16.msra.mxu0 0
    %1412 = vmatprep.subr.bf16.mxu0 0
    %1413 = vmatpush1.bf16.msra.mxu0 0
    %1414 = vmatprep.subr.bf16.mxu0 %v1394
    %1415 = vmatpush1.bf16.msra.mxu0 %v1391
    %1416 = vmatprep.subr.bf16.mxu0 %v1374
    %1417 = vmatpush1.bf16.msra.mxu0 %v1373
    %1418 = vmatprep.subr.bf16.mxu0 0
    %1419 = vmatpush2.bf16.msra.mxu0 0
    %1420 = vmatprep.subr.bf16.mxu0 0
    %1421 = vmatpush2.bf16.msra.mxu0 0
    %1422 = vmatprep.subr.bf16.mxu0 0
    %1423 = vmatpush2.bf16.msra.mxu0 0
    %1424 = vmatprep.subr.bf16.mxu0 0
    %1425 = vmatpush2.bf16.msra.mxu0 0
    %1426 = vmatprep.subr.bf16.mxu0 0
    %1427 = vmatpush2.bf16.msra.mxu0 0
    %1428 = vmatprep.subr.bf16.mxu0 0
    %1429 = vmatpush2.bf16.msra.mxu0 0
    %1430 = vmatprep.subr.bf16.mxu0 0
    %1431 = vmatpush2.bf16.msra.mxu0 0
    %1432 = vmatprep.subr.bf16.mxu0 0
    %1433 = vmatpush2.bf16.msra.mxu0 0
    %1434 = vmatprep.mubr.bf16.mxu0 0
    %1435 = vmatmul.mubr.bf16.gmra.mxu0 %v1387
    %v1436 = vpop.f32.mrf.mxu0
    %v1437 = vadd.f32 0.0, %v1436
    %v1438 = vpop.f32.mrf.mxu0
    %v1439 = vadd.f32 0.0, %v1438
    %v1440 = vpop.f32.mrf.mxu0
    %v1441 = vpop.f32.mrf.mxu0
    %1442 = vdwg.mxu0
    %1443 = vmatprep.subr.bf16.mxu0 0
    %1444 = vmatpush1.bf16.msra.mxu0 0
    %1445 = vmatprep.subr.bf16.mxu0 0
    %1446 = vmatpush1.bf16.msra.mxu0 0
    %1447 = vmatprep.subr.bf16.mxu0 0
    %1448 = vmatpush1.bf16.msra.mxu0 0
    %1449 = vmatprep.subr.bf16.mxu0 0
    %1450 = vmatpush1.bf16.msra.mxu0 0
    %1451 = vmatprep.subr.bf16.mxu0 0
    %1452 = vmatpush1.bf16.msra.mxu0 0
    %1453 = vmatprep.subr.bf16.mxu0 0
    %1454 = vmatpush1.bf16.msra.mxu0 0
    %1455 = vmatprep.subr.bf16.mxu0 %v1400
    %1456 = vmatpush1.bf16.msra.mxu0 %v1397
    %1457 = vmatprep.subr.bf16.mxu0 %v1376
    %1458 = vmatpush1.bf16.msra.mxu0 %v1375
    %1459 = vmatprep.subr.bf16.mxu0 0
    %1460 = vmatpush2.bf16.msra.mxu0 0
    %1461 = vmatprep.subr.bf16.mxu0 0
    %1462 = vmatpush2.bf16.msra.mxu0 0
    %1463 = vmatprep.subr.bf16.mxu0 0
    %1464 = vmatpush2.bf16.msra.mxu0 0
    %1465 = vmatprep.subr.bf16.mxu0 0
    %1466 = vmatpush2.bf16.msra.mxu0 0
    %1467 = vmatprep.subr.bf16.mxu0 0
    %1468 = vmatpush2.bf16.msra.mxu0 0
    %1469 = vmatprep.subr.bf16.mxu0 0
    %1470 = vmatpush2.bf16.msra.mxu0 0
    %1471 = vmatprep.subr.bf16.mxu0 0
    %1472 = vmatpush2.bf16.msra.mxu0 0
    %1473 = vmatprep.subr.bf16.mxu0 0
    %1474 = vmatpush2.bf16.msra.mxu0 0
    %1475 = vmatprep.mubr.bf16.mxu0 0
    %1476 = vmatmul.mubr.bf16.gmra.mxu0 %v1387
    %v1477 = vpop.f32.mrf.mxu0
    %v1478 = vadd.f32 0.0, %v1477
    %v1479 = vpop.f32.mrf.mxu0
    %v1480 = vadd.f32 0.0, %v1479
    %v1481 = vpop.f32.mrf.mxu0
    %v1482 = vpop.f32.mrf.mxu0
    %1483 = vdwg.mxu0
    %v1484 = vpack.c.bf16 %v1320, %v1320
    %s1485 = scalar_lea.vmem [#allocation2], 128
    %v1486 = vld [vmem:[%s1485] sm:$0xff]
    %v1487 = vld [vmem:[%s1485 + $0x8] sm:$0xff]
    %v1488 = vld [vmem:[%s1485 + $0x10] sm:$0xff]
    %v1489 = vld [vmem:[%s1485 + $0x18] sm:$0xff]
    %v1490 = vld [vmem:[%s1485 + $0x20] sm:$0xff]
    %v1491 = vld [vmem:[%s1485 + $0x28] sm:$0xff]
    %v1492 = vld [vmem:[%s1485 + $0x30] sm:$0x33]
    %v1493 = vld [vmem:[%s1485 + $0x38] sm:$0x33]
    %v1494 = vpack.c.bf16 %v1321, %v1321
    %s1495 = scalar_lea.vmem [#allocation2], 192
    %v1496 = vld [vmem:[%s1495] sm:$0xff]
    %v1497 = vld [vmem:[%s1495 + $0x8] sm:$0xff]
    %v1498 = vld [vmem:[%s1495 + $0x10] sm:$0xff]
    %v1499 = vld [vmem:[%s1495 + $0x18] sm:$0xff]
    %v1500 = vld [vmem:[%s1495 + $0x20] sm:$0xff]
    %v1501 = vld [vmem:[%s1495 + $0x28] sm:$0xff]
    %v1502 = vld [vmem:[%s1495 + $0x30] sm:$0x33]
    %v1503 = vld [vmem:[%s1495 + $0x38] sm:$0x33]
    %v1512 = vunpack.c.l.b16 %v1496
    %v1513 = vunpack.c.h.b16 %v1496
    %v1514 = vunpack.c.l.b16 %v1497
    %v1515 = vunpack.c.h.b16 %v1497
    %v1516 = vunpack.c.l.b16 %v1498
    %v1517 = vunpack.c.h.b16 %v1498
    %v1518 = vunpack.c.l.b16 %v1499
    %v1519 = vunpack.c.h.b16 %v1499
    %v1520 = vunpack.c.l.b16 %v1500
    %v1521 = vunpack.c.h.b16 %v1500
    %v1522 = vunpack.c.l.b16 %v1501
    %v1523 = vunpack.c.h.b16 %v1501
    %v1524 = vunpack.c.l.b16 %v1502
    %v1525 = vunpack.c.h.b16 %v1502
    %v1526 = vunpack.c.l.b16 %v1503
    %v1527 = vunpack.c.h.b16 %v1503
    %v1528 = vpack.c.b16 %v1516, %v1512
    %v1529 = vpack.c.b16 %v1517, %v1513
    %v1530 = vpack.c.b16 %v1518, %v1514
    %v1531 = vpack.c.b16 %v1519, %v1515
    %v1532 = vpack.c.b16 %v1524, %v1520
    %v1533 = vpack.c.b16 %v1525, %v1521
    %v1534 = vpack.c.b16 %v1526, %v1522
    %v1535 = vpack.c.b16 %v1527, %v1523
    %v1541 = vsel %vm1385, %v1494, 0
    %v1544 = vsel %vm1389, %v1532, 0
    %v1547 = vsel %vm1389, %v1533, 0
    %v1550 = vsel %vm1389, %v1534, 0
    %v1553 = vsel %vm1389, %v1535, 0
    %1555 = vmatprep.subr.bf16.mxu0 0
    %1556 = vmatpush1.bf16.msra.mxu0 0
    %1557 = vmatprep.subr.bf16.mxu0 0
    %1558 = vmatpush1.bf16.msra.mxu0 0
    %1559 = vmatprep.subr.bf16.mxu0 0
    %1560 = vmatpush1.bf16.msra.mxu0 0
    %1561 = vmatprep.subr.bf16.mxu0 0
    %1562 = vmatpush1.bf16.msra.mxu0 0
    %1563 = vmatprep.subr.bf16.mxu0 0
    %1564 = vmatpush1.bf16.msra.mxu0 0
    %1565 = vmatprep.subr.bf16.mxu0 0
    %1566 = vmatpush1.bf16.msra.mxu0 0
    %1567 = vmatprep.subr.bf16.mxu0 %v1547
    %1568 = vmatpush1.bf16.msra.mxu0 %v1544
    %1569 = vmatprep.subr.bf16.mxu0 %v1529
    %1570 = vmatpush1.bf16.msra.mxu0 %v1528
    %1571 = vmatprep.subr.bf16.mxu0 0
    %1572 = vmatpush2.bf16.msra.mxu0 0
    %1573 = vmatprep.subr.bf16.mxu0 0
    %1574 = vmatpush2.bf16.msra.mxu0 0
    %1575 = vmatprep.subr.bf16.mxu0 0
    %1576 = vmatpush2.bf16.msra.mxu0 0
    %1577 = vmatprep.subr.bf16.mxu0 0
    %1578 = vmatpush2.bf16.msra.mxu0 0
    %1579 = vmatprep.subr.bf16.mxu0 0
    %1580 = vmatpush2.bf16.msra.mxu0 0
    %1581 = vmatprep.subr.bf16.mxu0 0
    %1582 = vmatpush2.bf16.msra.mxu0 0
    %1583 = vmatprep.subr.bf16.mxu0 0
    %1584 = vmatpush2.bf16.msra.mxu0 0
    %1585 = vmatprep.subr.bf16.mxu0 0
    %1586 = vmatpush2.bf16.msra.mxu0 0
    %1587 = vmatprep.mubr.bf16.mxu0 0
    %1588 = vmatmul.mubr.bf16.gmra.mxu0 %v1541
    %v1589 = vpop.f32.mrf.mxu0
    %v1590 = vadd.f32 0.0, %v1589
    %v1591 = vpop.f32.mrf.mxu0
    %v1592 = vadd.f32 0.0, %v1591
    %v1593 = vpop.f32.mrf.mxu0
    %v1594 = vpop.f32.mrf.mxu0
    %1595 = vdwg.mxu0
    %1596 = vmatprep.subr.bf16.mxu0 0
    %1597 = vmatpush1.bf16.msra.mxu0 0
    %1598 = vmatprep.subr.bf16.mxu0 0
    %1599 = vmatpush1.bf16.msra.mxu0 0
    %1600 = vmatprep.subr.bf16.mxu0 0
    %1601 = vmatpush1.bf16.msra.mxu0 0
    %1602 = vmatprep.subr.bf16.mxu0 0
    %1603 = vmatpush1.bf16.msra.mxu0 0
    %1604 = vmatprep.subr.bf16.mxu0 0
    %1605 = vmatpush1.bf16.msra.mxu0 0
    %1606 = vmatprep.subr.bf16.mxu0 0
    %1607 = vmatpush1.bf16.msra.mxu0 0
    %1608 = vmatprep.subr.bf16.mxu0 %v1553
    %1609 = vmatpush1.bf16.msra.mxu0 %v1550
    %1610 = vmatprep.subr.bf16.mxu0 %v1531
    %1611 = vmatpush1.bf16.msra.mxu0 %v1530
    %1612 = vmatprep.subr.bf16.mxu0 0
    %1613 = vmatpush2.bf16.msra.mxu0 0
    %1614 = vmatprep.subr.bf16.mxu0 0
    %1615 = vmatpush2.bf16.msra.mxu0 0
    %1616 = vmatprep.subr.bf16.mxu0 0
    %1617 = vmatpush2.bf16.msra.mxu0 0
    %1618 = vmatprep.subr.bf16.mxu0 0
    %1619 = vmatpush2.bf16.msra.mxu0 0
    %1620 = vmatprep.subr.bf16.mxu0 0
    %1621 = vmatpush2.bf16.msra.mxu0 0
    %1622 = vmatprep.subr.bf16.mxu0 0
    %1623 = vmatpush2.bf16.msra.mxu0 0
    %1624 = vmatprep.subr.bf16.mxu0 0
    %1625 = vmatpush2.bf16.msra.mxu0 0
    %1626 = vmatprep.subr.bf16.mxu0 0
    %1627 = vmatpush2.bf16.msra.mxu0 0
    %1628 = vmatprep.mubr.bf16.mxu0 0
    %1629 = vmatmul.mubr.bf16.gmra.mxu0 %v1541
    %v1630 = vpop.f32.mrf.mxu0
    %v1631 = vadd.f32 0.0, %v1630
    %v1632 = vpop.f32.mrf.mxu0
    %v1633 = vadd.f32 0.0, %v1632
    %v1634 = vpop.f32.mrf.mxu0
    %v1635 = vpop.f32.mrf.mxu0
    %1636 = vdwg.mxu0
    %v1637 = vpack.c.bf16 %v1322, %v1322
    %s1638 = scalar_lea.vmem [#allocation2], 256
    %v1639 = vld [vmem:[%s1638] sm:$0xff]
    %v1640 = vld [vmem:[%s1638 + $0x8] sm:$0xff]
    %v1641 = vld [vmem:[%s1638 + $0x10] sm:$0xff]
    %v1642 = vld [vmem:[%s1638 + $0x18] sm:$0xff]
    %v1643 = vld [vmem:[%s1638 + $0x20] sm:$0xff]
    %v1644 = vld [vmem:[%s1638 + $0x28] sm:$0xff]
    %v1645 = vld [vmem:[%s1638 + $0x30] sm:$0x33]
    %v1646 = vld [vmem:[%s1638 + $0x38] sm:$0x33]
    %v1647 = vpack.c.bf16 %v1323, %v1323
    %s1648 = scalar_lea.vmem [#allocation2], 320
    %v1649 = vld [vmem:[%s1648] sm:$0xff]
    %v1650 = vld [vmem:[%s1648 + $0x8] sm:$0xff]
    %v1651 = vld [vmem:[%s1648 + $0x10] sm:$0xff]
    %v1652 = vld [vmem:[%s1648 + $0x18] sm:$0xff]
    %v1653 = vld [vmem:[%s1648 + $0x20] sm:$0xff]
    %v1654 = vld [vmem:[%s1648 + $0x28] sm:$0xff]
    %v1655 = vld [vmem:[%s1648 + $0x30] sm:$0x33]
    %v1656 = vld [vmem:[%s1648 + $0x38] sm:$0x33]
    %v1665 = vunpack.c.l.b16 %v1649
    %v1666 = vunpack.c.h.b16 %v1649
    %v1667 = vunpack.c.l.b16 %v1650
    %v1668 = vunpack.c.h.b16 %v1650
    %v1669 = vunpack.c.l.b16 %v1651
    %v1670 = vunpack.c.h.b16 %v1651
    %v1671 = vunpack.c.l.b16 %v1652
    %v1672 = vunpack.c.h.b16 %v1652
    %v1673 = vunpack.c.l.b16 %v1653
    %v1674 = vunpack.c.h.b16 %v1653
    %v1675 = vunpack.c.l.b16 %v1654
    %v1676 = vunpack.c.h.b16 %v1654
    %v1677 = vunpack.c.l.b16 %v1655
    %v1678 = vunpack.c.h.b16 %v1655
    %v1679 = vunpack.c.l.b16 %v1656
    %v1680 = vunpack.c.h.b16 %v1656
    %v1681 = vpack.c.b16 %v1669, %v1665
    %v1682 = vpack.c.b16 %v1670, %v1666
    %v1683 = vpack.c.b16 %v1671, %v1667
    %v1684 = vpack.c.b16 %v1672, %v1668
    %v1685 = vpack.c.b16 %v1677, %v1673
    %v1686 = vpack.c.b16 %v1678, %v1674
    %v1687 = vpack.c.b16 %v1679, %v1675
    %v1688 = vpack.c.b16 %v1680, %v1676
    %v1694 = vsel %vm1385, %v1647, 0
    %v1697 = vsel %vm1389, %v1685, 0
    %v1700 = vsel %vm1389, %v1686, 0
    %v1703 = vsel %vm1389, %v1687, 0
    %v1706 = vsel %vm1389, %v1688, 0
    %1708 = vmatprep.subr.bf16.mxu0 0
    %1709 = vmatpush1.bf16.msra.mxu0 0
    %1710 = vmatprep.subr.bf16.mxu0 0
    %1711 = vmatpush1.bf16.msra.mxu0 0
    %1712 = vmatprep.subr.bf16.mxu0 0
    %1713 = vmatpush1.bf16.msra.mxu0 0
    %1714 = vmatprep.subr.bf16.mxu0 0
    %1715 = vmatpush1.bf16.msra.mxu0 0
    %1716 = vmatprep.subr.bf16.mxu0 0
    %1717 = vmatpush1.bf16.msra.mxu0 0
    %1718 = vmatprep.subr.bf16.mxu0 0
    %1719 = vmatpush1.bf16.msra.mxu0 0
    %1720 = vmatprep.subr.bf16.mxu0 %v1700
    %1721 = vmatpush1.bf16.msra.mxu0 %v1697
    %1722 = vmatprep.subr.bf16.mxu0 %v1682
    %1723 = vmatpush1.bf16.msra.mxu0 %v1681
    %1724 = vmatprep.subr.bf16.mxu0 0
    %1725 = vmatpush2.bf16.msra.mxu0 0
    %1726 = vmatprep.subr.bf16.mxu0 0
    %1727 = vmatpush2.bf16.msra.mxu0 0
    %1728 = vmatprep.subr.bf16.mxu0 0
    %1729 = vmatpush2.bf16.msra.mxu0 0
    %1730 = vmatprep.subr.bf16.mxu0 0
    %1731 = vmatpush2.bf16.msra.mxu0 0
    %1732 = vmatprep.subr.bf16.mxu0 0
    %1733 = vmatpush2.bf16.msra.mxu0 0
    %1734 = vmatprep.subr.bf16.mxu0 0
    %1735 = vmatpush2.bf16.msra.mxu0 0
    %1736 = vmatprep.subr.bf16.mxu0 0
    %1737 = vmatpush2.bf16.msra.mxu0 0
    %1738 = vmatprep.subr.bf16.mxu0 0
    %1739 = vmatpush2.bf16.msra.mxu0 0
    %1740 = vmatprep.mubr.bf16.mxu0 0
    %1741 = vmatmul.mubr.bf16.gmra.mxu0 %v1694
    %v1742 = vpop.f32.mrf.mxu0
    %v1743 = vadd.f32 0.0, %v1742
    %v1744 = vpop.f32.mrf.mxu0
    %v1745 = vadd.f32 0.0, %v1744
    %v1746 = vpop.f32.mrf.mxu0
    %v1747 = vpop.f32.mrf.mxu0
    %1748 = vdwg.mxu0
    %1749 = vmatprep.subr.bf16.mxu0 0
    %1750 = vmatpush1.bf16.msra.mxu0 0
    %1751 = vmatprep.subr.bf16.mxu0 0
    %1752 = vmatpush1.bf16.msra.mxu0 0
    %1753 = vmatprep.subr.bf16.mxu0 0
    %1754 = vmatpush1.bf16.msra.mxu0 0
    %1755 = vmatprep.subr.bf16.mxu0 0
    %1756 = vmatpush1.bf16.msra.mxu0 0
    %1757 = vmatprep.subr.bf16.mxu0 0
    %1758 = vmatpush1.bf16.msra.mxu0 0
    %1759 = vmatprep.subr.bf16.mxu0 0
    %1760 = vmatpush1.bf16.msra.mxu0 0
    %1761 = vmatprep.subr.bf16.mxu0 %v1706
    %1762 = vmatpush1.bf16.msra.mxu0 %v1703
    %1763 = vmatprep.subr.bf16.mxu0 %v1684
    %1764 = vmatpush1.bf16.msra.mxu0 %v1683
    %1765 = vmatprep.subr.bf16.mxu0 0
    %1766 = vmatpush2.bf16.msra.mxu0 0
    %1767 = vmatprep.subr.bf16.mxu0 0
    %1768 = vmatpush2.bf16.msra.mxu0 0
    %1769 = vmatprep.subr.bf16.mxu0 0
    %1770 = vmatpush2.bf16.msra.mxu0 0
    %1771 = vmatprep.subr.bf16.mxu0 0
    %1772 = vmatpush2.bf16.msra.mxu0 0
    %1773 = vmatprep.subr.bf16.mxu0 0
    %1774 = vmatpush2.bf16.msra.mxu0 0
    %1775 = vmatprep.subr.bf16.mxu0 0
    %1776 = vmatpush2.bf16.msra.mxu0 0
    %1777 = vmatprep.subr.bf16.mxu0 0
    %1778 = vmatpush2.bf16.msra.mxu0 0
    %1779 = vmatprep.subr.bf16.mxu0 0
    %1780 = vmatpush2.bf16.msra.mxu0 0
    %1781 = vmatprep.mubr.bf16.mxu0 0
    %1782 = vmatmul.mubr.bf16.gmra.mxu0 %v1694
    %v1783 = vpop.f32.mrf.mxu0
    %v1784 = vadd.f32 0.0, %v1783
    %v1785 = vpop.f32.mrf.mxu0
    %v1786 = vadd.f32 0.0, %v1785
    %v1787 = vpop.f32.mrf.mxu0
    %v1788 = vpop.f32.mrf.mxu0
    %1789 = vdwg.mxu0
    %v1790 = vpack.c.bf16 %v1324, %v1324
    %s1791 = scalar_lea.vmem [#allocation2], 384
    %v1792 = vld [vmem:[%s1791] sm:$0xff]
    %v1793 = vld [vmem:[%s1791 + $0x8] sm:$0xff]
    %v1794 = vld [vmem:[%s1791 + $0x10] sm:$0xff]
    %v1795 = vld [vmem:[%s1791 + $0x18] sm:$0xff]
    %v1796 = vld [vmem:[%s1791 + $0x20] sm:$0xff]
    %v1797 = vld [vmem:[%s1791 + $0x28] sm:$0xff]
    %v1798 = vld [vmem:[%s1791 + $0x30] sm:$0x33]
    %v1799 = vld [vmem:[%s1791 + $0x38] sm:$0x33]
    %v1808 = vunpack.c.l.b16 %v1792
    %v1809 = vunpack.c.h.b16 %v1792
    %v1810 = vunpack.c.l.b16 %v1793
    %v1811 = vunpack.c.h.b16 %v1793
    %v1812 = vunpack.c.l.b16 %v1794
    %v1813 = vunpack.c.h.b16 %v1794
    %v1814 = vunpack.c.l.b16 %v1795
    %v1815 = vunpack.c.h.b16 %v1795
    %v1816 = vunpack.c.l.b16 %v1796
    %v1817 = vunpack.c.h.b16 %v1796
    %v1818 = vunpack.c.l.b16 %v1797
    %v1819 = vunpack.c.h.b16 %v1797
    %v1820 = vunpack.c.l.b16 %v1798
    %v1821 = vunpack.c.h.b16 %v1798
    %v1822 = vunpack.c.l.b16 %v1799
    %v1823 = vunpack.c.h.b16 %v1799
    %v1824 = vpack.c.b16 %v1812, %v1808
    %v1825 = vpack.c.b16 %v1813, %v1809
    %v1826 = vpack.c.b16 %v1814, %v1810
    %v1827 = vpack.c.b16 %v1815, %v1811
    %v1828 = vpack.c.b16 %v1820, %v1816
    %v1829 = vpack.c.b16 %v1821, %v1817
    %v1830 = vpack.c.b16 %v1822, %v1818
    %v1831 = vpack.c.b16 %v1823, %v1819
    %v1837 = vsel %vm1385, %v1790, 0
    %v1840 = vsel %vm1389, %v1828, 0
    %v1843 = vsel %vm1389, %v1829, 0
    %v1846 = vsel %vm1389, %v1830, 0
    %v1849 = vsel %vm1389, %v1831, 0
    %1851 = vmatprep.subr.bf16.mxu0 0
    %1852 = vmatpush1.bf16.msra.mxu0 0
    %1853 = vmatprep.subr.bf16.mxu0 0
    %1854 = vmatpush1.bf16.msra.mxu0 0
    %1855 = vmatprep.subr.bf16.mxu0 0
    %1856 = vmatpush1.bf16.msra.mxu0 0
    %1857 = vmatprep.subr.bf16.mxu0 0
    %1858 = vmatpush1.bf16.msra.mxu0 0
    %1859 = vmatprep.subr.bf16.mxu0 0
    %1860 = vmatpush1.bf16.msra.mxu0 0
    %1861 = vmatprep.subr.bf16.mxu0 0
    %1862 = vmatpush1.bf16.msra.mxu0 0
    %1863 = vmatprep.subr.bf16.mxu0 %v1843
    %1864 = vmatpush1.bf16.msra.mxu0 %v1840
    %1865 = vmatprep.subr.bf16.mxu0 %v1825
    %1866 = vmatpush1.bf16.msra.mxu0 %v1824
    %1867 = vmatprep.subr.bf16.mxu0 0
    %1868 = vmatpush2.bf16.msra.mxu0 0
    %1869 = vmatprep.subr.bf16.mxu0 0
    %1870 = vmatpush2.bf16.msra.mxu0 0
    %1871 = vmatprep.subr.bf16.mxu0 0
    %1872 = vmatpush2.bf16.msra.mxu0 0
    %1873 = vmatprep.subr.bf16.mxu0 0
    %1874 = vmatpush2.bf16.msra.mxu0 0
    %1875 = vmatprep.subr.bf16.mxu0 0
    %1876 = vmatpush2.bf16.msra.mxu0 0
    %1877 = vmatprep.subr.bf16.mxu0 0
    %1878 = vmatpush2.bf16.msra.mxu0 0
    %1879 = vmatprep.subr.bf16.mxu0 0
    %1880 = vmatpush2.bf16.msra.mxu0 0
    %1881 = vmatprep.subr.bf16.mxu0 0
    %1882 = vmatpush2.bf16.msra.mxu0 0
    %1883 = vmatprep.mubr.bf16.mxu0 0
    %1884 = vmatmul.mubr.bf16.gmra.mxu0 %v1837
    %v1885 = vpop.f32.mrf.mxu0
    %v1886 = vadd.f32 0.0, %v1885
    %v1887 = vpop.f32.mrf.mxu0
    %v1888 = vadd.f32 0.0, %v1887
    %v1889 = vpop.f32.mrf.mxu0
    %v1890 = vpop.f32.mrf.mxu0
    %1891 = vdwg.mxu0
    %1892 = vmatprep.subr.bf16.mxu0 0
    %1893 = vmatpush1.bf16.msra.mxu0 0
    %1894 = vmatprep.subr.bf16.mxu0 0
    %1895 = vmatpush1.bf16.msra.mxu0 0
    %1896 = vmatprep.subr.bf16.mxu0 0
    %1897 = vmatpush1.bf16.msra.mxu0 0
    %1898 = vmatprep.subr.bf16.mxu0 0
    %1899 = vmatpush1.bf16.msra.mxu0 0
    %1900 = vmatprep.subr.bf16.mxu0 0
    %1901 = vmatpush1.bf16.msra.mxu0 0
    %1902 = vmatprep.subr.bf16.mxu0 0
    %1903 = vmatpush1.bf16.msra.mxu0 0
    %1904 = vmatprep.subr.bf16.mxu0 %v1849
    %1905 = vmatpush1.bf16.msra.mxu0 %v1846
    %1906 = vmatprep.subr.bf16.mxu0 %v1827
    %1907 = vmatpush1.bf16.msra.mxu0 %v1826
    %1908 = vmatprep.subr.bf16.mxu0 0
    %1909 = vmatpush2.bf16.msra.mxu0 0
    %1910 = vmatprep.subr.bf16.mxu0 0
    %1911 = vmatpush2.bf16.msra.mxu0 0
    %1912 = vmatprep.subr.bf16.mxu0 0
    %1913 = vmatpush2.bf16.msra.mxu0 0
    %1914 = vmatprep.subr.bf16.mxu0 0
    %1915 = vmatpush2.bf16.msra.mxu0 0
    %1916 = vmatprep.subr.bf16.mxu0 0
    %1917 = vmatpush2.bf16.msra.mxu0 0
    %1918 = vmatprep.subr.bf16.mxu0 0
    %1919 = vmatpush2.bf16.msra.mxu0 0
    %1920 = vmatprep.subr.bf16.mxu0 0
    %1921 = vmatpush2.bf16.msra.mxu0 0
    %1922 = vmatprep.subr.bf16.mxu0 0
    %1923 = vmatpush2.bf16.msra.mxu0 0
    %1924 = vmatprep.mubr.bf16.mxu0 0
    %1925 = vmatmul.mubr.bf16.gmra.mxu0 %v1837
    %v1926 = vpop.f32.mrf.mxu0
    %v1927 = vadd.f32 0.0, %v1926
    %v1928 = vpop.f32.mrf.mxu0
    %v1929 = vadd.f32 0.0, %v1928
    %v1930 = vpop.f32.mrf.mxu0
    %v1931 = vpop.f32.mrf.mxu0
    %1932 = vdwg.mxu0
    %v1941 = vunpack.c.l.b16 %v1331
    %v1942 = vunpack.c.h.b16 %v1331
    %v1943 = vunpack.c.l.b16 %v1332
    %v1944 = vunpack.c.h.b16 %v1332
    %v1945 = vunpack.c.l.b16 %v1333
    %v1946 = vunpack.c.h.b16 %v1333
    %v1947 = vunpack.c.l.b16 %v1334
    %v1948 = vunpack.c.h.b16 %v1334
    %v1949 = vunpack.c.l.b16 %v1335
    %v1950 = vunpack.c.h.b16 %v1335
    %v1951 = vunpack.c.l.b16 %v1336
    %v1952 = vunpack.c.h.b16 %v1336
    %v1953 = vunpack.c.l.b16 %v1337
    %v1954 = vunpack.c.h.b16 %v1337
    %v1955 = vunpack.c.l.b16 %v1338
    %v1956 = vunpack.c.h.b16 %v1338
    %v1957 = vpack.c.b16 %v1945, %v1941
    %v1958 = vpack.c.b16 %v1946, %v1942
    %v1959 = vpack.c.b16 %v1947, %v1943
    %v1960 = vpack.c.b16 %v1948, %v1944
    %v1961 = vpack.c.b16 %v1953, %v1949
    %v1962 = vpack.c.b16 %v1954, %v1950
    %v1963 = vpack.c.b16 %v1955, %v1951
    %v1964 = vpack.c.b16 %v1956, %v1952
    %v1970 = vsel %vm1385, %v1330, 0
    %v1973 = vsel %vm1389, %v1961, 0
    %v1976 = vsel %vm1389, %v1962, 0
    %v1979 = vsel %vm1389, %v1963, 0
    %v1982 = vsel %vm1389, %v1964, 0
    %1984 = vmatprep.subr.bf16.mxu0 0
    %1985 = vmatpush1.bf16.msra.mxu0 0
    %1986 = vmatprep.subr.bf16.mxu0 0
    %1987 = vmatpush1.bf16.msra.mxu0 0
    %1988 = vmatprep.subr.bf16.mxu0 0
    %1989 = vmatpush1.bf16.msra.mxu0 0
    %1990 = vmatprep.subr.bf16.mxu0 0
    %1991 = vmatpush1.bf16.msra.mxu0 0
    %1992 = vmatprep.subr.bf16.mxu0 0
    %1993 = vmatpush1.bf16.msra.mxu0 0
    %1994 = vmatprep.subr.bf16.mxu0 0
    %1995 = vmatpush1.bf16.msra.mxu0 0
    %1996 = vmatprep.subr.bf16.mxu0 %v1976
    %1997 = vmatpush1.bf16.msra.mxu0 %v1973
    %1998 = vmatprep.subr.bf16.mxu0 %v1958
    %1999 = vmatpush1.bf16.msra.mxu0 %v1957
    %2000 = vmatprep.subr.bf16.mxu0 0
    %2001 = vmatpush2.bf16.msra.mxu0 0
    %2002 = vmatprep.subr.bf16.mxu0 0
    %2003 = vmatpush2.bf16.msra.mxu0 0
    %2004 = vmatprep.subr.bf16.mxu0 0
    %2005 = vmatpush2.bf16.msra.mxu0 0
    %2006 = vmatprep.subr.bf16.mxu0 0
    %2007 = vmatpush2.bf16.msra.mxu0 0
    %2008 = vmatprep.subr.bf16.mxu0 0
    %2009 = vmatpush2.bf16.msra.mxu0 0
    %2010 = vmatprep.subr.bf16.mxu0 0
    %2011 = vmatpush2.bf16.msra.mxu0 0
    %2012 = vmatprep.subr.bf16.mxu0 0
    %2013 = vmatpush2.bf16.msra.mxu0 0
    %2014 = vmatprep.subr.bf16.mxu0 0
    %2015 = vmatpush2.bf16.msra.mxu0 0
    %2016 = vmatprep.mubr.bf16.mxu0 0
    %2017 = vmatmul.mubr.bf16.gmra.mxu0 %v1970
    %v2018 = vpop.f32.mrf.mxu0
    %v2019 = vadd.f32 %v1437, %v2018
    %v2020 = vpop.f32.mrf.mxu0
    %v2021 = vadd.f32 %v1439, %v2020
    %v2022 = vpop.f32.mrf.mxu0
    %v2023 = vpop.f32.mrf.mxu0
    %2024 = vdwg.mxu0
    %2025 = vmatprep.subr.bf16.mxu0 0
    %2026 = vmatpush1.bf16.msra.mxu0 0
    %2027 = vmatprep.subr.bf16.mxu0 0
    %2028 = vmatpush1.bf16.msra.mxu0 0
    %2029 = vmatprep.subr.bf16.mxu0 0
    %2030 = vmatpush1.bf16.msra.mxu0 0
    %2031 = vmatprep.subr.bf16.mxu0 0
    %2032 = vmatpush1.bf16.msra.mxu0 0
    %2033 = vmatprep.subr.bf16.mxu0 0
    %2034 = vmatpush1.bf16.msra.mxu0 0
    %2035 = vmatprep.subr.bf16.mxu0 0
    %2036 = vmatpush1.bf16.msra.mxu0 0
    %2037 = vmatprep.subr.bf16.mxu0 %v1982
    %2038 = vmatpush1.bf16.msra.mxu0 %v1979
    %2039 = vmatprep.subr.bf16.mxu0 %v1960
    %2040 = vmatpush1.bf16.msra.mxu0 %v1959
    %2041 = vmatprep.subr.bf16.mxu0 0
    %2042 = vmatpush2.bf16.msra.mxu0 0
    %2043 = vmatprep.subr.bf16.mxu0 0
    %2044 = vmatpush2.bf16.msra.mxu0 0
    %2045 = vmatprep.subr.bf16.mxu0 0
    %2046 = vmatpush2.bf16.msra.mxu0 0
    %2047 = vmatprep.subr.bf16.mxu0 0
    %2048 = vmatpush2.bf16.msra.mxu0 0
    %2049 = vmatprep.subr.bf16.mxu0 0
    %2050 = vmatpush2.bf16.msra.mxu0 0
    %2051 = vmatprep.subr.bf16.mxu0 0
    %2052 = vmatpush2.bf16.msra.mxu0 0
    %2053 = vmatprep.subr.bf16.mxu0 0
    %2054 = vmatpush2.bf16.msra.mxu0 0
    %2055 = vmatprep.subr.bf16.mxu0 0
    %2056 = vmatpush2.bf16.msra.mxu0 0
    %2057 = vmatprep.mubr.bf16.mxu0 0
    %2058 = vmatmul.mubr.bf16.gmra.mxu0 %v1970
    %v2059 = vpop.f32.mrf.mxu0
    %v2060 = vadd.f32 %v1478, %v2059
    %v2061 = vpop.f32.mrf.mxu0
    %v2062 = vadd.f32 %v1480, %v2061
    %v2063 = vpop.f32.mrf.mxu0
    %v2064 = vpop.f32.mrf.mxu0
    %2065 = vdwg.mxu0
    %v2074 = vunpack.c.l.b16 %v1486
    %v2075 = vunpack.c.h.b16 %v1486
    %v2076 = vunpack.c.l.b16 %v1487
    %v2077 = vunpack.c.h.b16 %v1487
    %v2078 = vunpack.c.l.b16 %v1488
    %v2079 = vunpack.c.h.b16 %v1488
    %v2080 = vunpack.c.l.b16 %v1489
    %v2081 = vunpack.c.h.b16 %v1489
    %v2082 = vunpack.c.l.b16 %v1490
    %v2083 = vunpack.c.h.b16 %v1490
    %v2084 = vunpack.c.l.b16 %v1491
    %v2085 = vunpack.c.h.b16 %v1491
    %v2086 = vunpack.c.l.b16 %v1492
    %v2087 = vunpack.c.h.b16 %v1492
    %v2088 = vunpack.c.l.b16 %v1493
    %v2089 = vunpack.c.h.b16 %v1493
    %v2090 = vpack.c.b16 %v2078, %v2074
    %v2091 = vpack.c.b16 %v2079, %v2075
    %v2092 = vpack.c.b16 %v2080, %v2076
    %v2093 = vpack.c.b16 %v2081, %v2077
    %v2094 = vpack.c.b16 %v2086, %v2082
    %v2095 = vpack.c.b16 %v2087, %v2083
    %v2096 = vpack.c.b16 %v2088, %v2084
    %v2097 = vpack.c.b16 %v2089, %v2085
    %v2103 = vsel %vm1385, %v1484, 0
    %v2106 = vsel %vm1389, %v2094, 0
    %v2109 = vsel %vm1389, %v2095, 0
    %v2112 = vsel %vm1389, %v2096, 0
    %v2115 = vsel %vm1389, %v2097, 0
    %2117 = vmatprep.subr.bf16.mxu0 0
    %2118 = vmatpush1.bf16.msra.mxu0 0
    %2119 = vmatprep.subr.bf16.mxu0 0
    %2120 = vmatpush1.bf16.msra.mxu0 0
    %2121 = vmatprep.subr.bf16.mxu0 0
    %2122 = vmatpush1.bf16.msra.mxu0 0
    %2123 = vmatprep.subr.bf16.mxu0 0
    %2124 = vmatpush1.bf16.msra.mxu0 0
    %2125 = vmatprep.subr.bf16.mxu0 0
    %2126 = vmatpush1.bf16.msra.mxu0 0
    %2127 = vmatprep.subr.bf16.mxu0 0
    %2128 = vmatpush1.bf16.msra.mxu0 0
    %2129 = vmatprep.subr.bf16.mxu0 %v2109
    %2130 = vmatpush1.bf16.msra.mxu0 %v2106
    %2131 = vmatprep.subr.bf16.mxu0 %v2091
    %2132 = vmatpush1.bf16.msra.mxu0 %v2090
    %2133 = vmatprep.subr.bf16.mxu0 0
    %2134 = vmatpush2.bf16.msra.mxu0 0
    %2135 = vmatprep.subr.bf16.mxu0 0
    %2136 = vmatpush2.bf16.msra.mxu0 0
    %2137 = vmatprep.subr.bf16.mxu0 0
    %2138 = vmatpush2.bf16.msra.mxu0 0
    %2139 = vmatprep.subr.bf16.mxu0 0
    %2140 = vmatpush2.bf16.msra.mxu0 0
    %2141 = vmatprep.subr.bf16.mxu0 0
    %2142 = vmatpush2.bf16.msra.mxu0 0
    %2143 = vmatprep.subr.bf16.mxu0 0
    %2144 = vmatpush2.bf16.msra.mxu0 0
    %2145 = vmatprep.subr.bf16.mxu0 0
    %2146 = vmatpush2.bf16.msra.mxu0 0
    %2147 = vmatprep.subr.bf16.mxu0 0
    %2148 = vmatpush2.bf16.msra.mxu0 0
    %2149 = vmatprep.mubr.bf16.mxu0 0
    %2150 = vmatmul.mubr.bf16.gmra.mxu0 %v2103
    %v2151 = vpop.f32.mrf.mxu0
    %v2152 = vadd.f32 %v1590, %v2151
    %v2153 = vpop.f32.mrf.mxu0
    %v2154 = vadd.f32 %v1592, %v2153
    %v2155 = vpop.f32.mrf.mxu0
    %v2156 = vpop.f32.mrf.mxu0
    %2157 = vdwg.mxu0
    %2158 = vmatprep.subr.bf16.mxu0 0
    %2159 = vmatpush1.bf16.msra.mxu0 0
    %2160 = vmatprep.subr.bf16.mxu0 0
    %2161 = vmatpush1.bf16.msra.mxu0 0
    %2162 = vmatprep.subr.bf16.mxu0 0
    %2163 = vmatpush1.bf16.msra.mxu0 0
    %2164 = vmatprep.subr.bf16.mxu0 0
    %2165 = vmatpush1.bf16.msra.mxu0 0
    %2166 = vmatprep.subr.bf16.mxu0 0
    %2167 = vmatpush1.bf16.msra.mxu0 0
    %2168 = vmatprep.subr.bf16.mxu0 0
    %2169 = vmatpush1.bf16.msra.mxu0 0
    %2170 = vmatprep.subr.bf16.mxu0 %v2115
    %2171 = vmatpush1.bf16.msra.mxu0 %v2112
    %2172 = vmatprep.subr.bf16.mxu0 %v2093
    %2173 = vmatpush1.bf16.msra.mxu0 %v2092
    %2174 = vmatprep.subr.bf16.mxu0 0
    %2175 = vmatpush2.bf16.msra.mxu0 0
    %2176 = vmatprep.subr.bf16.mxu0 0
    %2177 = vmatpush2.bf16.msra.mxu0 0
    %2178 = vmatprep.subr.bf16.mxu0 0
    %2179 = vmatpush2.bf16.msra.mxu0 0
    %2180 = vmatprep.subr.bf16.mxu0 0
    %2181 = vmatpush2.bf16.msra.mxu0 0
    %2182 = vmatprep.subr.bf16.mxu0 0
    %2183 = vmatpush2.bf16.msra.mxu0 0
    %2184 = vmatprep.subr.bf16.mxu0 0
    %2185 = vmatpush2.bf16.msra.mxu0 0
    %2186 = vmatprep.subr.bf16.mxu0 0
    %2187 = vmatpush2.bf16.msra.mxu0 0
    %2188 = vmatprep.subr.bf16.mxu0 0
    %2189 = vmatpush2.bf16.msra.mxu0 0
    %2190 = vmatprep.mubr.bf16.mxu0 0
    %2191 = vmatmul.mubr.bf16.gmra.mxu0 %v2103
    %v2192 = vpop.f32.mrf.mxu0
    %v2193 = vadd.f32 %v1631, %v2192
    %v2194 = vpop.f32.mrf.mxu0
    %v2195 = vadd.f32 %v1633, %v2194
    %v2196 = vpop.f32.mrf.mxu0
    %v2197 = vpop.f32.mrf.mxu0
    %2198 = vdwg.mxu0
    %v2207 = vunpack.c.l.b16 %v1639
    %v2208 = vunpack.c.h.b16 %v1639
    %v2209 = vunpack.c.l.b16 %v1640
    %v2210 = vunpack.c.h.b16 %v1640
    %v2211 = vunpack.c.l.b16 %v1641
    %v2212 = vunpack.c.h.b16 %v1641
    %v2213 = vunpack.c.l.b16 %v1642
    %v2214 = vunpack.c.h.b16 %v1642
    %v2215 = vunpack.c.l.b16 %v1643
    %v2216 = vunpack.c.h.b16 %v1643
    %v2217 = vunpack.c.l.b16 %v1644
    %v2218 = vunpack.c.h.b16 %v1644
    %v2219 = vunpack.c.l.b16 %v1645
    %v2220 = vunpack.c.h.b16 %v1645
    %v2221 = vunpack.c.l.b16 %v1646
    %v2222 = vunpack.c.h.b16 %v1646
    %v2223 = vpack.c.b16 %v2211, %v2207
    %v2224 = vpack.c.b16 %v2212, %v2208
    %v2225 = vpack.c.b16 %v2213, %v2209
    %v2226 = vpack.c.b16 %v2214, %v2210
    %v2227 = vpack.c.b16 %v2219, %v2215
    %v2228 = vpack.c.b16 %v2220, %v2216
    %v2229 = vpack.c.b16 %v2221, %v2217
    %v2230 = vpack.c.b16 %v2222, %v2218
    %v2236 = vsel %vm1385, %v1637, 0
    %v2239 = vsel %vm1389, %v2227, 0
    %v2242 = vsel %vm1389, %v2228, 0
    %v2245 = vsel %vm1389, %v2229, 0
    %v2248 = vsel %vm1389, %v2230, 0
    %2250 = vmatprep.subr.bf16.mxu0 0
    %2251 = vmatpush1.bf16.msra.mxu0 0
    %2252 = vmatprep.subr.bf16.mxu0 0
    %2253 = vmatpush1.bf16.msra.mxu0 0
    %2254 = vmatprep.subr.bf16.mxu0 0
    %2255 = vmatpush1.bf16.msra.mxu0 0
    %2256 = vmatprep.subr.bf16.mxu0 0
    %2257 = vmatpush1.bf16.msra.mxu0 0
    %2258 = vmatprep.subr.bf16.mxu0 0
    %2259 = vmatpush1.bf16.msra.mxu0 0
    %2260 = vmatprep.subr.bf16.mxu0 0
    %2261 = vmatpush1.bf16.msra.mxu0 0
    %2262 = vmatprep.subr.bf16.mxu0 %v2242
    %2263 = vmatpush1.bf16.msra.mxu0 %v2239
    %2264 = vmatprep.subr.bf16.mxu0 %v2224
    %2265 = vmatpush1.bf16.msra.mxu0 %v2223
    %2266 = vmatprep.subr.bf16.mxu0 0
    %2267 = vmatpush2.bf16.msra.mxu0 0
    %2268 = vmatprep.subr.bf16.mxu0 0
    %2269 = vmatpush2.bf16.msra.mxu0 0
    %2270 = vmatprep.subr.bf16.mxu0 0
    %2271 = vmatpush2.bf16.msra.mxu0 0
    %2272 = vmatprep.subr.bf16.mxu0 0
    %2273 = vmatpush2.bf16.msra.mxu0 0
    %2274 = vmatprep.subr.bf16.mxu0 0
    %2275 = vmatpush2.bf16.msra.mxu0 0
    %2276 = vmatprep.subr.bf16.mxu0 0
    %2277 = vmatpush2.bf16.msra.mxu0 0
    %2278 = vmatprep.subr.bf16.mxu0 0
    %2279 = vmatpush2.bf16.msra.mxu0 0
    %2280 = vmatprep.subr.bf16.mxu0 0
    %2281 = vmatpush2.bf16.msra.mxu0 0
    %2282 = vmatprep.mubr.bf16.mxu0 0
    %2283 = vmatmul.mubr.bf16.gmra.mxu0 %v2236
    %v2284 = vpop.f32.mrf.mxu0
    %v2285 = vadd.f32 %v1743, %v2284
    %v2286 = vpop.f32.mrf.mxu0
    %v2287 = vadd.f32 %v1745, %v2286
    %v2288 = vpop.f32.mrf.mxu0
    %v2289 = vpop.f32.mrf.mxu0
    %2290 = vdwg.mxu0
    %2291 = vmatprep.subr.bf16.mxu0 0
    %2292 = vmatpush1.bf16.msra.mxu0 0
    %2293 = vmatprep.subr.bf16.mxu0 0
    %2294 = vmatpush1.bf16.msra.mxu0 0
    %2295 = vmatprep.subr.bf16.mxu0 0
    %2296 = vmatpush1.bf16.msra.mxu0 0
    %2297 = vmatprep.subr.bf16.mxu0 0
    %2298 = vmatpush1.bf16.msra.mxu0 0
    %2299 = vmatprep.subr.bf16.mxu0 0
    %2300 = vmatpush1.bf16.msra.mxu0 0
    %2301 = vmatprep.subr.bf16.mxu0 0
    %2302 = vmatpush1.bf16.msra.mxu0 0
    %2303 = vmatprep.subr.bf16.mxu0 %v2248
    %2304 = vmatpush1.bf16.msra.mxu0 %v2245
    %2305 = vmatprep.subr.bf16.mxu0 %v2226
    %2306 = vmatpush1.bf16.msra.mxu0 %v2225
    %2307 = vmatprep.subr.bf16.mxu0 0
    %2308 = vmatpush2.bf16.msra.mxu0 0
    %2309 = vmatprep.subr.bf16.mxu0 0
    %2310 = vmatpush2.bf16.msra.mxu0 0
    %2311 = vmatprep.subr.bf16.mxu0 0
    %2312 = vmatpush2.bf16.msra.mxu0 0
    %2313 = vmatprep.subr.bf16.mxu0 0
    %2314 = vmatpush2.bf16.msra.mxu0 0
    %2315 = vmatprep.subr.bf16.mxu0 0
    %2316 = vmatpush2.bf16.msra.mxu0 0
    %2317 = vmatprep.subr.bf16.mxu0 0
    %2318 = vmatpush2.bf16.msra.mxu0 0
    %2319 = vmatprep.subr.bf16.mxu0 0
    %2320 = vmatpush2.bf16.msra.mxu0 0
    %2321 = vmatprep.subr.bf16.mxu0 0
    %2322 = vmatpush2.bf16.msra.mxu0 0
    %2323 = vmatprep.mubr.bf16.mxu0 0
    %2324 = vmatmul.mubr.bf16.gmra.mxu0 %v2236
    %v2325 = vpop.f32.mrf.mxu0
    %v2326 = vadd.f32 %v1784, %v2325
    %v2327 = vpop.f32.mrf.mxu0
    %v2328 = vadd.f32 %v1786, %v2327
    %v2329 = vpop.f32.mrf.mxu0
    %v2330 = vpop.f32.mrf.mxu0
    %2331 = vdwg.mxu0
    %v2332 = vadd.f32 %v2019, %v2152
    %v2333 = vadd.f32 %v2021, %v2154
    %v2334 = vadd.f32 %v2060, %v2193
    %v2335 = vadd.f32 %v2062, %v2195
    %v2336 = vadd.f32 %v2285, %v1886
    %v2337 = vadd.f32 %v2287, %v1888
    %v2338 = vadd.f32 %v2326, %v1927
    %v2339 = vadd.f32 %v2328, %v1929
    %v2340 = vadd.f32 %v2332, %v2336
    %v2341 = vadd.f32 %v2333, %v2337
    %v2342 = vadd.f32 %v2334, %v2338
    %v2343 = vadd.f32 %v2335, %v2339
    %v2344 = vld [vmem:[#allocation9] sm:$0xf]
    %v2346 = vlaneseq
    %v2347 = vshrl.u32 %v2346, 7
    %v2348 = vsub.s32 0, %v2347
    %v2349 = vrot.slane %v2344, %v2348
    %v2350 = vlaneseq
    %v2351 = vshrl.u32 %v2350, 7
    %v2352 = vsub.s32 1, %v2351
    %v2353 = vrot.slane %v2344, %v2352
    %v2354 = vlaneseq
    %v2355 = vshrl.u32 %v2354, 7
    %v2356 = vsub.s32 2, %v2355
    %v2357 = vrot.slane %v2344, %v2356
    %v2358 = vlaneseq
    %v2359 = vshrl.u32 %v2358, 7
    %v2360 = vsub.s32 3, %v2359
    %v2361 = vrot.slane %v2344, %v2360
    %v2366 = vadd.f32 %v2340, %v2349
    %v2367 = vadd.f32 %v2341, %v2353
    %v2368 = vadd.f32 %v2342, %v2357
    %v2369 = vadd.f32 %v2343, %v2361
    %v2370 = vmax.f32 %v2366, 0.0
    %v2371 = vmax.f32 %v2367, 0.0
    %v2372 = vmax.f32 %v2368, 0.0
    %v2373 = vmax.f32 %v2369, 0.0
    %s2374 = smul.u32 4, 64
    %s2375 = smul.u32 %s2374, 1
    %s2376 = sshll.u32 %s2375, 4
    %2377 = dma.done %s272, %s2376
    %v2378 = vpack.c.bf16 %v2370, %v2370
    %v2379 = vpack.c.bf16 %v2371, %v2371
    %v2380 = vpack.c.bf16 %v2372, %v2372
    %v2381 = vpack.c.bf16 %v2373, %v2373
    %v2382 = vld [vmem:[#allocation3] sm:$0xf]
    %v2383 = vld [vmem:[#allocation3 + $0x4] sm:$0xf]
    %v2384 = vld [vmem:[#allocation3 + $0x8] sm:$0xf]
    %v2385 = vld [vmem:[#allocation3 + $0xc] sm:$0xf]
    %v2386 = vld [vmem:[#allocation3 + $0x10] sm:$0xf]
    %v2387 = vld [vmem:[#allocation3 + $0x14] sm:$0xf]
    %v2388 = vld [vmem:[#allocation3 + $0x18] sm:$0xf]
    %v2389 = vld [vmem:[#allocation3 + $0x1c] sm:$0xf]
    %v2390 = vld [vmem:[#allocation3 + $0x20] sm:$0xf]
    %v2391 = vld [vmem:[#allocation3 + $0x24] sm:$0xf]
    %v2392 = vld [vmem:[#allocation3 + $0x28] sm:$0xf]
    %v2393 = vld [vmem:[#allocation3 + $0x2c] sm:$0xf]
    %v2394 = vld [vmem:[#allocation3 + $0x30] sm:$0xf]
    %v2395 = vld [vmem:[#allocation3 + $0x34] sm:$0xf]
    %v2396 = vld [vmem:[#allocation3 + $0x38] sm:$0xf]
    %v2397 = vld [vmem:[#allocation3 + $0x3c] sm:$0xf]
    %v2398 = vld [vmem:[#allocation3 + $0x40] sm:$0xf]
    %v2399 = vld [vmem:[#allocation3 + $0x44] sm:$0xf]
    %v2400 = vld [vmem:[#allocation3 + $0x48] sm:$0xf]
    %v2401 = vld [vmem:[#allocation3 + $0x4c] sm:$0xf]
    %v2402 = vld [vmem:[#allocation3 + $0x50] sm:$0xf]
    %v2403 = vld [vmem:[#allocation3 + $0x54] sm:$0xf]
    %v2404 = vld [vmem:[#allocation3 + $0x58] sm:$0xf]
    %v2405 = vld [vmem:[#allocation3 + $0x5c] sm:$0xf]
    %v2406 = vld [vmem:[#allocation3 + $0x60] sm:$0xf]
    %v2407 = vld [vmem:[#allocation3 + $0x64] sm:$0xf]
    %v2408 = vld [vmem:[#allocation3 + $0x68] sm:$0xf]
    %v2409 = vld [vmem:[#allocation3 + $0x6c] sm:$0xf]
    %v2410 = vld [vmem:[#allocation3 + $0x70] sm:$0xf]
    %v2411 = vld [vmem:[#allocation3 + $0x74] sm:$0xf]
    %v2412 = vld [vmem:[#allocation3 + $0x78] sm:$0xf]
    %v2413 = vld [vmem:[#allocation3 + $0x7c] sm:$0xf]
    %v2414 = vld [vmem:[#allocation3 + $0x80] sm:$0xf]
    %v2415 = vld [vmem:[#allocation3 + $0x84] sm:$0xf]
    %v2416 = vld [vmem:[#allocation3 + $0x88] sm:$0xf]
    %v2417 = vld [vmem:[#allocation3 + $0x8c] sm:$0xf]
    %v2418 = vld [vmem:[#allocation3 + $0x90] sm:$0xf]
    %v2419 = vld [vmem:[#allocation3 + $0x94] sm:$0xf]
    %v2420 = vld [vmem:[#allocation3 + $0x98] sm:$0xf]
    %v2421 = vld [vmem:[#allocation3 + $0x9c] sm:$0xf]
    %v2422 = vld [vmem:[#allocation3 + $0xa0] sm:$0xf]
    %v2423 = vld [vmem:[#allocation3 + $0xa4] sm:$0xf]
    %v2424 = vld [vmem:[#allocation3 + $0xa8] sm:$0xf]
    %v2425 = vld [vmem:[#allocation3 + $0xac] sm:$0xf]
    %v2426 = vld [vmem:[#allocation3 + $0xb0] sm:$0xf]
    %v2427 = vld [vmem:[#allocation3 + $0xb4] sm:$0xf]
    %v2428 = vld [vmem:[#allocation3 + $0xb8] sm:$0xf]
    %v2429 = vld [vmem:[#allocation3 + $0xbc] sm:$0xf]
    %v2430 = vld [vmem:[#allocation3 + $0xc0] sm:$0xf]
    %v2431 = vld [vmem:[#allocation3 + $0xc4] sm:$0xf]
    %v2432 = vld [vmem:[#allocation3 + $0xc8] sm:$0xf]
    %v2433 = vld [vmem:[#allocation3 + $0xcc] sm:$0xf]
    %v2434 = vld [vmem:[#allocation3 + $0xd0] sm:$0xf]
    %v2435 = vld [vmem:[#allocation3 + $0xd4] sm:$0xf]
    %v2436 = vld [vmem:[#allocation3 + $0xd8] sm:$0xf]
    %v2437 = vld [vmem:[#allocation3 + $0xdc] sm:$0xf]
    %v2438 = vld [vmem:[#allocation3 + $0xe0] sm:$0xf]
    %v2439 = vld [vmem:[#allocation3 + $0xe4] sm:$0xf]
    %v2440 = vld [vmem:[#allocation3 + $0xe8] sm:$0xf]
    %v2441 = vld [vmem:[#allocation3 + $0xec] sm:$0xf]
    %v2442 = vld [vmem:[#allocation3 + $0xf0] sm:$0xf]
    %v2443 = vld [vmem:[#allocation3 + $0xf4] sm:$0xf]
    %v2444 = vld [vmem:[#allocation3 + $0xf8] sm:$0xf]
    %v2445 = vld [vmem:[#allocation3 + $0xfc] sm:$0xf]
    %v2446 = vld [vmem:[#allocation10] sm:$0x1]
    %v2448 = vlaneseq
    %v2449 = vshrl.u32 %v2448, 7
    %v2450 = vsub.s32 0, %v2449
    %v2451 = vrot.slane %v2446, %v2450
    %v2517 = vunpack.c.l.b16 %v2382
    %v2518 = vunpack.c.l.b16 %v2383
    %v2519 = vunpack.c.l.b16 %v2384
    %v2520 = vunpack.c.l.b16 %v2385
    %v2521 = vunpack.c.l.b16 %v2386
    %v2522 = vunpack.c.l.b16 %v2387
    %v2523 = vunpack.c.l.b16 %v2388
    %v2524 = vunpack.c.l.b16 %v2389
    %v2525 = vunpack.c.l.b16 %v2390
    %v2526 = vunpack.c.l.b16 %v2391
    %v2527 = vunpack.c.l.b16 %v2392
    %v2528 = vunpack.c.l.b16 %v2393
    %v2529 = vunpack.c.l.b16 %v2394
    %v2530 = vunpack.c.l.b16 %v2395
    %v2531 = vunpack.c.l.b16 %v2396
    %v2532 = vunpack.c.l.b16 %v2397
    %v2533 = vunpack.c.l.b16 %v2398
    %v2534 = vunpack.c.l.b16 %v2399
    %v2535 = vunpack.c.l.b16 %v2400
    %v2536 = vunpack.c.l.b16 %v2401
    %v2537 = vunpack.c.l.b16 %v2402
    %v2538 = vunpack.c.l.b16 %v2403
    %v2539 = vunpack.c.l.b16 %v2404
    %v2540 = vunpack.c.l.b16 %v2405
    %v2541 = vunpack.c.l.b16 %v2406
    %v2542 = vunpack.c.l.b16 %v2407
    %v2543 = vunpack.c.l.b16 %v2408
    %v2544 = vunpack.c.l.b16 %v2409
    %v2545 = vunpack.c.l.b16 %v2410
    %v2546 = vunpack.c.l.b16 %v2411
    %v2547 = vunpack.c.l.b16 %v2412
    %v2548 = vunpack.c.l.b16 %v2413
    %v2549 = vunpack.c.l.b16 %v2414
    %v2550 = vunpack.c.l.b16 %v2415
    %v2551 = vunpack.c.l.b16 %v2416
    %v2552 = vunpack.c.l.b16 %v2417
    %v2553 = vunpack.c.l.b16 %v2418
    %v2554 = vunpack.c.l.b16 %v2419
    %v2555 = vunpack.c.l.b16 %v2420
    %v2556 = vunpack.c.l.b16 %v2421
    %v2557 = vunpack.c.l.b16 %v2422
    %v2558 = vunpack.c.l.b16 %v2423
    %v2559 = vunpack.c.l.b16 %v2424
    %v2560 = vunpack.c.l.b16 %v2425
    %v2561 = vunpack.c.l.b16 %v2426
    %v2562 = vunpack.c.l.b16 %v2427
    %v2563 = vunpack.c.l.b16 %v2428
    %v2564 = vunpack.c.l.b16 %v2429
    %v2565 = vunpack.c.l.b16 %v2430
    %v2566 = vunpack.c.l.b16 %v2431
    %v2567 = vunpack.c.l.b16 %v2432
    %v2568 = vunpack.c.l.b16 %v2433
    %v2569 = vunpack.c.l.b16 %v2434
    %v2570 = vunpack.c.l.b16 %v2435
    %v2571 = vunpack.c.l.b16 %v2436
    %v2572 = vunpack.c.l.b16 %v2437
    %v2573 = vunpack.c.l.b16 %v2438
    %v2574 = vunpack.c.l.b16 %v2439
    %v2575 = vunpack.c.l.b16 %v2440
    %v2576 = vunpack.c.l.b16 %v2441
    %v2577 = vunpack.c.l.b16 %v2442
    %v2578 = vunpack.c.l.b16 %v2443
    %v2579 = vunpack.c.l.b16 %v2444
    %v2580 = vunpack.c.l.b16 %v2445
    %v2581 = vpack.c.b16 %v2518, %v2517
    %v2582 = vpack.c.b16 %v2520, %v2519
    %v2583 = vpack.c.b16 %v2522, %v2521
    %v2584 = vpack.c.b16 %v2524, %v2523
    %v2585 = vpack.c.b16 %v2526, %v2525
    %v2586 = vpack.c.b16 %v2528, %v2527
    %v2587 = vpack.c.b16 %v2530, %v2529
    %v2588 = vpack.c.b16 %v2532, %v2531
    %v2589 = vpack.c.b16 %v2534, %v2533
    %v2590 = vpack.c.b16 %v2536, %v2535
    %v2591 = vpack.c.b16 %v2538, %v2537
    %v2592 = vpack.c.b16 %v2540, %v2539
    %v2593 = vpack.c.b16 %v2542, %v2541
    %v2594 = vpack.c.b16 %v2544, %v2543
    %v2595 = vpack.c.b16 %v2546, %v2545
    %v2596 = vpack.c.b16 %v2548, %v2547
    %v2597 = vpack.c.b16 %v2550, %v2549
    %v2598 = vpack.c.b16 %v2552, %v2551
    %v2599 = vpack.c.b16 %v2554, %v2553
    %v2600 = vpack.c.b16 %v2556, %v2555
    %v2601 = vpack.c.b16 %v2558, %v2557
    %v2602 = vpack.c.b16 %v2560, %v2559
    %v2603 = vpack.c.b16 %v2562, %v2561
    %v2604 = vpack.c.b16 %v2564, %v2563
    %v2605 = vpack.c.b16 %v2566, %v2565
    %v2606 = vpack.c.b16 %v2568, %v2567
    %v2607 = vpack.c.b16 %v2570, %v2569
    %v2608 = vpack.c.b16 %v2572, %v2571
    %v2609 = vpack.c.b16 %v2574, %v2573
    %v2610 = vpack.c.b16 %v2576, %v2575
    %v2611 = vpack.c.b16 %v2578, %v2577
    %v2612 = vpack.c.b16 %v2580, %v2579
    %2645 = vmatprep.subr.bf16.mxu0 0
    %2646 = vmatpush1.bf16.msra.mxu0 %v2588
    %2647 = vmatprep.subr.bf16.mxu0 0
    %2648 = vmatpush1.bf16.msra.mxu0 %v2587
    %2649 = vmatprep.subr.bf16.mxu0 0
    %2650 = vmatpush1.bf16.msra.mxu0 %v2586
    %2651 = vmatprep.subr.bf16.mxu0 0
    %2652 = vmatpush1.bf16.msra.mxu0 %v2585
    %2653 = vmatprep.subr.bf16.mxu0 0
    %2654 = vmatpush1.bf16.msra.mxu0 %v2584
    %2655 = vmatprep.subr.bf16.mxu0 0
    %2656 = vmatpush1.bf16.msra.mxu0 %v2583
    %2657 = vmatprep.subr.bf16.mxu0 0
    %2658 = vmatpush1.bf16.msra.mxu0 %v2582
    %2659 = vmatprep.subr.bf16.mxu0 0
    %2660 = vmatpush1.bf16.msra.mxu0 %v2581
    %2661 = vmatprep.subr.bf16.mxu0 0
    %2662 = vmatpush2.bf16.msra.mxu0 %v2596
    %2663 = vmatprep.subr.bf16.mxu0 0
    %2664 = vmatpush2.bf16.msra.mxu0 %v2595
    %2665 = vmatprep.subr.bf16.mxu0 0
    %2666 = vmatpush2.bf16.msra.mxu0 %v2594
    %2667 = vmatprep.subr.bf16.mxu0 0
    %2668 = vmatpush2.bf16.msra.mxu0 %v2593
    %2669 = vmatprep.subr.bf16.mxu0 0
    %2670 = vmatpush2.bf16.msra.mxu0 %v2592
    %2671 = vmatprep.subr.bf16.mxu0 0
    %2672 = vmatpush2.bf16.msra.mxu0 %v2591
    %2673 = vmatprep.subr.bf16.mxu0 0
    %2674 = vmatpush2.bf16.msra.mxu0 %v2590
    %2675 = vmatprep.subr.bf16.mxu0 0
    %2676 = vmatpush2.bf16.msra.mxu0 %v2589
    %2677 = vmatprep.mubr.bf16.mxu0 %v2379
    %2678 = vmatmul.mubr.bf16.gmra.mxu0 %v2378
    %v2679 = vpop.f32.mrf.mxu0
    %v2680 = vadd.f32 %v2451, %v2679
    %v2681 = vpop.f32.mrf.mxu0
    %v2682 = vpop.f32.mrf.mxu0
    %v2683 = vpop.f32.mrf.mxu0
    %2684 = vdwg.mxu0
    %2685 = vmatprep.subr.bf16.mxu0 0
    %2686 = vmatpush1.bf16.msra.mxu0 %v2604
    %2687 = vmatprep.subr.bf16.mxu0 0
    %2688 = vmatpush1.bf16.msra.mxu0 %v2603
    %2689 = vmatprep.subr.bf16.mxu0 0
    %2690 = vmatpush1.bf16.msra.mxu0 %v2602
    %2691 = vmatprep.subr.bf16.mxu0 0
    %2692 = vmatpush1.bf16.msra.mxu0 %v2601
    %2693 = vmatprep.subr.bf16.mxu0 0
    %2694 = vmatpush1.bf16.msra.mxu0 %v2600
    %2695 = vmatprep.subr.bf16.mxu0 0
    %2696 = vmatpush1.bf16.msra.mxu0 %v2599
    %2697 = vmatprep.subr.bf16.mxu0 0
    %2698 = vmatpush1.bf16.msra.mxu0 %v2598
    %2699 = vmatprep.subr.bf16.mxu0 0
    %2700 = vmatpush1.bf16.msra.mxu0 %v2597
    %2701 = vmatprep.subr.bf16.mxu0 0
    %2702 = vmatpush2.bf16.msra.mxu0 %v2612
    %2703 = vmatprep.subr.bf16.mxu0 0
    %2704 = vmatpush2.bf16.msra.mxu0 %v2611
    %2705 = vmatprep.subr.bf16.mxu0 0
    %2706 = vmatpush2.bf16.msra.mxu0 %v2610
    %2707 = vmatprep.subr.bf16.mxu0 0
    %2708 = vmatpush2.bf16.msra.mxu0 %v2609
    %2709 = vmatprep.subr.bf16.mxu0 0
    %2710 = vmatpush2.bf16.msra.mxu0 %v2608
    %2711 = vmatprep.subr.bf16.mxu0 0
    %2712 = vmatpush2.bf16.msra.mxu0 %v2607
    %2713 = vmatprep.subr.bf16.mxu0 0
    %2714 = vmatpush2.bf16.msra.mxu0 %v2606
    %2715 = vmatprep.subr.bf16.mxu0 0
    %2716 = vmatpush2.bf16.msra.mxu0 %v2605
    %2717 = vmatprep.mubr.bf16.mxu0 %v2381
    %2718 = vmatmul.mubr.bf16.gmra.mxu0 %v2380
    %v2719 = vpop.f32.mrf.mxu0
    %v2720 = vadd.f32 %v2680, %v2719
    %v2721 = vpop.f32.mrf.mxu0
    %v2722 = vpop.f32.mrf.mxu0
    %v2723 = vpop.f32.mrf.mxu0
    %2724 = vdwg.mxu0
    %v2725 = vmax.f32 %v2720, 0.0
    %v2726 = vld [vmem:[%s11] sm:$0xff]
    %v2727 = vld [vmem:[%s11 + $0x8] sm:$0xff]
    %v2728 = vld [vmem:[%s11 + $0x10] sm:$0xff]
    %v2729 = vld [vmem:[%s11 + $0x18] sm:$0xff]
    %v2730 = vld [vmem:[%s11 + $0x20] sm:$0xff]
    %v2731 = vld [vmem:[%s11 + $0x28] sm:$0xff]
    %v2732 = vld [vmem:[%s11 + $0x30] sm:$0xff]
    %v2733 = vld [vmem:[%s11 + $0x38] sm:$0xff]
    %v2734 = vld [vmem:[%s11 + $0x40] sm:$0xff]
    %v2735 = vld [vmem:[%s11 + $0x48] sm:$0xff]
    %v2736 = vld [vmem:[%s11 + $0x50] sm:$0xff]
    %v2737 = vld [vmem:[%s11 + $0x58] sm:$0xff]
    %v2738 = vld [vmem:[%s11 + $0x60] sm:$0xff]
    %v2739 = vld [vmem:[%s11 + $0x68] sm:$0xff]
    %v2740 = vld [vmem:[%s11 + $0x70] sm:$0xff]
    %v2741 = vld [vmem:[%s11 + $0x78] sm:$0xff]
    %v2742 = vld [vmem:[#allocation12] sm:$0x1]
    %v2744 = vlaneseq
    %v2745 = vshrl.u32 %v2744, 7
    %v2746 = vsub.s32 0, %v2745
    %v2747 = vrot.slane %v2742, %v2746
    %2749 = vmatprep.subr.mxu0 0.0
    %2750 = vmatpush1.msra.mxu0 %v2741
    %2751 = vmatprep.subr.mxu0 0.0
    %2752 = vmatpush1.msra.mxu0 %v2740
    %2753 = vmatprep.subr.mxu0 0.0
    %2754 = vmatpush1.msra.mxu0 %v2739
    %2755 = vmatprep.subr.mxu0 0.0
    %2756 = vmatpush1.msra.mxu0 %v2738
    %2757 = vmatprep.subr.mxu0 0.0
    %2758 = vmatpush1.msra.mxu0 %v2737
    %2759 = vmatprep.subr.mxu0 0.0
    %2760 = vmatpush1.msra.mxu0 %v2736
    %2761 = vmatprep.subr.mxu0 0.0
    %2762 = vmatpush1.msra.mxu0 %v2735
    %2763 = vmatprep.subr.mxu0 0.0
    %2764 = vmatpush1.msra.mxu0 %v2734
    %2765 = vmatprep.subr.mxu0 0.0
    %2766 = vmatpush1.msra.mxu0 %v2733
    %2767 = vmatprep.subr.mxu0 0.0
    %2768 = vmatpush1.msra.mxu0 %v2732
    %2769 = vmatprep.subr.mxu0 0.0
    %2770 = vmatpush1.msra.mxu0 %v2731
    %2771 = vmatprep.subr.mxu0 0.0
    %2772 = vmatpush1.msra.mxu0 %v2730
    %2773 = vmatprep.subr.mxu0 0.0
    %2774 = vmatpush1.msra.mxu0 %v2729
    %2775 = vmatprep.subr.mxu0 0.0
    %2776 = vmatpush1.msra.mxu0 %v2728
    %2777 = vmatprep.subr.mxu0 0.0
    %2778 = vmatpush1.msra.mxu0 %v2727
    %2779 = vmatprep.subr.mxu0 0.0
    %2780 = vmatpush1.msra.mxu0 %v2726
    %2781 = vmatprep.subr.mxu0 0.0
    %2782 = vmatpush2.msra.mxu0 0.0
    %2783 = vmatprep.subr.mxu0 0.0
    %2784 = vmatpush2.msra.mxu0 0.0
    %2785 = vmatprep.subr.mxu0 0.0
    %2786 = vmatpush2.msra.mxu0 0.0
    %2787 = vmatprep.subr.mxu0 0.0
    %2788 = vmatpush2.msra.mxu0 0.0
    %2789 = vmatprep.subr.mxu0 0.0
    %2790 = vmatpush2.msra.mxu0 0.0
    %2791 = vmatprep.subr.mxu0 0.0
    %2792 = vmatpush2.msra.mxu0 0.0
    %2793 = vmatprep.subr.mxu0 0.0
    %2794 = vmatpush2.msra.mxu0 0.0
    %2795 = vmatprep.subr.mxu0 0.0
    %2796 = vmatpush2.msra.mxu0 0.0
    %2797 = vmatprep.subr.mxu0 0.0
    %2798 = vmatpush2.msra.mxu0 0.0
    %2799 = vmatprep.subr.mxu0 0.0
    %2800 = vmatpush2.msra.mxu0 0.0
    %2801 = vmatprep.subr.mxu0 0.0
    %2802 = vmatpush2.msra.mxu0 0.0
    %2803 = vmatprep.subr.mxu0 0.0
    %2804 = vmatpush2.msra.mxu0 0.0
    %2805 = vmatprep.subr.mxu0 0.0
    %2806 = vmatpush2.msra.mxu0 0.0
    %2807 = vmatprep.subr.mxu0 0.0
    %2808 = vmatpush2.msra.mxu0 0.0
    %2809 = vmatprep.subr.mxu0 0.0
    %2810 = vmatpush2.msra.mxu0 0.0
    %2811 = vmatprep.subr.mxu0 0.0
    %2812 = vmatpush2.msra.mxu0 0.0
    %2813 = vmatprep.mubr.f32.mxu0 0.0
    %2814 = vmatmul.mubr.f32.gmra.mxu0 %v2725
    %v2815 = vpop.f32.mrf.mxu0
    %v2816 = vadd.f32 %v2747, %v2815
    %v2817 = vpop.f32.mrf.mxu0
    %2818 = vdwg.mxu0
    %v2819 = vmax.f32 %v2816, 0.0
    %v2820 = vld [vmem:[#allocation13] sm:$0xff]
    %v2821 = vld [vmem:[#allocation13 + $0x8] sm:$0xff]
    %v2822 = vld [vmem:[#allocation13 + $0x10] sm:$0xff]
    %v2823 = vld [vmem:[#allocation13 + $0x18] sm:$0xff]
    %v2824 = vld [vmem:[#allocation13 + $0x20] sm:$0xff]
    %v2825 = vld [vmem:[#allocation13 + $0x28] sm:$0xff]
    %v2826 = vld [vmem:[#allocation13 + $0x30] sm:$0xff]
    %v2827 = vld [vmem:[#allocation13 + $0x38] sm:$0xff]
    %v2828 = vld [vmem:[%s14] sm:$0x1]
    %v2830 = vlaneseq
    %v2831 = vshrl.u32 %v2830, 7
    %v2832 = vsub.s32 0, %v2831
    %v2833 = vrot.slane %v2828, %v2832
    %vm2835 = vcmask 523264
    %v2837 = vsel %vm2835, %v2819, 0
    %2839 = vmatprep.subr.mxu0 0.0
    %2840 = vmatpush1.msra.mxu0 0.0
    %2841 = vmatprep.subr.mxu0 0.0
    %2842 = vmatpush1.msra.mxu0 0.0
    %2843 = vmatprep.subr.mxu0 0.0
    %2844 = vmatpush1.msra.mxu0 0.0
    %2845 = vmatprep.subr.mxu0 0.0
    %2846 = vmatpush1.msra.mxu0 0.0
    %2847 = vmatprep.subr.mxu0 0.0
    %2848 = vmatpush1.msra.mxu0 0.0
    %2849 = vmatprep.subr.mxu0 0.0
    %2850 = vmatpush1.msra.mxu0 0.0
    %2851 = vmatprep.subr.mxu0 0.0
    %2852 = vmatpush1.msra.mxu0 0.0
    %2853 = vmatprep.subr.mxu0 0.0
    %2854 = vmatpush1.msra.mxu0 0.0
    %2855 = vmatprep.subr.mxu0 0.0
    %2856 = vmatpush1.msra.mxu0 %v2827
    %2857 = vmatprep.subr.mxu0 0.0
    %2858 = vmatpush1.msra.mxu0 %v2826
    %2859 = vmatprep.subr.mxu0 0.0
    %2860 = vmatpush1.msra.mxu0 %v2825
    %2861 = vmatprep.subr.mxu0 0.0
    %2862 = vmatpush1.msra.mxu0 %v2824
    %2863 = vmatprep.subr.mxu0 0.0
    %2864 = vmatpush1.msra.mxu0 %v2823
    %2865 = vmatprep.subr.mxu0 0.0
    %2866 = vmatpush1.msra.mxu0 %v2822
    %2867 = vmatprep.subr.mxu0 0.0
    %2868 = vmatpush1.msra.mxu0 %v2821
    %2869 = vmatprep.subr.mxu0 0.0
    %2870 = vmatpush1.msra.mxu0 %v2820
    %2871 = vmatprep.subr.mxu0 0.0
    %2872 = vmatpush2.msra.mxu0 0.0
    %2873 = vmatprep.subr.mxu0 0.0
    %2874 = vmatpush2.msra.mxu0 0.0
    %2875 = vmatprep.subr.mxu0 0.0
    %2876 = vmatpush2.msra.mxu0 0.0
    %2877 = vmatprep.subr.mxu0 0.0
    %2878 = vmatpush2.msra.mxu0 0.0
    %2879 = vmatprep.subr.mxu0 0.0
    %2880 = vmatpush2.msra.mxu0 0.0
    %2881 = vmatprep.subr.mxu0 0.0
    %2882 = vmatpush2.msra.mxu0 0.0
    %2883 = vmatprep.subr.mxu0 0.0
    %2884 = vmatpush2.msra.mxu0 0.0
    %2885 = vmatprep.subr.mxu0 0.0
    %2886 = vmatpush2.msra.mxu0 0.0
    %2887 = vmatprep.subr.mxu0 0.0
    %2888 = vmatpush2.msra.mxu0 0.0
    %2889 = vmatprep.subr.mxu0 0.0
    %2890 = vmatpush2.msra.mxu0 0.0
    %2891 = vmatprep.subr.mxu0 0.0
    %2892 = vmatpush2.msra.mxu0 0.0
    %2893 = vmatprep.subr.mxu0 0.0
    %2894 = vmatpush2.msra.mxu0 0.0
    %2895 = vmatprep.subr.mxu0 0.0
    %2896 = vmatpush2.msra.mxu0 0.0
    %2897 = vmatprep.subr.mxu0 0.0
    %2898 = vmatpush2.msra.mxu0 0.0
    %2899 = vmatprep.subr.mxu0 0.0
    %2900 = vmatpush2.msra.mxu0 0.0
    %2901 = vmatprep.subr.mxu0 0.0
    %2902 = vmatpush2.msra.mxu0 0.0
    %2903 = vmatprep.mubr.f32.mxu0 0.0
    %2904 = vmatmul.mubr.f32.gmra.mxu0 %v2837
    %v2905 = vpop.f32.mrf.mxu0
    %v2906 = vadd.f32 %v2833, %v2905
    %v2907 = vpop.f32.mrf.mxu0
    %2908 = vdwg.mxu0
    %2909 = vst [vmem:[%s15] sm:$0xff] %v2906
    // Predicated region
    $region146: #{team3_forward.1} parent=1 // pred_check
      _
    $region147: #{team3_forward.1} parent=1 // pred_check_branch
      %2911 = sbr.rel (0) target = $region149
    $region148: #{team3_forward.1} parent=1 // pred_region
      _
    $region149: #{team3_forward.1} parent=1 // pred_fallthru
      _
    // Predicated region
    $region150: #{team3_forward.1} parent=1 // pred_check
      _
    $region151: #{team3_forward.1} parent=1 // pred_check_branch
      %2913 = sbr.rel (0) target = $region153
    $region152: #{team3_forward.1} parent=1 // pred_region
      _
    $region153: #{team3_forward.1} parent=1 // pred_fallthru
      _
    %2914 = vsyncpa [#allocation6], 1
    %2915 = vsyncpa [#allocation8], 1
    %2916 = vsyncpa [#allocation11], 1
    %2917 = vsyncpa [#allocation14], 1
  %2918 = vsyncmov [#allocation4]
  %s2919 = vpop.sfrf %2918
  %p2920 = scmp.eq.s32.totalorder %s2919, 0
  %p2921 = pneg %p2920
  %2923 = shalt.err (%p2921)
  %s2924 = scalar_lea.sflag [#allocation4], 1
  %2925 = vsyncmov %s2924
  %s2926 = vpop.sfrf %2925
  %p2927 = scmp.eq.s32.totalorder %s2926, 0
  %p2928 = pneg %p2927
  %2930 = shalt.err (%p2928)

</llo_original>
